<compile_context>
chip_gen: v7x
topology: tpu7x:2x2x1
jax: 0.10.0
libtpu: 0.0.40
codegen_flags: <defaults>
</compile_context>

<pallas_src>
import functools

import jax
import jax.numpy as jnp
import numpy as np
from jax.experimental import pallas as pl
from jax.experimental.pallas import tpu as pltpu


def _round_up(x, m):
    return ((x + m - 1) // m) * m


def rnn_fused_kernel(ids_ref, h0_ref, w_ih_ref, w_hh_ref, b_ih_ref, b_hh_ref,
                     w_lin_ref, b_lin_ref, out_ref, hT_ref, *, seq, batch):
    """Fused: one-hot -> x@W_ih^T -> tanh recurrence -> Linear decoder.

    ids_ref   : (seq*batch, 1)  int32   time-major token ids
    h0_ref    : (batch, hidden) f32
    w_ih_ref  : (hidden, vocab) f32     (as stored by torch nn.RNN)
    w_hh_ref  : (hidden, hidden) f32
    b_*_ref   : (1, hidden) f32
    w_lin_ref : (vocab_pad, hidden) f32 (zero-padded rows)
    b_lin_ref : (1, vocab_pad) f32
    out_ref   : (seq*batch, vocab_pad) f32
    hT_ref    : (batch, hidden) f32
    """
    n = seq * batch
    vocab = w_ih_ref.shape[1]

    hi = jax.lax.Precision.HIGHEST
    t_contract = (((1,), (1,)), ((), ()))   # a @ b.T without materializing b.T

    # --- In-kernel one-hot (iota compare) + single input projection matmul ---
    ids = ids_ref[...]                                            # (n, 1) int32
    iota = jax.lax.broadcasted_iota(jnp.int32, (n, vocab), 1)
    onehot = (iota == ids).astype(jnp.float32)                    # (n, vocab)
    x_all = jax.lax.dot_general(onehot, w_ih_ref[...], t_contract,
                                preferred_element_type=jnp.float32,
                                precision=hi)                     # (n, hidden)

    # --- Combined recurrence bias hoisted out of the serial loop ---
    xb = x_all + (b_ih_ref[...] + b_hh_ref[...])                  # (n, hidden)

    # --- Serial tanh recurrence, h carried in vregs ---
    h = h0_ref[...]                                               # (batch, hidden)
    w_hh = w_hh_ref[...]
    ys = []
    for t in range(seq):                                          # seq is small & static
        pre = xb[t * batch:(t + 1) * batch, :] + jax.lax.dot_general(
            h, w_hh, t_contract,
            preferred_element_type=jnp.float32, precision=hi)
        h = jnp.tanh(pre)
        ys.append(h)

    hT_ref[...] = h                                               # final state, once

    # --- Decoder hoisted out of the recurrence: one (n, hidden)@(hidden, Vp) ---
    y = jnp.concatenate(ys, axis=0)                               # (n, hidden), vregs
    out_ref[...] = jax.lax.dot_general(
        y, w_lin_ref[...], t_contract,
        preferred_element_type=jnp.float32, precision=hi) + b_lin_ref[...]


def rnn_model_forward(inputs, state, params, vocab_size):
    """inputs: (batch, seq) int32; state: (1, batch, hidden) f32."""
    w_ih, w_hh, b_ih, b_hh, w_lin, b_lin = params
    batch, seq = inputs.shape
    hidden = w_hh.shape[0]

    # Time-major flattened token ids (t, b) -> row t*batch + b.
    ids = inputs.T.reshape(seq * batch, 1).astype(jnp.int32)
    h0 = state[0]                                                 # (batch, hidden)

    # Lane-dense decoder: pad vocab dim of the Linear layer to a 128 multiple.
    vocab_p = _round_up(vocab_size, 128)
    if vocab_p != vocab_size:
        w_lin_p = jnp.pad(w_lin, ((0, vocab_p - vocab_size), (0, 0)))
        b_lin_p = jnp.pad(b_lin, ((0, vocab_p - vocab_size),))
    else:
        w_lin_p, b_lin_p = w_lin, b_lin

    b_ih2 = b_ih.reshape(1, hidden)
    b_hh2 = b_hh.reshape(1, hidden)
    b_lin2 = b_lin_p.reshape(1, vocab_p)

    kernel = functools.partial(rnn_fused_kernel, seq=seq, batch=batch)
    vmem = pl.BlockSpec(memory_space=pltpu.MemorySpace.VMEM)

    logits_p, hT = pl.pallas_call(
        kernel,
        out_shape=(
            jax.ShapeDtypeStruct((seq * batch, vocab_p), jnp.float32),
            jax.ShapeDtypeStruct((batch, hidden), jnp.float32),
        ),
        in_specs=[vmem] * 8,          # whole arrays resident in VMEM, no grid
        out_specs=(vmem, vmem),
    )(ids, h0, w_ih, w_hh, b_ih2, b_hh2, w_lin_p, b_lin2)

    logits = logits_p[:, :vocab_size] if vocab_p != vocab_size else logits_p
    return logits, hT[None]                                       # (1, batch, hidden)


def reference_forward(inputs, state, params, vocab_size):
    """Pure-JAX reference mirroring torch nn.RNN(tanh) + Linear (f32)."""
    w_ih, w_hh, b_ih, b_hh, w_lin, b_lin = params
    hi = jax.lax.Precision.HIGHEST
    X = jax.nn.one_hot(inputs.T, vocab_size, dtype=jnp.float32)   # (seq, batch, vocab)
    h = state[0]
    ys = []
    for t in range(X.shape[0]):
        h = jnp.tanh(jnp.dot(X[t], w_ih.T, precision=hi) + b_ih
                     + jnp.dot(h, w_hh.T, precision=hi) + b_hh)
        ys.append(h)
    Y = jnp.stack(ys, axis=0)
    out = jnp.dot(Y.reshape(-1, Y.shape[-1]), w_lin.T, precision=hi) + b_lin
    return out, h[None]


if __name__ == "__main__":
    vocab_size = 32
    num_hiddens = 32
    batch_size = 8
    seq_len = 8

    key = jax.random.PRNGKey(0)
    k = jax.random.split(key, 7)
    bound = 1.0 / np.sqrt(num_hiddens)
    w_ih = jax.random.uniform(k[0], (num_hiddens, vocab_size), jnp.float32, -bound, bound)
    w_hh = jax.random.uniform(k[1], (num_hiddens, num_hiddens), jnp.float32, -bound, bound)
    b_ih = jax.random.uniform(k[2], (num_hiddens,), jnp.float32, -bound, bound)
    b_hh = jax.random.uniform(k[3], (num_hiddens,), jnp.float32, -bound, bound)
    w_lin = jax.random.uniform(k[4], (vocab_size, num_hiddens), jnp.float32, -bound, bound)
    b_lin = jax.random.uniform(k[5], (vocab_size,), jnp.float32, -bound, bound)
    params = (w_ih, w_hh, b_ih, b_hh, w_lin, b_lin)

    inputs = jax.random.randint(k[6], (batch_size, seq_len), 0, vocab_size, jnp.int32)
    state = jnp.zeros((1, batch_size, num_hiddens), jnp.float32)  # begin_state()

    out, new_state = rnn_model_forward(inputs, state, params, vocab_size)
    out = jax.block_until_ready(out)
    new_state = jax.block_until_ready(new_state)

    ref_out, ref_state = reference_forward(inputs, state, params, vocab_size)
    np.testing.assert_allclose(np.asarray(out), np.asarray(ref_out), rtol=1e-5, atol=1e-5)
    np.testing.assert_allclose(np.asarray(new_state), np.asarray(ref_state), rtol=1e-5, atol=1e-5)

    assert out.shape == (seq_len * batch_size, vocab_size)
    assert new_state.shape == (1, batch_size, num_hiddens)
    print("KERNEL_OK")
</pallas_src>

<mosaic_0001>
module attributes {stable_mosaic.version = 11 : i64} {
  func.func @rnn_fused_kernel(%arg0: memref<64x1xi32, #tpu.memory_space<vmem>>, %arg1: memref<8x32xf32, #tpu.memory_space<vmem>>, %arg2: memref<32x32xf32, #tpu.memory_space<vmem>>, %arg3: memref<32x32xf32, #tpu.memory_space<vmem>>, %arg4: memref<1x32xf32, #tpu.memory_space<vmem>>, %arg5: memref<1x32xf32, #tpu.memory_space<vmem>>, %arg6: memref<128x32xf32, #tpu.memory_space<vmem>>, %arg7: memref<1x128xf32, #tpu.memory_space<vmem>>, %arg8: memref<64x128xf32, #tpu.memory_space<vmem>>, %arg9: memref<8x32xf32, #tpu.memory_space<vmem>>) attributes {dimension_semantics = [], scalar_prefetch = 0 : i64, scratch_operands = 0 : i64, tpu.core_type = #tpu.core_type<tc>} {
    %c0 = arith.constant 0 : index
    %c0_0 = arith.constant 0 : index
    %0 = vector.load %arg0[%c0, %c0_0] : memref<64x1xi32, #tpu.memory_space<vmem>>, vector<64x1xi32>
    %1 = tpu.iota {dimensions = array<i32: 1>} : vector<64x32xi32>
    %2 = vector.broadcast %0 : vector<64x1xi32> to vector<64x32xi32>
    %3 = arith.cmpi eq, %1, %2 : vector<64x32xi32>
    %4 = arith.extui %3 : vector<64x32xi1> to vector<64x32xi32>
    %5 = arith.sitofp %4 : vector<64x32xi32> to vector<64x32xf32>
    %c0_1 = arith.constant 0 : index
    %c0_2 = arith.constant 0 : index
    %6 = vector.load %arg2[%c0_1, %c0_2] : memref<32x32xf32, #tpu.memory_space<vmem>>, vector<32x32xf32>
    %cst = arith.constant dense<0.000000e+00> : vector<64x32xf32>
    %7 = tpu.matmul %5, %6, %cst {dimension_numbers = #tpu.dot_dimension_numbers<[1], [1], [0], [0], [0, 0, 1, 0], [], []>, precision = #tpu.contract_precision<fp32>} : vector<64x32xf32>, vector<32x32xf32>, vector<64x32xf32> -> vector<64x32xf32>
    %c0_3 = arith.constant 0 : index
    %c0_4 = arith.constant 0 : index
    %8 = vector.load %arg4[%c0_3, %c0_4] : memref<1x32xf32, #tpu.memory_space<vmem>>, vector<1x32xf32>
    %c0_5 = arith.constant 0 : index
    %c0_6 = arith.constant 0 : index
    %9 = vector.load %arg5[%c0_5, %c0_6] : memref<1x32xf32, #tpu.memory_space<vmem>>, vector<1x32xf32>
    %10 = arith.addf %8, %9 : vector<1x32xf32>
    %11 = vector.broadcast %10 : vector<1x32xf32> to vector<64x32xf32>
    %12 = arith.addf %7, %11 : vector<64x32xf32>
    %c0_7 = arith.constant 0 : index
    %c0_8 = arith.constant 0 : index
    %13 = vector.load %arg1[%c0_7, %c0_8] : memref<8x32xf32, #tpu.memory_space<vmem>>, vector<8x32xf32>
    %c0_9 = arith.constant 0 : index
    %c0_10 = arith.constant 0 : index
    %14 = vector.load %arg3[%c0_9, %c0_10] : memref<32x32xf32, #tpu.memory_space<vmem>>, vector<32x32xf32>
    %15 = vector.extract_strided_slice %12 {offsets = [0, 0], sizes = [8, 32], strides = [1, 1]} : vector<64x32xf32> to vector<8x32xf32>
    %cst_11 = arith.constant dense<0.000000e+00> : vector<8x32xf32>
    %16 = tpu.matmul %13, %14, %cst_11 {dimension_numbers = #tpu.dot_dimension_numbers<[1], [1], [0], [0], [0, 0, 1, 0], [], []>, precision = #tpu.contract_precision<fp32>} : vector<8x32xf32>, vector<32x32xf32>, vector<8x32xf32> -> vector<8x32xf32>
    %17 = arith.addf %15, %16 : vector<8x32xf32>
    %18 = math.tanh %17 : vector<8x32xf32>
    %19 = vector.extract_strided_slice %12 {offsets = [8, 0], sizes = [8, 32], strides = [1, 1]} : vector<64x32xf32> to vector<8x32xf32>
    %cst_12 = arith.constant dense<0.000000e+00> : vector<8x32xf32>
    %20 = tpu.matmul %18, %14, %cst_12 {dimension_numbers = #tpu.dot_dimension_numbers<[1], [1], [0], [0], [0, 0, 1, 0], [], []>, precision = #tpu.contract_precision<fp32>} : vector<8x32xf32>, vector<32x32xf32>, vector<8x32xf32> -> vector<8x32xf32>
    %21 = arith.addf %19, %20 : vector<8x32xf32>
    %22 = math.tanh %21 : vector<8x32xf32>
    %23 = vector.extract_strided_slice %12 {offsets = [16, 0], sizes = [8, 32], strides = [1, 1]} : vector<64x32xf32> to vector<8x32xf32>
    %cst_13 = arith.constant dense<0.000000e+00> : vector<8x32xf32>
    %24 = tpu.matmul %22, %14, %cst_13 {dimension_numbers = #tpu.dot_dimension_numbers<[1], [1], [0], [0], [0, 0, 1, 0], [], []>, precision = #tpu.contract_precision<fp32>} : vector<8x32xf32>, vector<32x32xf32>, vector<8x32xf32> -> vector<8x32xf32>
    %25 = arith.addf %23, %24 : vector<8x32xf32>
    %26 = math.tanh %25 : vector<8x32xf32>
    %27 = vector.extract_strided_slice %12 {offsets = [24, 0], sizes = [8, 32], strides = [1, 1]} : vector<64x32xf32> to vector<8x32xf32>
    %cst_14 = arith.constant dense<0.000000e+00> : vector<8x32xf32>
    %28 = tpu.matmul %26, %14, %cst_14 {dimension_numbers = #tpu.dot_dimension_numbers<[1], [1], [0], [0], [0, 0, 1, 0], [], []>, precision = #tpu.contract_precision<fp32>} : vector<8x32xf32>, vector<32x32xf32>, vector<8x32xf32> -> vector<8x32xf32>
    %29 = arith.addf %27, %28 : vector<8x32xf32>
    %30 = math.tanh %29 : vector<8x32xf32>
    %31 = vector.extract_strided_slice %12 {offsets = [32, 0], sizes = [8, 32], strides = [1, 1]} : vector<64x32xf32> to vector<8x32xf32>
    %cst_15 = arith.constant dense<0.000000e+00> : vector<8x32xf32>
    %32 = tpu.matmul %30, %14, %cst_15 {dimension_numbers = #tpu.dot_dimension_numbers<[1], [1], [0], [0], [0, 0, 1, 0], [], []>, precision = #tpu.contract_precision<fp32>} : vector<8x32xf32>, vector<32x32xf32>, vector<8x32xf32> -> vector<8x32xf32>
    %33 = arith.addf %31, %32 : vector<8x32xf32>
    %34 = math.tanh %33 : vector<8x32xf32>
    %35 = vector.extract_strided_slice %12 {offsets = [40, 0], sizes = [8, 32], strides = [1, 1]} : vector<64x32xf32> to vector<8x32xf32>
    %cst_16 = arith.constant dense<0.000000e+00> : vector<8x32xf32>
    %36 = tpu.matmul %34, %14, %cst_16 {dimension_numbers = #tpu.dot_dimension_numbers<[1], [1], [0], [0], [0, 0, 1, 0], [], []>, precision = #tpu.contract_precision<fp32>} : vector<8x32xf32>, vector<32x32xf32>, vector<8x32xf32> -> vector<8x32xf32>
    %37 = arith.addf %35, %36 : vector<8x32xf32>
    %38 = math.tanh %37 : vector<8x32xf32>
    %39 = vector.extract_strided_slice %12 {offsets = [48, 0], sizes = [8, 32], strides = [1, 1]} : vector<64x32xf32> to vector<8x32xf32>
    %cst_17 = arith.constant dense<0.000000e+00> : vector<8x32xf32>
    %40 = tpu.matmul %38, %14, %cst_17 {dimension_numbers = #tpu.dot_dimension_numbers<[1], [1], [0], [0], [0, 0, 1, 0], [], []>, precision = #tpu.contract_precision<fp32>} : vector<8x32xf32>, vector<32x32xf32>, vector<8x32xf32> -> vector<8x32xf32>
    %41 = arith.addf %39, %40 : vector<8x32xf32>
    %42 = math.tanh %41 : vector<8x32xf32>
    %43 = vector.extract_strided_slice %12 {offsets = [56, 0], sizes = [8, 32], strides = [1, 1]} : vector<64x32xf32> to vector<8x32xf32>
    %cst_18 = arith.constant dense<0.000000e+00> : vector<8x32xf32>
    %44 = tpu.matmul %42, %14, %cst_18 {dimension_numbers = #tpu.dot_dimension_numbers<[1], [1], [0], [0], [0, 0, 1, 0], [], []>, precision = #tpu.contract_precision<fp32>} : vector<8x32xf32>, vector<32x32xf32>, vector<8x32xf32> -> vector<8x32xf32>
    %45 = arith.addf %43, %44 : vector<8x32xf32>
    %46 = math.tanh %45 : vector<8x32xf32>
    %c0_19 = arith.constant 0 : index
    %c0_20 = arith.constant 0 : index
    %47 = vector.load %arg9[%c0_19, %c0_20] : memref<8x32xf32, #tpu.memory_space<vmem>>, vector<8x32xf32>
    tpu.vector_store %arg9[%c0_19, %c0_20], %46 {strides = array<i32>} : memref<8x32xf32, #tpu.memory_space<vmem>>, vector<8x32xf32>,
    %48 = tpu.concatenate %18, %22, %26, %30, %34, %38, %42, %46 in 0 : vector<8x32xf32>, vector<8x32xf32>, vector<8x32xf32>, vector<8x32xf32>, vector<8x32xf32>, vector<8x32xf32>, vector<8x32xf32>, vector<8x32xf32> -> vector<64x32xf32>
    %c0_21 = arith.constant 0 : index
    %c0_22 = arith.constant 0 : index
    %49 = vector.load %arg6[%c0_21, %c0_22] : memref<128x32xf32, #tpu.memory_space<vmem>>, vector<128x32xf32>
    %cst_23 = arith.constant dense<0.000000e+00> : vector<64x128xf32>
    %50 = tpu.matmul %48, %49, %cst_23 {dimension_numbers = #tpu.dot_dimension_numbers<[1], [1], [0], [0], [0, 0, 1, 0], [], []>, precision = #tpu.contract_precision<fp32>} : vector<64x32xf32>, vector<128x32xf32>, vector<64x128xf32> -> vector<64x128xf32>
    %c0_24 = arith.constant 0 : index
    %c0_25 = arith.constant 0 : index
    %51 = vector.load %arg7[%c0_24, %c0_25] : memref<1x128xf32, #tpu.memory_space<vmem>>, vector<1x128xf32>
    %52 = vector.broadcast %51 : vector<1x128xf32> to vector<64x128xf32>
    %53 = arith.addf %50, %52 : vector<64x128xf32>
    %c0_26 = arith.constant 0 : index
    %c0_27 = arith.constant 0 : index
    %54 = vector.load %arg8[%c0_26, %c0_27] : memref<64x128xf32, #tpu.memory_space<vmem>>, vector<64x128xf32>
    tpu.vector_store %arg8[%c0_26, %c0_27], %53 {strides = array<i32>} : memref<64x128xf32, #tpu.memory_space<vmem>>, vector<64x128xf32>,
    return
  }
}

</mosaic_0001>

<llo_original>
// kernel: tpu_custom_call.1
$region0: #{tpu_custom_call.1}
  #allocation0 [shape = 'u32[]', space=smem, size = 0x4, offset = 0x4, fixed_abs, tag = 'smem constant byte address 0x4 - core index']
  #allocation1 [shape = 'u32[144,128]{1,0:T(1,128)}', space=vmem, size = 0x12000, scoped, tag = 'internal scratch']
  %s0 = inlined_call_operand.vmem [shape: s32[64,1], index: 0, kind: input, shape index: {}]
  %s1 = inlined_call_operand.vmem [shape: f32[8,32], index: 1, kind: input, shape index: {}]
  %s2 = inlined_call_operand.vmem [shape: f32[32,32], index: 2, kind: input, shape index: {}]
  %s3 = inlined_call_operand.vmem [shape: f32[32,32], index: 3, kind: input, shape index: {}]
  %s4 = inlined_call_operand.vmem [shape: f32[1,32], index: 4, kind: input, shape index: {}]
  %s5 = inlined_call_operand.vmem [shape: f32[1,32], index: 5, kind: input, shape index: {}]
  %s6 = inlined_call_operand.vmem [shape: f32[128,32], index: 6, kind: input, shape index: {}]
  %s7 = inlined_call_operand.vmem [shape: f32[1,128], index: 7, kind: input, shape index: {}]
  %s8 = inlined_call_operand.hbm [shape: f32[64,128], index: 8, kind: output, shape index: {0}]
  %s9 = inlined_call_operand.hbm [shape: f32[8,32], index: 9, kind: output, shape index: {1}]
  %10 = xla_tuple %s8, %s9
  %s11 = sld [smem:[#allocation0]]
  $region50: #{tpu_custom_call.1} parent=0
    _
  %s13 = ssub.s32 1, %s11
  %s14 = scalar_select 0, %s13, %s11
  $region1: #{tpu_custom_call.1} parent=0
    #allocation2 [shape = 'u8[32768]{0}', space=vmem, size = 0x8000, scoped, tag = 'output window, operand 0, single buffered']
    #allocation3 [shape = 's32[1]{0}', space=sflag, size = 0x4, scoped, tag = 'scoped memory for tpu_custom_call.1']
    #allocation4 [shape = 'u8[4096]{0}', space=vmem, size = 0x1000, scoped, tag = 'output window, operand 1, single buffered']
    #allocation5 [shape = 's32[1]{0}', space=sflag, size = 0x4, scoped, tag = 'scoped memory for tpu_custom_call.1']
    %15 = vsyncpa [#allocation3], 0
    %16 = vsyncpa [#allocation5], 0
    // Predicated region
    $region2: #{tpu_custom_call.1} parent=1 // pred_check
      _
    $region3: #{tpu_custom_call.1} parent=1 // pred_check_branch
      %18 = sbr.rel (0) target = $region5
    $region4: #{tpu_custom_call.1} parent=1 // pred_region
      _
    $region5: #{tpu_custom_call.1} parent=1 // pred_fallthru
      _
    // Predicated region
    $region6: #{tpu_custom_call.1} parent=1 // pred_check
      _
    $region7: #{tpu_custom_call.1} parent=1 // pred_check_branch
      %20 = sbr.rel (0) target = $region9
    $region8: #{tpu_custom_call.1} parent=1 // pred_region
      _
    $region9: #{tpu_custom_call.1} parent=1 // pred_fallthru
      _
    // Predicated region
    $region10: #{tpu_custom_call.1} parent=1 // pred_check
      _
    $region11: #{tpu_custom_call.1} parent=1 // pred_check_branch
      %22 = sbr.rel (0) target = $region13
    $region12: #{tpu_custom_call.1} parent=1 // pred_region
      _
    $region13: #{tpu_custom_call.1} parent=1 // pred_fallthru
      _
    // Predicated region
    $region14: #{tpu_custom_call.1} parent=1 // pred_check
      _
    $region15: #{tpu_custom_call.1} parent=1 // pred_check_branch
      %24 = sbr.rel (0) target = $region17
    $region16: #{tpu_custom_call.1} parent=1 // pred_region
      _
    $region17: #{tpu_custom_call.1} parent=1 // pred_fallthru
      _
    // Predicated region
    $region18: #{tpu_custom_call.1} parent=1 // pred_check
      _
    $region19: #{tpu_custom_call.1} parent=1 // pred_check_branch
      %26 = sbr.rel (0) target = $region21
    $region20: #{tpu_custom_call.1} parent=1 // pred_region
      _
    $region21: #{tpu_custom_call.1} parent=1 // pred_fallthru
      _
    // Predicated region
    $region22: #{tpu_custom_call.1} parent=1 // pred_check
      _
    $region23: #{tpu_custom_call.1} parent=1 // pred_check_branch
      %28 = sbr.rel (0) target = $region25
    $region24: #{tpu_custom_call.1} parent=1 // pred_region
      _
    $region25: #{tpu_custom_call.1} parent=1 // pred_fallthru
      _
    // Predicated region
    $region26: #{tpu_custom_call.1} parent=1 // pred_check
      _
    $region27: #{tpu_custom_call.1} parent=1 // pred_check_branch
      %30 = sbr.rel (0) target = $region29
    $region28: #{tpu_custom_call.1} parent=1 // pred_region
      _
    $region29: #{tpu_custom_call.1} parent=1 // pred_fallthru
      _
    // Predicated region
    $region30: #{tpu_custom_call.1} parent=1 // pred_check
      _
    $region31: #{tpu_custom_call.1} parent=1 // pred_check_branch
      %32 = sbr.rel (0) target = $region33
    $region32: #{tpu_custom_call.1} parent=1 // pred_region
      _
    $region33: #{tpu_custom_call.1} parent=1 // pred_fallthru
      _
    %v33 = vld [vmem:[%s0] sm:$0xff]
    %v34 = vld [vmem:[%s0 + $0x8] sm:$0xff]
    %v35 = vld [vmem:[%s0 + $0x10] sm:$0xff]
    %v36 = vld [vmem:[%s0 + $0x18] sm:$0xff]
    %v37 = vld [vmem:[%s0 + $0x20] sm:$0xff]
    %v38 = vld [vmem:[%s0 + $0x28] sm:$0xff]
    %v39 = vld [vmem:[%s0 + $0x30] sm:$0xff]
    %v40 = vld [vmem:[%s0 + $0x38] sm:$0xff]
    %v41 = vlaneseq
    %v42 = vand.u32 %v41, 127
    %43 = vset.pattern.permute.xlu0 0
    %44 = vperm.xlu0 %43, %v33
    %v45 = vpop.permute.xlu0 %44
    %46 = vset.pattern.permute.xlu0 0
    %47 = vperm.xlu0 %46, %v34
    %v48 = vpop.permute.xlu0 %47
    %49 = vset.pattern.permute.xlu0 0
    %50 = vperm.xlu0 %49, %v35
    %v51 = vpop.permute.xlu0 %50
    %52 = vset.pattern.permute.xlu0 0
    %53 = vperm.xlu0 %52, %v36
    %v54 = vpop.permute.xlu0 %53
    %55 = vset.pattern.permute.xlu0 0
    %56 = vperm.xlu0 %55, %v37
    %v57 = vpop.permute.xlu0 %56
    %58 = vset.pattern.permute.xlu0 0
    %59 = vperm.xlu0 %58, %v38
    %v60 = vpop.permute.xlu0 %59
    %61 = vset.pattern.permute.xlu0 0
    %62 = vperm.xlu0 %61, %v39
    %v63 = vpop.permute.xlu0 %62
    %64 = vset.pattern.permute.xlu0 0
    %65 = vperm.xlu0 %64, %v40
    %v66 = vpop.permute.xlu0 %65
    %vm67 = vcmp.eq.s32.totalorder %v42, %v45
    %vm68 = vcmp.eq.s32.totalorder %v42, %v48
    %vm69 = vcmp.eq.s32.totalorder %v42, %v51
    %vm70 = vcmp.eq.s32.totalorder %v42, %v54
    %vm71 = vcmp.eq.s32.totalorder %v42, %v57
    %vm72 = vcmp.eq.s32.totalorder %v42, %v60
    %vm73 = vcmp.eq.s32.totalorder %v42, %v63
    %vm74 = vcmp.eq.s32.totalorder %v42, %v66
    %v75 = vsel %vm67, 1, 0
    %v76 = vsel %vm68, 1, 0
    %v77 = vsel %vm69, 1, 0
    %v78 = vsel %vm70, 1, 0
    %v79 = vsel %vm71, 1, 0
    %v80 = vsel %vm72, 1, 0
    %v81 = vsel %vm73, 1, 0
    %v82 = vsel %vm74, 1, 0
    %v83 = vcvt.s32.f32 %v75
    %v84 = vcvt.s32.f32 %v76
    %v85 = vcvt.s32.f32 %v77
    %v86 = vcvt.s32.f32 %v78
    %v87 = vcvt.s32.f32 %v79
    %v88 = vcvt.s32.f32 %v80
    %v89 = vcvt.s32.f32 %v81
    %v90 = vcvt.s32.f32 %v82
    %v91 = vld [vmem:[%s2] sm:$0xff]
    %v92 = vld [vmem:[%s2 + $0x8] sm:$0xff]
    %v93 = vld [vmem:[%s2 + $0x10] sm:$0xff]
    %v94 = vld [vmem:[%s2 + $0x18] sm:$0xff]
    %v95 = vld [vmem:[%s4] sm:$0x1]
    %v96 = vld [vmem:[%s5] sm:$0x1]
    %v97 = vadd.f32 %v95, %v96
    %v99 = vlaneseq
    %v100 = vshrl.u32 %v99, 7
    %v101 = vsub.s32 0, %v100
    %v102 = vrot.slane %v97, %v101
    %vm104 = vcmask 261120
    %v106 = vsel %vm104, %v83, 0
    %v109 = vsel %vm104, %v84, 0
    %v112 = vsel %vm104, %v85, 0
    %v115 = vsel %vm104, %v86, 0
    %v118 = vsel %vm104, %v87, 0
    %v121 = vsel %vm104, %v88, 0
    %v124 = vsel %vm104, %v89, 0
    %v127 = vsel %vm104, %v90, 0
    %v130 = vsel %vm104, %v91, 0
    %v133 = vsel %vm104, %v92, 0
    %v136 = vsel %vm104, %v93, 0
    %v139 = vsel %vm104, %v94, 0
    %141 = vmatprep.subr.mxu0 0.0
    %v142 = vand.u32 %v130, 4294901760
    %143 = vmatpush1.xpose.msra.mxu0 %v142
    %144 = vmatprep.subr.mxu0 0.0
    %v145 = vand.u32 %v133, 4294901760
    %146 = vmatpush1.xpose.msra.mxu0 %v145
    %147 = vmatprep.subr.mxu0 0.0
    %v148 = vand.u32 %v136, 4294901760
    %149 = vmatpush1.xpose.msra.mxu0 %v148
    %150 = vmatprep.subr.mxu0 0.0
    %v151 = vand.u32 %v139, 4294901760
    %152 = vmatpush1.xpose.msra.mxu0 %v151
    %153 = vmatprep.subr.mxu0 0.0
    %154 = vmatpush1.xpose.msra.mxu0 0.0
    %155 = vmatprep.subr.mxu0 0.0
    %156 = vmatpush1.xpose.msra.mxu0 0.0
    %157 = vmatprep.subr.mxu0 0.0
    %158 = vmatpush1.xpose.msra.mxu0 0.0
    %159 = vmatprep.subr.mxu0 0.0
    %160 = vmatpush1.xpose.msra.mxu0 0.0
    %161 = vmatprep.subr.mxu0 0.0
    %162 = vmatpush1.xpose.msra.mxu0 0.0
    %163 = vmatprep.subr.mxu0 0.0
    %164 = vmatpush1.xpose.msra.mxu0 0.0
    %165 = vmatprep.subr.mxu0 0.0
    %166 = vmatpush1.xpose.msra.mxu0 0.0
    %167 = vmatprep.subr.mxu0 0.0
    %168 = vmatpush1.xpose.msra.mxu0 0.0
    %169 = vmatprep.subr.mxu0 0.0
    %170 = vmatpush1.xpose.msra.mxu0 0.0
    %171 = vmatprep.subr.mxu0 0.0
    %172 = vmatpush1.xpose.msra.mxu0 0.0
    %173 = vmatprep.subr.mxu0 0.0
    %174 = vmatpush1.xpose.msra.mxu0 0.0
    %175 = vmatprep.subr.mxu0 0.0
    %176 = vmatpush1.xpose.msra.mxu0 0.0
    %177 = vmatprep.subr.mxu0 0.0
    %178 = vmatpush1.xpose.msra.mxu0 0.0
    %179 = vmatprep.subr.mxu0 0.0
    %180 = vmatpush1.xpose.msra.mxu0 0.0
    %181 = vmatprep.subr.mxu0 0.0
    %182 = vmatpush1.xpose.msra.mxu0 0.0
    %183 = vmatprep.subr.mxu0 0.0
    %184 = vmatpush1.xpose.msra.mxu0 0.0
    %185 = vmatprep.subr.mxu0 0.0
    %186 = vmatpush1.xpose.msra.mxu0 0.0
    %187 = vmatprep.subr.mxu0 0.0
    %188 = vmatpush1.xpose.msra.mxu0 0.0
    %189 = vmatprep.subr.mxu0 0.0
    %190 = vmatpush1.xpose.msra.mxu0 0.0
    %191 = vmatprep.subr.mxu0 0.0
    %192 = vmatpush1.xpose.msra.mxu0 0.0
    %193 = vmatprep.subr.mxu0 0.0
    %194 = vmatpush1.xpose.msra.mxu0 0.0
    %195 = vmatprep.subr.mxu0 0.0
    %196 = vmatpush1.xpose.msra.mxu0 0.0
    %197 = vmatprep.subr.mxu0 0.0
    %198 = vmatpush1.xpose.msra.mxu0 0.0
    %199 = vmatprep.subr.mxu0 0.0
    %200 = vmatpush1.xpose.msra.mxu0 0.0
    %201 = vmatprep.subr.mxu0 0.0
    %202 = vmatpush1.xpose.msra.mxu0 0.0
    %203 = vmatprep.subr.mxu0 0.0
    %204 = vmatpush1.xpose.msra.mxu0 0.0
    %205 = vmatprep.subr.mxu0 0.0
    %206 = vmatpush1.xpose.msra.mxu0 0.0
    %207 = vmatprep.subr.mxu0 0.0
    %208 = vmatpush1.xpose.msra.mxu0 0.0
    %209 = vmatprep.mubr.f32.mxu0 0.0
    %v210 = vand.u32 %v106, 4294901760
    %v211 = vsub.f32 %v106, %v210
    %v212 = vand.u32 %v211, 4294901760
    %v213 = vsub.f32 %v211, %v212
    %v214 = vand.u32 %v213, 4294901760
    %215 = vmatmul.mubr.f32.gmra.mrb[0].mxu0 %v214
    %v216 = vpop.f32.mrb[0].mxu0
    %v217 = vadd.f32 %v102, %v216
    %v218 = vpop.f32.mrb[0].mxu0
    %219 = vmatprep.mubr.f32.mxu0 0.0
    %v220 = vand.u32 %v109, 4294901760
    %v221 = vsub.f32 %v109, %v220
    %v222 = vand.u32 %v221, 4294901760
    %v223 = vsub.f32 %v221, %v222
    %v224 = vand.u32 %v223, 4294901760
    %225 = vmatmul.mubr.f32.gmra.mrb[0].mxu0 %v224
    %v226 = vpop.f32.mrb[0].mxu0
    %v227 = vadd.f32 %v102, %v226
    %v228 = vpop.f32.mrb[0].mxu0
    %229 = vmatprep.mubr.f32.mxu0 0.0
    %v230 = vand.u32 %v112, 4294901760
    %v231 = vsub.f32 %v112, %v230
    %v232 = vand.u32 %v231, 4294901760
    %v233 = vsub.f32 %v231, %v232
    %v234 = vand.u32 %v233, 4294901760
    %235 = vmatmul.mubr.f32.gmra.mrb[0].mxu0 %v234
    %v236 = vpop.f32.mrb[0].mxu0
    %v237 = vadd.f32 %v102, %v236
    %v238 = vpop.f32.mrb[0].mxu0
    %239 = vmatprep.mubr.f32.mxu0 0.0
    %v240 = vand.u32 %v115, 4294901760
    %v241 = vsub.f32 %v115, %v240
    %v242 = vand.u32 %v241, 4294901760
    %v243 = vsub.f32 %v241, %v242
    %v244 = vand.u32 %v243, 4294901760
    %245 = vmatmul.mubr.f32.gmra.mrb[0].mxu0 %v244
    %v246 = vpop.f32.mrb[0].mxu0
    %v247 = vadd.f32 %v102, %v246
    %v248 = vpop.f32.mrb[0].mxu0
    %249 = vmatprep.mubr.f32.mxu0 0.0
    %v250 = vand.u32 %v118, 4294901760
    %v251 = vsub.f32 %v118, %v250
    %v252 = vand.u32 %v251, 4294901760
    %v253 = vsub.f32 %v251, %v252
    %v254 = vand.u32 %v253, 4294901760
    %255 = vmatmul.mubr.f32.gmra.mrb[0].mxu0 %v254
    %v256 = vpop.f32.mrb[0].mxu0
    %v257 = vadd.f32 %v102, %v256
    %v258 = vpop.f32.mrb[0].mxu0
    %259 = vmatprep.mubr.f32.mxu0 0.0
    %v260 = vand.u32 %v121, 4294901760
    %v261 = vsub.f32 %v121, %v260
    %v262 = vand.u32 %v261, 4294901760
    %v263 = vsub.f32 %v261, %v262
    %v264 = vand.u32 %v263, 4294901760
    %265 = vmatmul.mubr.f32.gmra.mrb[0].mxu0 %v264
    %v266 = vpop.f32.mrb[0].mxu0
    %v267 = vadd.f32 %v102, %v266
    %v268 = vpop.f32.mrb[0].mxu0
    %269 = vmatprep.mubr.f32.mxu0 0.0
    %v270 = vand.u32 %v124, 4294901760
    %v271 = vsub.f32 %v124, %v270
    %v272 = vand.u32 %v271, 4294901760
    %v273 = vsub.f32 %v271, %v272
    %v274 = vand.u32 %v273, 4294901760
    %275 = vmatmul.mubr.f32.gmra.mrb[0].mxu0 %v274
    %v276 = vpop.f32.mrb[0].mxu0
    %v277 = vadd.f32 %v102, %v276
    %v278 = vpop.f32.mrb[0].mxu0
    %279 = vmatprep.mubr.f32.mxu0 0.0
    %v280 = vand.u32 %v127, 4294901760
    %v281 = vsub.f32 %v127, %v280
    %v282 = vand.u32 %v281, 4294901760
    %v283 = vsub.f32 %v281, %v282
    %v284 = vand.u32 %v283, 4294901760
    %285 = vmatmul.mubr.f32.gmra.mrb[0].mxu0 %v284
    %v286 = vpop.f32.mrb[0].mxu0
    %v287 = vadd.f32 %v102, %v286
    %v288 = vpop.f32.mrb[0].mxu0
    %289 = vdwg.mxu0
    %290 = vmatprep.subr.mxu0 0.0
    %v291 = vand.u32 %v130, 4294901760
    %v292 = vsub.f32 %v130, %v291
    %v293 = vand.u32 %v292, 4294901760
    %v294 = vsub.f32 %v292, %v293
    %v295 = vand.u32 %v294, 4294901760
    %296 = vmatpush1.xpose.msra.mxu0 %v295
    %297 = vmatprep.subr.mxu0 0.0
    %v298 = vand.u32 %v133, 4294901760
    %v299 = vsub.f32 %v133, %v298
    %v300 = vand.u32 %v299, 4294901760
    %v301 = vsub.f32 %v299, %v300
    %v302 = vand.u32 %v301, 4294901760
    %303 = vmatpush1.xpose.msra.mxu0 %v302
    %304 = vmatprep.subr.mxu0 0.0
    %v305 = vand.u32 %v136, 4294901760
    %v306 = vsub.f32 %v136, %v305
    %v307 = vand.u32 %v306, 4294901760
    %v308 = vsub.f32 %v306, %v307
    %v309 = vand.u32 %v308, 4294901760
    %310 = vmatpush1.xpose.msra.mxu0 %v309
    %311 = vmatprep.subr.mxu0 0.0
    %v312 = vand.u32 %v139, 4294901760
    %v313 = vsub.f32 %v139, %v312
    %v314 = vand.u32 %v313, 4294901760
    %v315 = vsub.f32 %v313, %v314
    %v316 = vand.u32 %v315, 4294901760
    %317 = vmatpush1.xpose.msra.mxu0 %v316
    %318 = vmatprep.subr.mxu0 0.0
    %319 = vmatpush1.xpose.msra.mxu0 0.0
    %320 = vmatprep.subr.mxu0 0.0
    %321 = vmatpush1.xpose.msra.mxu0 0.0
    %322 = vmatprep.subr.mxu0 0.0
    %323 = vmatpush1.xpose.msra.mxu0 0.0
    %324 = vmatprep.subr.mxu0 0.0
    %325 = vmatpush1.xpose.msra.mxu0 0.0
    %326 = vmatprep.subr.mxu0 0.0
    %327 = vmatpush1.xpose.msra.mxu0 0.0
    %328 = vmatprep.subr.mxu0 0.0
    %329 = vmatpush1.xpose.msra.mxu0 0.0
    %330 = vmatprep.subr.mxu0 0.0
    %331 = vmatpush1.xpose.msra.mxu0 0.0
    %332 = vmatprep.subr.mxu0 0.0
    %333 = vmatpush1.xpose.msra.mxu0 0.0
    %334 = vmatprep.subr.mxu0 0.0
    %335 = vmatpush1.xpose.msra.mxu0 0.0
    %336 = vmatprep.subr.mxu0 0.0
    %337 = vmatpush1.xpose.msra.mxu0 0.0
    %338 = vmatprep.subr.mxu0 0.0
    %339 = vmatpush1.xpose.msra.mxu0 0.0
    %340 = vmatprep.subr.mxu0 0.0
    %341 = vmatpush1.xpose.msra.mxu0 0.0
    %342 = vmatprep.subr.mxu0 0.0
    %343 = vmatpush1.xpose.msra.mxu0 0.0
    %344 = vmatprep.subr.mxu0 0.0
    %345 = vmatpush1.xpose.msra.mxu0 0.0
    %346 = vmatprep.subr.mxu0 0.0
    %347 = vmatpush1.xpose.msra.mxu0 0.0
    %348 = vmatprep.subr.mxu0 0.0
    %349 = vmatpush1.xpose.msra.mxu0 0.0
    %350 = vmatprep.subr.mxu0 0.0
    %351 = vmatpush1.xpose.msra.mxu0 0.0
    %352 = vmatprep.subr.mxu0 0.0
    %353 = vmatpush1.xpose.msra.mxu0 0.0
    %354 = vmatprep.subr.mxu0 0.0
    %355 = vmatpush1.xpose.msra.mxu0 0.0
    %356 = vmatprep.subr.mxu0 0.0
    %357 = vmatpush1.xpose.msra.mxu0 0.0
    %358 = vmatprep.subr.mxu0 0.0
    %359 = vmatpush1.xpose.msra.mxu0 0.0
    %360 = vmatprep.subr.mxu0 0.0
    %361 = vmatpush1.xpose.msra.mxu0 0.0
    %362 = vmatprep.subr.mxu0 0.0
    %363 = vmatpush1.xpose.msra.mxu0 0.0
    %364 = vmatprep.subr.mxu0 0.0
    %365 = vmatpush1.xpose.msra.mxu0 0.0
    %366 = vmatprep.subr.mxu0 0.0
    %367 = vmatpush1.xpose.msra.mxu0 0.0
    %368 = vmatprep.subr.mxu0 0.0
    %369 = vmatpush1.xpose.msra.mxu0 0.0
    %370 = vmatprep.subr.mxu0 0.0
    %371 = vmatpush1.xpose.msra.mxu0 0.0
    %372 = vmatprep.subr.mxu0 0.0
    %373 = vmatpush1.xpose.msra.mxu0 0.0
    %374 = vmatprep.mubr.f32.mxu0 0.0
    %v375 = vand.u32 %v106, 4294901760
    %376 = vmatmul.mubr.f32.gmra.mrb[0].mxu0 %v375
    %v377 = vpop.f32.mrb[0].mxu0
    %v378 = vadd.f32 %v217, %v377
    %v379 = vpop.f32.mrb[0].mxu0
    %380 = vmatprep.mubr.f32.mxu0 0.0
    %v381 = vand.u32 %v109, 4294901760
    %382 = vmatmul.mubr.f32.gmra.mrb[0].mxu0 %v381
    %v383 = vpop.f32.mrb[0].mxu0
    %v384 = vadd.f32 %v227, %v383
    %v385 = vpop.f32.mrb[0].mxu0
    %386 = vmatprep.mubr.f32.mxu0 0.0
    %v387 = vand.u32 %v112, 4294901760
    %388 = vmatmul.mubr.f32.gmra.mrb[0].mxu0 %v387
    %v389 = vpop.f32.mrb[0].mxu0
    %v390 = vadd.f32 %v237, %v389
    %v391 = vpop.f32.mrb[0].mxu0
    %392 = vmatprep.mubr.f32.mxu0 0.0
    %v393 = vand.u32 %v115, 4294901760
    %394 = vmatmul.mubr.f32.gmra.mrb[0].mxu0 %v393
    %v395 = vpop.f32.mrb[0].mxu0
    %v396 = vadd.f32 %v247, %v395
    %v397 = vpop.f32.mrb[0].mxu0
    %398 = vmatprep.mubr.f32.mxu0 0.0
    %v399 = vand.u32 %v118, 4294901760
    %400 = vmatmul.mubr.f32.gmra.mrb[0].mxu0 %v399
    %v401 = vpop.f32.mrb[0].mxu0
    %v402 = vadd.f32 %v257, %v401
    %v403 = vpop.f32.mrb[0].mxu0
    %404 = vmatprep.mubr.f32.mxu0 0.0
    %v405 = vand.u32 %v121, 4294901760
    %406 = vmatmul.mubr.f32.gmra.mrb[0].mxu0 %v405
    %v407 = vpop.f32.mrb[0].mxu0
    %v408 = vadd.f32 %v267, %v407
    %v409 = vpop.f32.mrb[0].mxu0
    %410 = vmatprep.mubr.f32.mxu0 0.0
    %v411 = vand.u32 %v124, 4294901760
    %412 = vmatmul.mubr.f32.gmra.mrb[0].mxu0 %v411
    %v413 = vpop.f32.mrb[0].mxu0
    %v414 = vadd.f32 %v277, %v413
    %v415 = vpop.f32.mrb[0].mxu0
    %416 = vmatprep.mubr.f32.mxu0 0.0
    %v417 = vand.u32 %v127, 4294901760
    %418 = vmatmul.mubr.f32.gmra.mrb[0].mxu0 %v417
    %v419 = vpop.f32.mrb[0].mxu0
    %v420 = vadd.f32 %v287, %v419
    %v421 = vpop.f32.mrb[0].mxu0
    %422 = vdwg.mxu0
    %423 = vmatprep.subr.mxu0 0.0
    %v424 = vand.u32 %v130, 4294901760
    %v425 = vsub.f32 %v130, %v424
    %426 = vmatpush1.xpose.msra.mxu0 %v425
    %427 = vmatprep.subr.mxu0 0.0
    %v428 = vand.u32 %v133, 4294901760
    %v429 = vsub.f32 %v133, %v428
    %430 = vmatpush1.xpose.msra.mxu0 %v429
    %431 = vmatprep.subr.mxu0 0.0
    %v432 = vand.u32 %v136, 4294901760
    %v433 = vsub.f32 %v136, %v432
    %434 = vmatpush1.xpose.msra.mxu0 %v433
    %435 = vmatprep.subr.mxu0 0.0
    %v436 = vand.u32 %v139, 4294901760
    %v437 = vsub.f32 %v139, %v436
    %438 = vmatpush1.xpose.msra.mxu0 %v437
    %439 = vmatprep.subr.mxu0 0.0
    %440 = vmatpush1.xpose.msra.mxu0 0.0
    %441 = vmatprep.subr.mxu0 0.0
    %442 = vmatpush1.xpose.msra.mxu0 0.0
    %443 = vmatprep.subr.mxu0 0.0
    %444 = vmatpush1.xpose.msra.mxu0 0.0
    %445 = vmatprep.subr.mxu0 0.0
    %446 = vmatpush1.xpose.msra.mxu0 0.0
    %447 = vmatprep.subr.mxu0 0.0
    %448 = vmatpush1.xpose.msra.mxu0 0.0
    %449 = vmatprep.subr.mxu0 0.0
    %450 = vmatpush1.xpose.msra.mxu0 0.0
    %451 = vmatprep.subr.mxu0 0.0
    %452 = vmatpush1.xpose.msra.mxu0 0.0
    %453 = vmatprep.subr.mxu0 0.0
    %454 = vmatpush1.xpose.msra.mxu0 0.0
    %455 = vmatprep.subr.mxu0 0.0
    %456 = vmatpush1.xpose.msra.mxu0 0.0
    %457 = vmatprep.subr.mxu0 0.0
    %458 = vmatpush1.xpose.msra.mxu0 0.0
    %459 = vmatprep.subr.mxu0 0.0
    %460 = vmatpush1.xpose.msra.mxu0 0.0
    %461 = vmatprep.subr.mxu0 0.0
    %462 = vmatpush1.xpose.msra.mxu0 0.0
    %463 = vmatprep.subr.mxu0 0.0
    %464 = vmatpush1.xpose.msra.mxu0 0.0
    %465 = vmatprep.subr.mxu0 0.0
    %466 = vmatpush1.xpose.msra.mxu0 0.0
    %467 = vmatprep.subr.mxu0 0.0
    %468 = vmatpush1.xpose.msra.mxu0 0.0
    %469 = vmatprep.subr.mxu0 0.0
    %470 = vmatpush1.xpose.msra.mxu0 0.0
    %471 = vmatprep.subr.mxu0 0.0
    %472 = vmatpush1.xpose.msra.mxu0 0.0
    %473 = vmatprep.subr.mxu0 0.0
    %474 = vmatpush1.xpose.msra.mxu0 0.0
    %475 = vmatprep.subr.mxu0 0.0
    %476 = vmatpush1.xpose.msra.mxu0 0.0
    %477 = vmatprep.subr.mxu0 0.0
    %478 = vmatpush1.xpose.msra.mxu0 0.0
    %479 = vmatprep.subr.mxu0 0.0
    %480 = vmatpush1.xpose.msra.mxu0 0.0
    %481 = vmatprep.subr.mxu0 0.0
    %482 = vmatpush1.xpose.msra.mxu0 0.0
    %483 = vmatprep.subr.mxu0 0.0
    %484 = vmatpush1.xpose.msra.mxu0 0.0
    %485 = vmatprep.subr.mxu0 0.0
    %486 = vmatpush1.xpose.msra.mxu0 0.0
    %487 = vmatprep.subr.mxu0 0.0
    %488 = vmatpush1.xpose.msra.mxu0 0.0
    %489 = vmatprep.subr.mxu0 0.0
    %490 = vmatpush1.xpose.msra.mxu0 0.0
    %491 = vmatprep.subr.mxu0 0.0
    %492 = vmatpush1.xpose.msra.mxu0 0.0
    %493 = vmatprep.subr.mxu0 0.0
    %494 = vmatpush1.xpose.msra.mxu0 0.0
    %495 = vmatprep.mubr.f32.mxu0 0.0
    %v496 = vand.u32 %v106, 4294901760
    %v497 = vsub.f32 %v106, %v496
    %498 = vmatmul.mubr.f32.gmra.mrb[0].mxu0 %v497
    %v499 = vpop.f32.mrb[0].mxu0
    %v500 = vadd.f32 %v378, %v499
    %v501 = vpop.f32.mrb[0].mxu0
    %502 = vmatprep.mubr.f32.mxu0 0.0
    %v503 = vand.u32 %v109, 4294901760
    %v504 = vsub.f32 %v109, %v503
    %505 = vmatmul.mubr.f32.gmra.mrb[0].mxu0 %v504
    %v506 = vpop.f32.mrb[0].mxu0
    %v507 = vadd.f32 %v384, %v506
    %v508 = vpop.f32.mrb[0].mxu0
    %509 = vmatprep.mubr.f32.mxu0 0.0
    %v510 = vand.u32 %v112, 4294901760
    %v511 = vsub.f32 %v112, %v510
    %512 = vmatmul.mubr.f32.gmra.mrb[0].mxu0 %v511
    %v513 = vpop.f32.mrb[0].mxu0
    %v514 = vadd.f32 %v390, %v513
    %v515 = vpop.f32.mrb[0].mxu0
    %516 = vmatprep.mubr.f32.mxu0 0.0
    %v517 = vand.u32 %v115, 4294901760
    %v518 = vsub.f32 %v115, %v517
    %519 = vmatmul.mubr.f32.gmra.mrb[0].mxu0 %v518
    %v520 = vpop.f32.mrb[0].mxu0
    %v521 = vadd.f32 %v396, %v520
    %v522 = vpop.f32.mrb[0].mxu0
    %523 = vmatprep.mubr.f32.mxu0 0.0
    %v524 = vand.u32 %v118, 4294901760
    %v525 = vsub.f32 %v118, %v524
    %526 = vmatmul.mubr.f32.gmra.mrb[0].mxu0 %v525
    %v527 = vpop.f32.mrb[0].mxu0
    %v528 = vadd.f32 %v402, %v527
    %v529 = vpop.f32.mrb[0].mxu0
    %530 = vmatprep.mubr.f32.mxu0 0.0
    %v531 = vand.u32 %v121, 4294901760
    %v532 = vsub.f32 %v121, %v531
    %533 = vmatmul.mubr.f32.gmra.mrb[0].mxu0 %v532
    %v534 = vpop.f32.mrb[0].mxu0
    %v535 = vadd.f32 %v408, %v534
    %v536 = vpop.f32.mrb[0].mxu0
    %537 = vmatprep.mubr.f32.mxu0 0.0
    %v538 = vand.u32 %v124, 4294901760
    %v539 = vsub.f32 %v124, %v538
    %540 = vmatmul.mubr.f32.gmra.mrb[0].mxu0 %v539
    %v541 = vpop.f32.mrb[0].mxu0
    %v542 = vadd.f32 %v414, %v541
    %v543 = vpop.f32.mrb[0].mxu0
    %544 = vmatprep.mubr.f32.mxu0 0.0
    %v545 = vand.u32 %v127, 4294901760
    %v546 = vsub.f32 %v127, %v545
    %547 = vmatmul.mubr.f32.gmra.mrb[0].mxu0 %v546
    %v548 = vpop.f32.mrb[0].mxu0
    %v549 = vadd.f32 %v420, %v548
    %v550 = vpop.f32.mrb[0].mxu0
    %551 = vdwg.mxu0
    %552 = vmatprep.subr.mxu0 0.0
    %v553 = vand.u32 %v130, 4294901760
    %554 = vmatpush1.xpose.msra.mxu0 %v553
    %555 = vmatprep.subr.mxu0 0.0
    %v556 = vand.u32 %v133, 4294901760
    %557 = vmatpush1.xpose.msra.mxu0 %v556
    %558 = vmatprep.subr.mxu0 0.0
    %v559 = vand.u32 %v136, 4294901760
    %560 = vmatpush1.xpose.msra.mxu0 %v559
    %561 = vmatprep.subr.mxu0 0.0
    %v562 = vand.u32 %v139, 4294901760
    %563 = vmatpush1.xpose.msra.mxu0 %v562
    %564 = vmatprep.subr.mxu0 0.0
    %565 = vmatpush1.xpose.msra.mxu0 0.0
    %566 = vmatprep.subr.mxu0 0.0
    %567 = vmatpush1.xpose.msra.mxu0 0.0
    %568 = vmatprep.subr.mxu0 0.0
    %569 = vmatpush1.xpose.msra.mxu0 0.0
    %570 = vmatprep.subr.mxu0 0.0
    %571 = vmatpush1.xpose.msra.mxu0 0.0
    %572 = vmatprep.subr.mxu0 0.0
    %573 = vmatpush1.xpose.msra.mxu0 0.0
    %574 = vmatprep.subr.mxu0 0.0
    %575 = vmatpush1.xpose.msra.mxu0 0.0
    %576 = vmatprep.subr.mxu0 0.0
    %577 = vmatpush1.xpose.msra.mxu0 0.0
    %578 = vmatprep.subr.mxu0 0.0
    %579 = vmatpush1.xpose.msra.mxu0 0.0
    %580 = vmatprep.subr.mxu0 0.0
    %581 = vmatpush1.xpose.msra.mxu0 0.0
    %582 = vmatprep.subr.mxu0 0.0
    %583 = vmatpush1.xpose.msra.mxu0 0.0
    %584 = vmatprep.subr.mxu0 0.0
    %585 = vmatpush1.xpose.msra.mxu0 0.0
    %586 = vmatprep.subr.mxu0 0.0
    %587 = vmatpush1.xpose.msra.mxu0 0.0
    %588 = vmatprep.subr.mxu0 0.0
    %589 = vmatpush1.xpose.msra.mxu0 0.0
    %590 = vmatprep.subr.mxu0 0.0
    %591 = vmatpush1.xpose.msra.mxu0 0.0
    %592 = vmatprep.subr.mxu0 0.0
    %593 = vmatpush1.xpose.msra.mxu0 0.0
    %594 = vmatprep.subr.mxu0 0.0
    %595 = vmatpush1.xpose.msra.mxu0 0.0
    %596 = vmatprep.subr.mxu0 0.0
    %597 = vmatpush1.xpose.msra.mxu0 0.0
    %598 = vmatprep.subr.mxu0 0.0
    %599 = vmatpush1.xpose.msra.mxu0 0.0
    %600 = vmatprep.subr.mxu0 0.0
    %601 = vmatpush1.xpose.msra.mxu0 0.0
    %602 = vmatprep.subr.mxu0 0.0
    %603 = vmatpush1.xpose.msra.mxu0 0.0
    %604 = vmatprep.subr.mxu0 0.0
    %605 = vmatpush1.xpose.msra.mxu0 0.0
    %606 = vmatprep.subr.mxu0 0.0
    %607 = vmatpush1.xpose.msra.mxu0 0.0
    %608 = vmatprep.subr.mxu0 0.0
    %609 = vmatpush1.xpose.msra.mxu0 0.0
    %610 = vmatprep.subr.mxu0 0.0
    %611 = vmatpush1.xpose.msra.mxu0 0.0
    %612 = vmatprep.subr.mxu0 0.0
    %613 = vmatpush1.xpose.msra.mxu0 0.0
    %614 = vmatprep.subr.mxu0 0.0
    %615 = vmatpush1.xpose.msra.mxu0 0.0
    %616 = vmatprep.subr.mxu0 0.0
    %617 = vmatpush1.xpose.msra.mxu0 0.0
    %618 = vmatprep.subr.mxu0 0.0
    %619 = vmatpush1.xpose.msra.mxu0 0.0
    %620 = vmatprep.mubr.f32.mxu0 0.0
    %v621 = vand.u32 %v106, 4294901760
    %v622 = vsub.f32 %v106, %v621
    %v623 = vand.u32 %v622, 4294901760
    %624 = vmatmul.mubr.f32.gmra.mrb[0].mxu0 %v623
    %v625 = vpop.f32.mrb[0].mxu0
    %v626 = vadd.f32 %v500, %v625
    %v627 = vpop.f32.mrb[0].mxu0
    %628 = vmatprep.mubr.f32.mxu0 0.0
    %v629 = vand.u32 %v109, 4294901760
    %v630 = vsub.f32 %v109, %v629
    %v631 = vand.u32 %v630, 4294901760
    %632 = vmatmul.mubr.f32.gmra.mrb[0].mxu0 %v631
    %v633 = vpop.f32.mrb[0].mxu0
    %v634 = vadd.f32 %v507, %v633
    %v635 = vpop.f32.mrb[0].mxu0
    %636 = vmatprep.mubr.f32.mxu0 0.0
    %v637 = vand.u32 %v112, 4294901760
    %v638 = vsub.f32 %v112, %v637
    %v639 = vand.u32 %v638, 4294901760
    %640 = vmatmul.mubr.f32.gmra.mrb[0].mxu0 %v639
    %v641 = vpop.f32.mrb[0].mxu0
    %v642 = vadd.f32 %v514, %v641
    %v643 = vpop.f32.mrb[0].mxu0
    %644 = vmatprep.mubr.f32.mxu0 0.0
    %v645 = vand.u32 %v115, 4294901760
    %v646 = vsub.f32 %v115, %v645
    %v647 = vand.u32 %v646, 4294901760
    %648 = vmatmul.mubr.f32.gmra.mrb[0].mxu0 %v647
    %v649 = vpop.f32.mrb[0].mxu0
    %v650 = vadd.f32 %v521, %v649
    %v651 = vpop.f32.mrb[0].mxu0
    %652 = vmatprep.mubr.f32.mxu0 0.0
    %v653 = vand.u32 %v118, 4294901760
    %v654 = vsub.f32 %v118, %v653
    %v655 = vand.u32 %v654, 4294901760
    %656 = vmatmul.mubr.f32.gmra.mrb[0].mxu0 %v655
    %v657 = vpop.f32.mrb[0].mxu0
    %v658 = vadd.f32 %v528, %v657
    %v659 = vpop.f32.mrb[0].mxu0
    %660 = vmatprep.mubr.f32.mxu0 0.0
    %v661 = vand.u32 %v121, 4294901760
    %v662 = vsub.f32 %v121, %v661
    %v663 = vand.u32 %v662, 4294901760
    %664 = vmatmul.mubr.f32.gmra.mrb[0].mxu0 %v663
    %v665 = vpop.f32.mrb[0].mxu0
    %v666 = vadd.f32 %v535, %v665
    %v667 = vpop.f32.mrb[0].mxu0
    %668 = vmatprep.mubr.f32.mxu0 0.0
    %v669 = vand.u32 %v124, 4294901760
    %v670 = vsub.f32 %v124, %v669
    %v671 = vand.u32 %v670, 4294901760
    %672 = vmatmul.mubr.f32.gmra.mrb[0].mxu0 %v671
    %v673 = vpop.f32.mrb[0].mxu0
    %v674 = vadd.f32 %v542, %v673
    %v675 = vpop.f32.mrb[0].mxu0
    %676 = vmatprep.mubr.f32.mxu0 0.0
    %v677 = vand.u32 %v127, 4294901760
    %v678 = vsub.f32 %v127, %v677
    %v679 = vand.u32 %v678, 4294901760
    %680 = vmatmul.mubr.f32.gmra.mrb[0].mxu0 %v679
    %v681 = vpop.f32.mrb[0].mxu0
    %v682 = vadd.f32 %v549, %v681
    %v683 = vpop.f32.mrb[0].mxu0
    %684 = vdwg.mxu0
    %685 = vmatprep.subr.mxu0 0.0
    %v686 = vand.u32 %v130, 4294901760
    %v687 = vsub.f32 %v130, %v686
    %v688 = vand.u32 %v687, 4294901760
    %689 = vmatpush1.xpose.msra.mxu0 %v688
    %690 = vmatprep.subr.mxu0 0.0
    %v691 = vand.u32 %v133, 4294901760
    %v692 = vsub.f32 %v133, %v691
    %v693 = vand.u32 %v692, 4294901760
    %694 = vmatpush1.xpose.msra.mxu0 %v693
    %695 = vmatprep.subr.mxu0 0.0
    %v696 = vand.u32 %v136, 4294901760
    %v697 = vsub.f32 %v136, %v696
    %v698 = vand.u32 %v697, 4294901760
    %699 = vmatpush1.xpose.msra.mxu0 %v698
    %700 = vmatprep.subr.mxu0 0.0
    %v701 = vand.u32 %v139, 4294901760
    %v702 = vsub.f32 %v139, %v701
    %v703 = vand.u32 %v702, 4294901760
    %704 = vmatpush1.xpose.msra.mxu0 %v703
    %705 = vmatprep.subr.mxu0 0.0
    %706 = vmatpush1.xpose.msra.mxu0 0.0
    %707 = vmatprep.subr.mxu0 0.0
    %708 = vmatpush1.xpose.msra.mxu0 0.0
    %709 = vmatprep.subr.mxu0 0.0
    %710 = vmatpush1.xpose.msra.mxu0 0.0
    %711 = vmatprep.subr.mxu0 0.0
    %712 = vmatpush1.xpose.msra.mxu0 0.0
    %713 = vmatprep.subr.mxu0 0.0
    %714 = vmatpush1.xpose.msra.mxu0 0.0
    %715 = vmatprep.subr.mxu0 0.0
    %716 = vmatpush1.xpose.msra.mxu0 0.0
    %717 = vmatprep.subr.mxu0 0.0
    %718 = vmatpush1.xpose.msra.mxu0 0.0
    %719 = vmatprep.subr.mxu0 0.0
    %720 = vmatpush1.xpose.msra.mxu0 0.0
    %721 = vmatprep.subr.mxu0 0.0
    %722 = vmatpush1.xpose.msra.mxu0 0.0
    %723 = vmatprep.subr.mxu0 0.0
    %724 = vmatpush1.xpose.msra.mxu0 0.0
    %725 = vmatprep.subr.mxu0 0.0
    %726 = vmatpush1.xpose.msra.mxu0 0.0
    %727 = vmatprep.subr.mxu0 0.0
    %728 = vmatpush1.xpose.msra.mxu0 0.0
    %729 = vmatprep.subr.mxu0 0.0
    %730 = vmatpush1.xpose.msra.mxu0 0.0
    %731 = vmatprep.subr.mxu0 0.0
    %732 = vmatpush1.xpose.msra.mxu0 0.0
    %733 = vmatprep.subr.mxu0 0.0
    %734 = vmatpush1.xpose.msra.mxu0 0.0
    %735 = vmatprep.subr.mxu0 0.0
    %736 = vmatpush1.xpose.msra.mxu0 0.0
    %737 = vmatprep.subr.mxu0 0.0
    %738 = vmatpush1.xpose.msra.mxu0 0.0
    %739 = vmatprep.subr.mxu0 0.0
    %740 = vmatpush1.xpose.msra.mxu0 0.0
    %741 = vmatprep.subr.mxu0 0.0
    %742 = vmatpush1.xpose.msra.mxu0 0.0
    %743 = vmatprep.subr.mxu0 0.0
    %744 = vmatpush1.xpose.msra.mxu0 0.0
    %745 = vmatprep.subr.mxu0 0.0
    %746 = vmatpush1.xpose.msra.mxu0 0.0
    %747 = vmatprep.subr.mxu0 0.0
    %748 = vmatpush1.xpose.msra.mxu0 0.0
    %749 = vmatprep.subr.mxu0 0.0
    %750 = vmatpush1.xpose.msra.mxu0 0.0
    %751 = vmatprep.subr.mxu0 0.0
    %752 = vmatpush1.xpose.msra.mxu0 0.0
    %753 = vmatprep.subr.mxu0 0.0
    %754 = vmatpush1.xpose.msra.mxu0 0.0
    %755 = vmatprep.subr.mxu0 0.0
    %756 = vmatpush1.xpose.msra.mxu0 0.0
    %757 = vmatprep.subr.mxu0 0.0
    %758 = vmatpush1.xpose.msra.mxu0 0.0
    %759 = vmatprep.subr.mxu0 0.0
    %760 = vmatpush1.xpose.msra.mxu0 0.0
    %761 = vmatprep.mubr.f32.mxu0 0.0
    %v762 = vand.u32 %v106, 4294901760
    %763 = vmatmul.mubr.f32.gmra.mrb[0].mxu0 %v762
    %v764 = vpop.f32.mrb[0].mxu0
    %v765 = vadd.f32 %v626, %v764
    %v766 = vpop.f32.mrb[0].mxu0
    %767 = vmatprep.mubr.f32.mxu0 0.0
    %v768 = vand.u32 %v109, 4294901760
    %769 = vmatmul.mubr.f32.gmra.mrb[0].mxu0 %v768
    %v770 = vpop.f32.mrb[0].mxu0
    %v771 = vadd.f32 %v634, %v770
    %v772 = vpop.f32.mrb[0].mxu0
    %773 = vmatprep.mubr.f32.mxu0 0.0
    %v774 = vand.u32 %v112, 4294901760
    %775 = vmatmul.mubr.f32.gmra.mrb[0].mxu0 %v774
    %v776 = vpop.f32.mrb[0].mxu0
    %v777 = vadd.f32 %v642, %v776
    %v778 = vpop.f32.mrb[0].mxu0
    %779 = vmatprep.mubr.f32.mxu0 0.0
    %v780 = vand.u32 %v115, 4294901760
    %781 = vmatmul.mubr.f32.gmra.mrb[0].mxu0 %v780
    %v782 = vpop.f32.mrb[0].mxu0
    %v783 = vadd.f32 %v650, %v782
    %v784 = vpop.f32.mrb[0].mxu0
    %785 = vmatprep.mubr.f32.mxu0 0.0
    %v786 = vand.u32 %v118, 4294901760
    %787 = vmatmul.mubr.f32.gmra.mrb[0].mxu0 %v786
    %v788 = vpop.f32.mrb[0].mxu0
    %v789 = vadd.f32 %v658, %v788
    %v790 = vpop.f32.mrb[0].mxu0
    %791 = vmatprep.mubr.f32.mxu0 0.0
    %v792 = vand.u32 %v121, 4294901760
    %793 = vmatmul.mubr.f32.gmra.mrb[0].mxu0 %v792
    %v794 = vpop.f32.mrb[0].mxu0
    %v795 = vadd.f32 %v666, %v794
    %v796 = vpop.f32.mrb[0].mxu0
    %797 = vmatprep.mubr.f32.mxu0 0.0
    %v798 = vand.u32 %v124, 4294901760
    %799 = vmatmul.mubr.f32.gmra.mrb[0].mxu0 %v798
    %v800 = vpop.f32.mrb[0].mxu0
    %v801 = vadd.f32 %v674, %v800
    %v802 = vpop.f32.mrb[0].mxu0
    %803 = vmatprep.mubr.f32.mxu0 0.0
    %v804 = vand.u32 %v127, 4294901760
    %805 = vmatmul.mubr.f32.gmra.mrb[0].mxu0 %v804
    %v806 = vpop.f32.mrb[0].mxu0
    %v807 = vadd.f32 %v682, %v806
    %v808 = vpop.f32.mrb[0].mxu0
    %809 = vdwg.mxu0
    %810 = vmatprep.subr.mxu0 0.0
    %v811 = vand.u32 %v130, 4294901760
    %812 = vmatpush1.xpose.msra.mxu0 %v811
    %813 = vmatprep.subr.mxu0 0.0
    %v814 = vand.u32 %v133, 4294901760
    %815 = vmatpush1.xpose.msra.mxu0 %v814
    %816 = vmatprep.subr.mxu0 0.0
    %v817 = vand.u32 %v136, 4294901760
    %818 = vmatpush1.xpose.msra.mxu0 %v817
    %819 = vmatprep.subr.mxu0 0.0
    %v820 = vand.u32 %v139, 4294901760
    %821 = vmatpush1.xpose.msra.mxu0 %v820
    %822 = vmatprep.subr.mxu0 0.0
    %823 = vmatpush1.xpose.msra.mxu0 0.0
    %824 = vmatprep.subr.mxu0 0.0
    %825 = vmatpush1.xpose.msra.mxu0 0.0
    %826 = vmatprep.subr.mxu0 0.0
    %827 = vmatpush1.xpose.msra.mxu0 0.0
    %828 = vmatprep.subr.mxu0 0.0
    %829 = vmatpush1.xpose.msra.mxu0 0.0
    %830 = vmatprep.subr.mxu0 0.0
    %831 = vmatpush1.xpose.msra.mxu0 0.0
    %832 = vmatprep.subr.mxu0 0.0
    %833 = vmatpush1.xpose.msra.mxu0 0.0
    %834 = vmatprep.subr.mxu0 0.0
    %835 = vmatpush1.xpose.msra.mxu0 0.0
    %836 = vmatprep.subr.mxu0 0.0
    %837 = vmatpush1.xpose.msra.mxu0 0.0
    %838 = vmatprep.subr.mxu0 0.0
    %839 = vmatpush1.xpose.msra.mxu0 0.0
    %840 = vmatprep.subr.mxu0 0.0
    %841 = vmatpush1.xpose.msra.mxu0 0.0
    %842 = vmatprep.subr.mxu0 0.0
    %843 = vmatpush1.xpose.msra.mxu0 0.0
    %844 = vmatprep.subr.mxu0 0.0
    %845 = vmatpush1.xpose.msra.mxu0 0.0
    %846 = vmatprep.subr.mxu0 0.0
    %847 = vmatpush1.xpose.msra.mxu0 0.0
    %848 = vmatprep.subr.mxu0 0.0
    %849 = vmatpush1.xpose.msra.mxu0 0.0
    %850 = vmatprep.subr.mxu0 0.0
    %851 = vmatpush1.xpose.msra.mxu0 0.0
    %852 = vmatprep.subr.mxu0 0.0
    %853 = vmatpush1.xpose.msra.mxu0 0.0
    %854 = vmatprep.subr.mxu0 0.0
    %855 = vmatpush1.xpose.msra.mxu0 0.0
    %856 = vmatprep.subr.mxu0 0.0
    %857 = vmatpush1.xpose.msra.mxu0 0.0
    %858 = vmatprep.subr.mxu0 0.0
    %859 = vmatpush1.xpose.msra.mxu0 0.0
    %860 = vmatprep.subr.mxu0 0.0
    %861 = vmatpush1.xpose.msra.mxu0 0.0
    %862 = vmatprep.subr.mxu0 0.0
    %863 = vmatpush1.xpose.msra.mxu0 0.0
    %864 = vmatprep.subr.mxu0 0.0
    %865 = vmatpush1.xpose.msra.mxu0 0.0
    %866 = vmatprep.subr.mxu0 0.0
    %867 = vmatpush1.xpose.msra.mxu0 0.0
    %868 = vmatprep.subr.mxu0 0.0
    %869 = vmatpush1.xpose.msra.mxu0 0.0
    %870 = vmatprep.subr.mxu0 0.0
    %871 = vmatpush1.xpose.msra.mxu0 0.0
    %872 = vmatprep.subr.mxu0 0.0
    %873 = vmatpush1.xpose.msra.mxu0 0.0
    %874 = vmatprep.subr.mxu0 0.0
    %875 = vmatpush1.xpose.msra.mxu0 0.0
    %876 = vmatprep.subr.mxu0 0.0
    %877 = vmatpush1.xpose.msra.mxu0 0.0
    %878 = vmatprep.mubr.f32.mxu0 0.0
    %v879 = vand.u32 %v106, 4294901760
    %880 = vmatmul.mubr.f32.gmra.mrb[0].mxu0 %v879
    %v881 = vpop.f32.mrb[0].mxu0
    %v882 = vadd.f32 %v765, %v881
    %v883 = vpop.f32.mrb[0].mxu0
    %884 = vmatprep.mubr.f32.mxu0 0.0
    %v885 = vand.u32 %v109, 4294901760
    %886 = vmatmul.mubr.f32.gmra.mrb[0].mxu0 %v885
    %v887 = vpop.f32.mrb[0].mxu0
    %v888 = vadd.f32 %v771, %v887
    %v889 = vpop.f32.mrb[0].mxu0
    %890 = vmatprep.mubr.f32.mxu0 0.0
    %v891 = vand.u32 %v112, 4294901760
    %892 = vmatmul.mubr.f32.gmra.mrb[0].mxu0 %v891
    %v893 = vpop.f32.mrb[0].mxu0
    %v894 = vadd.f32 %v777, %v893
    %v895 = vpop.f32.mrb[0].mxu0
    %896 = vmatprep.mubr.f32.mxu0 0.0
    %v897 = vand.u32 %v115, 4294901760
    %898 = vmatmul.mubr.f32.gmra.mrb[0].mxu0 %v897
    %v899 = vpop.f32.mrb[0].mxu0
    %v900 = vadd.f32 %v783, %v899
    %v901 = vpop.f32.mrb[0].mxu0
    %902 = vmatprep.mubr.f32.mxu0 0.0
    %v903 = vand.u32 %v118, 4294901760
    %904 = vmatmul.mubr.f32.gmra.mrb[0].mxu0 %v903
    %v905 = vpop.f32.mrb[0].mxu0
    %v906 = vadd.f32 %v789, %v905
    %v907 = vpop.f32.mrb[0].mxu0
    %908 = vmatprep.mubr.f32.mxu0 0.0
    %v909 = vand.u32 %v121, 4294901760
    %910 = vmatmul.mubr.f32.gmra.mrb[0].mxu0 %v909
    %v911 = vpop.f32.mrb[0].mxu0
    %v912 = vadd.f32 %v795, %v911
    %v913 = vpop.f32.mrb[0].mxu0
    %914 = vmatprep.mubr.f32.mxu0 0.0
    %v915 = vand.u32 %v124, 4294901760
    %916 = vmatmul.mubr.f32.gmra.mrb[0].mxu0 %v915
    %v917 = vpop.f32.mrb[0].mxu0
    %v918 = vadd.f32 %v801, %v917
    %v919 = vpop.f32.mrb[0].mxu0
    %920 = vmatprep.mubr.f32.mxu0 0.0
    %v921 = vand.u32 %v127, 4294901760
    %922 = vmatmul.mubr.f32.gmra.mrb[0].mxu0 %v921
    %v923 = vpop.f32.mrb[0].mxu0
    %v924 = vadd.f32 %v807, %v923
    %v925 = vpop.f32.mrb[0].mxu0
    %926 = vdwg.mxu0
    %v927 = vld [vmem:[%s1] sm:$0xff]
    %v928 = vld [vmem:[%s3] sm:$0xff]
    %v929 = vld [vmem:[%s3 + $0x8] sm:$0xff]
    %v930 = vld [vmem:[%s3 + $0x10] sm:$0xff]
    %v931 = vld [vmem:[%s3 + $0x18] sm:$0xff]
    %v933 = vsel %vm104, %v927, 0
    %v936 = vsel %vm104, %v928, 0
    %v939 = vsel %vm104, %v929, 0
    %v942 = vsel %vm104, %v930, 0
    %v945 = vsel %vm104, %v931, 0
    %947 = vmatprep.subr.mxu0 0.0
    %v948 = vand.u32 %v936, 4294901760
    %949 = vmatpush1.xpose.msra.mxu0 %v948
    %950 = vmatprep.subr.mxu0 0.0
    %v951 = vand.u32 %v939, 4294901760
    %952 = vmatpush1.xpose.msra.mxu0 %v951
    %953 = vmatprep.subr.mxu0 0.0
    %v954 = vand.u32 %v942, 4294901760
    %955 = vmatpush1.xpose.msra.mxu0 %v954
    %956 = vmatprep.subr.mxu0 0.0
    %v957 = vand.u32 %v945, 4294901760
    %958 = vmatpush1.xpose.msra.mxu0 %v957
    %959 = vmatprep.subr.mxu0 0.0
    %960 = vmatpush1.xpose.msra.mxu0 0.0
    %961 = vmatprep.subr.mxu0 0.0
    %962 = vmatpush1.xpose.msra.mxu0 0.0
    %963 = vmatprep.subr.mxu0 0.0
    %964 = vmatpush1.xpose.msra.mxu0 0.0
    %965 = vmatprep.subr.mxu0 0.0
    %966 = vmatpush1.xpose.msra.mxu0 0.0
    %967 = vmatprep.subr.mxu0 0.0
    %968 = vmatpush1.xpose.msra.mxu0 0.0
    %969 = vmatprep.subr.mxu0 0.0
    %970 = vmatpush1.xpose.msra.mxu0 0.0
    %971 = vmatprep.subr.mxu0 0.0
    %972 = vmatpush1.xpose.msra.mxu0 0.0
    %973 = vmatprep.subr.mxu0 0.0
    %974 = vmatpush1.xpose.msra.mxu0 0.0
    %975 = vmatprep.subr.mxu0 0.0
    %976 = vmatpush1.xpose.msra.mxu0 0.0
    %977 = vmatprep.subr.mxu0 0.0
    %978 = vmatpush1.xpose.msra.mxu0 0.0
    %979 = vmatprep.subr.mxu0 0.0
    %980 = vmatpush1.xpose.msra.mxu0 0.0
    %981 = vmatprep.subr.mxu0 0.0
    %982 = vmatpush1.xpose.msra.mxu0 0.0
    %983 = vmatprep.subr.mxu0 0.0
    %984 = vmatpush1.xpose.msra.mxu0 0.0
    %985 = vmatprep.subr.mxu0 0.0
    %986 = vmatpush1.xpose.msra.mxu0 0.0
    %987 = vmatprep.subr.mxu0 0.0
    %988 = vmatpush1.xpose.msra.mxu0 0.0
    %989 = vmatprep.subr.mxu0 0.0
    %990 = vmatpush1.xpose.msra.mxu0 0.0
    %991 = vmatprep.subr.mxu0 0.0
    %992 = vmatpush1.xpose.msra.mxu0 0.0
    %993 = vmatprep.subr.mxu0 0.0
    %994 = vmatpush1.xpose.msra.mxu0 0.0
    %995 = vmatprep.subr.mxu0 0.0
    %996 = vmatpush1.xpose.msra.mxu0 0.0
    %997 = vmatprep.subr.mxu0 0.0
    %998 = vmatpush1.xpose.msra.mxu0 0.0
    %999 = vmatprep.subr.mxu0 0.0
    %1000 = vmatpush1.xpose.msra.mxu0 0.0
    %1001 = vmatprep.subr.mxu0 0.0
    %1002 = vmatpush1.xpose.msra.mxu0 0.0
    %1003 = vmatprep.subr.mxu0 0.0
    %1004 = vmatpush1.xpose.msra.mxu0 0.0
    %1005 = vmatprep.subr.mxu0 0.0
    %1006 = vmatpush1.xpose.msra.mxu0 0.0
    %1007 = vmatprep.subr.mxu0 0.0
    %1008 = vmatpush1.xpose.msra.mxu0 0.0
    %1009 = vmatprep.subr.mxu0 0.0
    %1010 = vmatpush1.xpose.msra.mxu0 0.0
    %1011 = vmatprep.subr.mxu0 0.0
    %1012 = vmatpush1.xpose.msra.mxu0 0.0
    %1013 = vmatprep.subr.mxu0 0.0
    %1014 = vmatpush1.xpose.msra.mxu0 0.0
    %1015 = vmatprep.mubr.f32.mxu0 0.0
    %v1016 = vand.u32 %v933, 4294901760
    %v1017 = vsub.f32 %v933, %v1016
    %v1018 = vand.u32 %v1017, 4294901760
    %v1019 = vsub.f32 %v1017, %v1018
    %v1020 = vand.u32 %v1019, 4294901760
    %1021 = vmatmul.mubr.f32.gmra.mrb[0].mxu0 %v1020
    %v1022 = vpop.f32.mrb[0].mxu0
    %v1023 = vadd.f32 0.0, %v1022
    %v1024 = vpop.f32.mrb[0].mxu0
    %1025 = vdwg.mxu0
    %1026 = vmatprep.subr.mxu0 0.0
    %v1027 = vand.u32 %v936, 4294901760
    %v1028 = vsub.f32 %v936, %v1027
    %v1029 = vand.u32 %v1028, 4294901760
    %v1030 = vsub.f32 %v1028, %v1029
    %v1031 = vand.u32 %v1030, 4294901760
    %1032 = vmatpush1.xpose.msra.mxu0 %v1031
    %1033 = vmatprep.subr.mxu0 0.0
    %v1034 = vand.u32 %v939, 4294901760
    %v1035 = vsub.f32 %v939, %v1034
    %v1036 = vand.u32 %v1035, 4294901760
    %v1037 = vsub.f32 %v1035, %v1036
    %v1038 = vand.u32 %v1037, 4294901760
    %1039 = vmatpush1.xpose.msra.mxu0 %v1038
    %1040 = vmatprep.subr.mxu0 0.0
    %v1041 = vand.u32 %v942, 4294901760
    %v1042 = vsub.f32 %v942, %v1041
    %v1043 = vand.u32 %v1042, 4294901760
    %v1044 = vsub.f32 %v1042, %v1043
    %v1045 = vand.u32 %v1044, 4294901760
    %1046 = vmatpush1.xpose.msra.mxu0 %v1045
    %1047 = vmatprep.subr.mxu0 0.0
    %v1048 = vand.u32 %v945, 4294901760
    %v1049 = vsub.f32 %v945, %v1048
    %v1050 = vand.u32 %v1049, 4294901760
    %v1051 = vsub.f32 %v1049, %v1050
    %v1052 = vand.u32 %v1051, 4294901760
    %1053 = vmatpush1.xpose.msra.mxu0 %v1052
    %1054 = vmatprep.subr.mxu0 0.0
    %1055 = vmatpush1.xpose.msra.mxu0 0.0
    %1056 = vmatprep.subr.mxu0 0.0
    %1057 = vmatpush1.xpose.msra.mxu0 0.0
    %1058 = vmatprep.subr.mxu0 0.0
    %1059 = vmatpush1.xpose.msra.mxu0 0.0
    %1060 = vmatprep.subr.mxu0 0.0
    %1061 = vmatpush1.xpose.msra.mxu0 0.0
    %1062 = vmatprep.subr.mxu0 0.0
    %1063 = vmatpush1.xpose.msra.mxu0 0.0
    %1064 = vmatprep.subr.mxu0 0.0
    %1065 = vmatpush1.xpose.msra.mxu0 0.0
    %1066 = vmatprep.subr.mxu0 0.0
    %1067 = vmatpush1.xpose.msra.mxu0 0.0
    %1068 = vmatprep.subr.mxu0 0.0
    %1069 = vmatpush1.xpose.msra.mxu0 0.0
    %1070 = vmatprep.subr.mxu0 0.0
    %1071 = vmatpush1.xpose.msra.mxu0 0.0
    %1072 = vmatprep.subr.mxu0 0.0
    %1073 = vmatpush1.xpose.msra.mxu0 0.0
    %1074 = vmatprep.subr.mxu0 0.0
    %1075 = vmatpush1.xpose.msra.mxu0 0.0
    %1076 = vmatprep.subr.mxu0 0.0
    %1077 = vmatpush1.xpose.msra.mxu0 0.0
    %1078 = vmatprep.subr.mxu0 0.0
    %1079 = vmatpush1.xpose.msra.mxu0 0.0
    %1080 = vmatprep.subr.mxu0 0.0
    %1081 = vmatpush1.xpose.msra.mxu0 0.0
    %1082 = vmatprep.subr.mxu0 0.0
    %1083 = vmatpush1.xpose.msra.mxu0 0.0
    %1084 = vmatprep.subr.mxu0 0.0
    %1085 = vmatpush1.xpose.msra.mxu0 0.0
    %1086 = vmatprep.subr.mxu0 0.0
    %1087 = vmatpush1.xpose.msra.mxu0 0.0
    %1088 = vmatprep.subr.mxu0 0.0
    %1089 = vmatpush1.xpose.msra.mxu0 0.0
    %1090 = vmatprep.subr.mxu0 0.0
    %1091 = vmatpush1.xpose.msra.mxu0 0.0
    %1092 = vmatprep.subr.mxu0 0.0
    %1093 = vmatpush1.xpose.msra.mxu0 0.0
    %1094 = vmatprep.subr.mxu0 0.0
    %1095 = vmatpush1.xpose.msra.mxu0 0.0
    %1096 = vmatprep.subr.mxu0 0.0
    %1097 = vmatpush1.xpose.msra.mxu0 0.0
    %1098 = vmatprep.subr.mxu0 0.0
    %1099 = vmatpush1.xpose.msra.mxu0 0.0
    %1100 = vmatprep.subr.mxu0 0.0
    %1101 = vmatpush1.xpose.msra.mxu0 0.0
    %1102 = vmatprep.subr.mxu0 0.0
    %1103 = vmatpush1.xpose.msra.mxu0 0.0
    %1104 = vmatprep.subr.mxu0 0.0
    %1105 = vmatpush1.xpose.msra.mxu0 0.0
    %1106 = vmatprep.subr.mxu0 0.0
    %1107 = vmatpush1.xpose.msra.mxu0 0.0
    %1108 = vmatprep.subr.mxu0 0.0
    %1109 = vmatpush1.xpose.msra.mxu0 0.0
    %1110 = vmatprep.mubr.f32.mxu0 0.0
    %v1111 = vand.u32 %v933, 4294901760
    %1112 = vmatmul.mubr.f32.gmra.mrb[0].mxu0 %v1111
    %v1113 = vpop.f32.mrb[0].mxu0
    %v1114 = vadd.f32 %v1023, %v1113
    %v1115 = vpop.f32.mrb[0].mxu0
    %1116 = vdwg.mxu0
    %1117 = vmatprep.subr.mxu0 0.0
    %v1118 = vand.u32 %v936, 4294901760
    %v1119 = vsub.f32 %v936, %v1118
    %1120 = vmatpush1.xpose.msra.mxu0 %v1119
    %1121 = vmatprep.subr.mxu0 0.0
    %v1122 = vand.u32 %v939, 4294901760
    %v1123 = vsub.f32 %v939, %v1122
    %1124 = vmatpush1.xpose.msra.mxu0 %v1123
    %1125 = vmatprep.subr.mxu0 0.0
    %v1126 = vand.u32 %v942, 4294901760
    %v1127 = vsub.f32 %v942, %v1126
    %1128 = vmatpush1.xpose.msra.mxu0 %v1127
    %1129 = vmatprep.subr.mxu0 0.0
    %v1130 = vand.u32 %v945, 4294901760
    %v1131 = vsub.f32 %v945, %v1130
    %1132 = vmatpush1.xpose.msra.mxu0 %v1131
    %1133 = vmatprep.subr.mxu0 0.0
    %1134 = vmatpush1.xpose.msra.mxu0 0.0
    %1135 = vmatprep.subr.mxu0 0.0
    %1136 = vmatpush1.xpose.msra.mxu0 0.0
    %1137 = vmatprep.subr.mxu0 0.0
    %1138 = vmatpush1.xpose.msra.mxu0 0.0
    %1139 = vmatprep.subr.mxu0 0.0
    %1140 = vmatpush1.xpose.msra.mxu0 0.0
    %1141 = vmatprep.subr.mxu0 0.0
    %1142 = vmatpush1.xpose.msra.mxu0 0.0
    %1143 = vmatprep.subr.mxu0 0.0
    %1144 = vmatpush1.xpose.msra.mxu0 0.0
    %1145 = vmatprep.subr.mxu0 0.0
    %1146 = vmatpush1.xpose.msra.mxu0 0.0
    %1147 = vmatprep.subr.mxu0 0.0
    %1148 = vmatpush1.xpose.msra.mxu0 0.0
    %1149 = vmatprep.subr.mxu0 0.0
    %1150 = vmatpush1.xpose.msra.mxu0 0.0
    %1151 = vmatprep.subr.mxu0 0.0
    %1152 = vmatpush1.xpose.msra.mxu0 0.0
    %1153 = vmatprep.subr.mxu0 0.0
    %1154 = vmatpush1.xpose.msra.mxu0 0.0
    %1155 = vmatprep.subr.mxu0 0.0
    %1156 = vmatpush1.xpose.msra.mxu0 0.0
    %1157 = vmatprep.subr.mxu0 0.0
    %1158 = vmatpush1.xpose.msra.mxu0 0.0
    %1159 = vmatprep.subr.mxu0 0.0
    %1160 = vmatpush1.xpose.msra.mxu0 0.0
    %1161 = vmatprep.subr.mxu0 0.0
    %1162 = vmatpush1.xpose.msra.mxu0 0.0
    %1163 = vmatprep.subr.mxu0 0.0
    %1164 = vmatpush1.xpose.msra.mxu0 0.0
    %1165 = vmatprep.subr.mxu0 0.0
    %1166 = vmatpush1.xpose.msra.mxu0 0.0
    %1167 = vmatprep.subr.mxu0 0.0
    %1168 = vmatpush1.xpose.msra.mxu0 0.0
    %1169 = vmatprep.subr.mxu0 0.0
    %1170 = vmatpush1.xpose.msra.mxu0 0.0
    %1171 = vmatprep.subr.mxu0 0.0
    %1172 = vmatpush1.xpose.msra.mxu0 0.0
    %1173 = vmatprep.subr.mxu0 0.0
    %1174 = vmatpush1.xpose.msra.mxu0 0.0
    %1175 = vmatprep.subr.mxu0 0.0
    %1176 = vmatpush1.xpose.msra.mxu0 0.0
    %1177 = vmatprep.subr.mxu0 0.0
    %1178 = vmatpush1.xpose.msra.mxu0 0.0
    %1179 = vmatprep.subr.mxu0 0.0
    %1180 = vmatpush1.xpose.msra.mxu0 0.0
    %1181 = vmatprep.subr.mxu0 0.0
    %1182 = vmatpush1.xpose.msra.mxu0 0.0
    %1183 = vmatprep.subr.mxu0 0.0
    %1184 = vmatpush1.xpose.msra.mxu0 0.0
    %1185 = vmatprep.subr.mxu0 0.0
    %1186 = vmatpush1.xpose.msra.mxu0 0.0
    %1187 = vmatprep.subr.mxu0 0.0
    %1188 = vmatpush1.xpose.msra.mxu0 0.0
    %1189 = vmatprep.mubr.f32.mxu0 0.0
    %v1190 = vand.u32 %v933, 4294901760
    %v1191 = vsub.f32 %v933, %v1190
    %1192 = vmatmul.mubr.f32.gmra.mrb[0].mxu0 %v1191
    %v1193 = vpop.f32.mrb[0].mxu0
    %v1194 = vadd.f32 %v1114, %v1193
    %v1195 = vpop.f32.mrb[0].mxu0
    %1196 = vdwg.mxu0
    %1197 = vmatprep.subr.mxu0 0.0
    %v1198 = vand.u32 %v936, 4294901760
    %1199 = vmatpush1.xpose.msra.mxu0 %v1198
    %1200 = vmatprep.subr.mxu0 0.0
    %v1201 = vand.u32 %v939, 4294901760
    %1202 = vmatpush1.xpose.msra.mxu0 %v1201
    %1203 = vmatprep.subr.mxu0 0.0
    %v1204 = vand.u32 %v942, 4294901760
    %1205 = vmatpush1.xpose.msra.mxu0 %v1204
    %1206 = vmatprep.subr.mxu0 0.0
    %v1207 = vand.u32 %v945, 4294901760
    %1208 = vmatpush1.xpose.msra.mxu0 %v1207
    %1209 = vmatprep.subr.mxu0 0.0
    %1210 = vmatpush1.xpose.msra.mxu0 0.0
    %1211 = vmatprep.subr.mxu0 0.0
    %1212 = vmatpush1.xpose.msra.mxu0 0.0
    %1213 = vmatprep.subr.mxu0 0.0
    %1214 = vmatpush1.xpose.msra.mxu0 0.0
    %1215 = vmatprep.subr.mxu0 0.0
    %1216 = vmatpush1.xpose.msra.mxu0 0.0
    %1217 = vmatprep.subr.mxu0 0.0
    %1218 = vmatpush1.xpose.msra.mxu0 0.0
    %1219 = vmatprep.subr.mxu0 0.0
    %1220 = vmatpush1.xpose.msra.mxu0 0.0
    %1221 = vmatprep.subr.mxu0 0.0
    %1222 = vmatpush1.xpose.msra.mxu0 0.0
    %1223 = vmatprep.subr.mxu0 0.0
    %1224 = vmatpush1.xpose.msra.mxu0 0.0
    %1225 = vmatprep.subr.mxu0 0.0
    %1226 = vmatpush1.xpose.msra.mxu0 0.0
    %1227 = vmatprep.subr.mxu0 0.0
    %1228 = vmatpush1.xpose.msra.mxu0 0.0
    %1229 = vmatprep.subr.mxu0 0.0
    %1230 = vmatpush1.xpose.msra.mxu0 0.0
    %1231 = vmatprep.subr.mxu0 0.0
    %1232 = vmatpush1.xpose.msra.mxu0 0.0
    %1233 = vmatprep.subr.mxu0 0.0
    %1234 = vmatpush1.xpose.msra.mxu0 0.0
    %1235 = vmatprep.subr.mxu0 0.0
    %1236 = vmatpush1.xpose.msra.mxu0 0.0
    %1237 = vmatprep.subr.mxu0 0.0
    %1238 = vmatpush1.xpose.msra.mxu0 0.0
    %1239 = vmatprep.subr.mxu0 0.0
    %1240 = vmatpush1.xpose.msra.mxu0 0.0
    %1241 = vmatprep.subr.mxu0 0.0
    %1242 = vmatpush1.xpose.msra.mxu0 0.0
    %1243 = vmatprep.subr.mxu0 0.0
    %1244 = vmatpush1.xpose.msra.mxu0 0.0
    %1245 = vmatprep.subr.mxu0 0.0
    %1246 = vmatpush1.xpose.msra.mxu0 0.0
    %1247 = vmatprep.subr.mxu0 0.0
    %1248 = vmatpush1.xpose.msra.mxu0 0.0
    %1249 = vmatprep.subr.mxu0 0.0
    %1250 = vmatpush1.xpose.msra.mxu0 0.0
    %1251 = vmatprep.subr.mxu0 0.0
    %1252 = vmatpush1.xpose.msra.mxu0 0.0
    %1253 = vmatprep.subr.mxu0 0.0
    %1254 = vmatpush1.xpose.msra.mxu0 0.0
    %1255 = vmatprep.subr.mxu0 0.0
    %1256 = vmatpush1.xpose.msra.mxu0 0.0
    %1257 = vmatprep.subr.mxu0 0.0
    %1258 = vmatpush1.xpose.msra.mxu0 0.0
    %1259 = vmatprep.subr.mxu0 0.0
    %1260 = vmatpush1.xpose.msra.mxu0 0.0
    %1261 = vmatprep.subr.mxu0 0.0
    %1262 = vmatpush1.xpose.msra.mxu0 0.0
    %1263 = vmatprep.subr.mxu0 0.0
    %1264 = vmatpush1.xpose.msra.mxu0 0.0
    %1265 = vmatprep.mubr.f32.mxu0 0.0
    %v1266 = vand.u32 %v933, 4294901760
    %v1267 = vsub.f32 %v933, %v1266
    %v1268 = vand.u32 %v1267, 4294901760
    %1269 = vmatmul.mubr.f32.gmra.mrb[0].mxu0 %v1268
    %v1270 = vpop.f32.mrb[0].mxu0
    %v1271 = vadd.f32 %v1194, %v1270
    %v1272 = vpop.f32.mrb[0].mxu0
    %1273 = vdwg.mxu0
    %1274 = vmatprep.subr.mxu0 0.0
    %v1275 = vand.u32 %v936, 4294901760
    %v1276 = vsub.f32 %v936, %v1275
    %v1277 = vand.u32 %v1276, 4294901760
    %1278 = vmatpush1.xpose.msra.mxu0 %v1277
    %1279 = vmatprep.subr.mxu0 0.0
    %v1280 = vand.u32 %v939, 4294901760
    %v1281 = vsub.f32 %v939, %v1280
    %v1282 = vand.u32 %v1281, 4294901760
    %1283 = vmatpush1.xpose.msra.mxu0 %v1282
    %1284 = vmatprep.subr.mxu0 0.0
    %v1285 = vand.u32 %v942, 4294901760
    %v1286 = vsub.f32 %v942, %v1285
    %v1287 = vand.u32 %v1286, 4294901760
    %1288 = vmatpush1.xpose.msra.mxu0 %v1287
    %1289 = vmatprep.subr.mxu0 0.0
    %v1290 = vand.u32 %v945, 4294901760
    %v1291 = vsub.f32 %v945, %v1290
    %v1292 = vand.u32 %v1291, 4294901760
    %1293 = vmatpush1.xpose.msra.mxu0 %v1292
    %1294 = vmatprep.subr.mxu0 0.0
    %1295 = vmatpush1.xpose.msra.mxu0 0.0
    %1296 = vmatprep.subr.mxu0 0.0
    %1297 = vmatpush1.xpose.msra.mxu0 0.0
    %1298 = vmatprep.subr.mxu0 0.0
    %1299 = vmatpush1.xpose.msra.mxu0 0.0
    %1300 = vmatprep.subr.mxu0 0.0
    %1301 = vmatpush1.xpose.msra.mxu0 0.0
    %1302 = vmatprep.subr.mxu0 0.0
    %1303 = vmatpush1.xpose.msra.mxu0 0.0
    %1304 = vmatprep.subr.mxu0 0.0
    %1305 = vmatpush1.xpose.msra.mxu0 0.0
    %1306 = vmatprep.subr.mxu0 0.0
    %1307 = vmatpush1.xpose.msra.mxu0 0.0
    %1308 = vmatprep.subr.mxu0 0.0
    %1309 = vmatpush1.xpose.msra.mxu0 0.0
    %1310 = vmatprep.subr.mxu0 0.0
    %1311 = vmatpush1.xpose.msra.mxu0 0.0
    %1312 = vmatprep.subr.mxu0 0.0
    %1313 = vmatpush1.xpose.msra.mxu0 0.0
    %1314 = vmatprep.subr.mxu0 0.0
    %1315 = vmatpush1.xpose.msra.mxu0 0.0
    %1316 = vmatprep.subr.mxu0 0.0
    %1317 = vmatpush1.xpose.msra.mxu0 0.0
    %1318 = vmatprep.subr.mxu0 0.0
    %1319 = vmatpush1.xpose.msra.mxu0 0.0
    %1320 = vmatprep.subr.mxu0 0.0
    %1321 = vmatpush1.xpose.msra.mxu0 0.0
    %1322 = vmatprep.subr.mxu0 0.0
    %1323 = vmatpush1.xpose.msra.mxu0 0.0
    %1324 = vmatprep.subr.mxu0 0.0
    %1325 = vmatpush1.xpose.msra.mxu0 0.0
    %1326 = vmatprep.subr.mxu0 0.0
    %1327 = vmatpush1.xpose.msra.mxu0 0.0
    %1328 = vmatprep.subr.mxu0 0.0
    %1329 = vmatpush1.xpose.msra.mxu0 0.0
    %1330 = vmatprep.subr.mxu0 0.0
    %1331 = vmatpush1.xpose.msra.mxu0 0.0
    %1332 = vmatprep.subr.mxu0 0.0
    %1333 = vmatpush1.xpose.msra.mxu0 0.0
    %1334 = vmatprep.subr.mxu0 0.0
    %1335 = vmatpush1.xpose.msra.mxu0 0.0
    %1336 = vmatprep.subr.mxu0 0.0
    %1337 = vmatpush1.xpose.msra.mxu0 0.0
    %1338 = vmatprep.subr.mxu0 0.0
    %1339 = vmatpush1.xpose.msra.mxu0 0.0
    %1340 = vmatprep.subr.mxu0 0.0
    %1341 = vmatpush1.xpose.msra.mxu0 0.0
    %1342 = vmatprep.subr.mxu0 0.0
    %1343 = vmatpush1.xpose.msra.mxu0 0.0
    %1344 = vmatprep.subr.mxu0 0.0
    %1345 = vmatpush1.xpose.msra.mxu0 0.0
    %1346 = vmatprep.subr.mxu0 0.0
    %1347 = vmatpush1.xpose.msra.mxu0 0.0
    %1348 = vmatprep.subr.mxu0 0.0
    %1349 = vmatpush1.xpose.msra.mxu0 0.0
    %1350 = vmatprep.mubr.f32.mxu0 0.0
    %v1351 = vand.u32 %v933, 4294901760
    %1352 = vmatmul.mubr.f32.gmra.mrb[0].mxu0 %v1351
    %v1353 = vpop.f32.mrb[0].mxu0
    %v1354 = vadd.f32 %v1271, %v1353
    %v1355 = vpop.f32.mrb[0].mxu0
    %1356 = vdwg.mxu0
    %1357 = vmatprep.subr.mxu0 0.0
    %v1358 = vand.u32 %v936, 4294901760
    %1359 = vmatpush1.xpose.msra.mxu0 %v1358
    %1360 = vmatprep.subr.mxu0 0.0
    %v1361 = vand.u32 %v939, 4294901760
    %1362 = vmatpush1.xpose.msra.mxu0 %v1361
    %1363 = vmatprep.subr.mxu0 0.0
    %v1364 = vand.u32 %v942, 4294901760
    %1365 = vmatpush1.xpose.msra.mxu0 %v1364
    %1366 = vmatprep.subr.mxu0 0.0
    %v1367 = vand.u32 %v945, 4294901760
    %1368 = vmatpush1.xpose.msra.mxu0 %v1367
    %1369 = vmatprep.subr.mxu0 0.0
    %1370 = vmatpush1.xpose.msra.mxu0 0.0
    %1371 = vmatprep.subr.mxu0 0.0
    %1372 = vmatpush1.xpose.msra.mxu0 0.0
    %1373 = vmatprep.subr.mxu0 0.0
    %1374 = vmatpush1.xpose.msra.mxu0 0.0
    %1375 = vmatprep.subr.mxu0 0.0
    %1376 = vmatpush1.xpose.msra.mxu0 0.0
    %1377 = vmatprep.subr.mxu0 0.0
    %1378 = vmatpush1.xpose.msra.mxu0 0.0
    %1379 = vmatprep.subr.mxu0 0.0
    %1380 = vmatpush1.xpose.msra.mxu0 0.0
    %1381 = vmatprep.subr.mxu0 0.0
    %1382 = vmatpush1.xpose.msra.mxu0 0.0
    %1383 = vmatprep.subr.mxu0 0.0
    %1384 = vmatpush1.xpose.msra.mxu0 0.0
    %1385 = vmatprep.subr.mxu0 0.0
    %1386 = vmatpush1.xpose.msra.mxu0 0.0
    %1387 = vmatprep.subr.mxu0 0.0
    %1388 = vmatpush1.xpose.msra.mxu0 0.0
    %1389 = vmatprep.subr.mxu0 0.0
    %1390 = vmatpush1.xpose.msra.mxu0 0.0
    %1391 = vmatprep.subr.mxu0 0.0
    %1392 = vmatpush1.xpose.msra.mxu0 0.0
    %1393 = vmatprep.subr.mxu0 0.0
    %1394 = vmatpush1.xpose.msra.mxu0 0.0
    %1395 = vmatprep.subr.mxu0 0.0
    %1396 = vmatpush1.xpose.msra.mxu0 0.0
    %1397 = vmatprep.subr.mxu0 0.0
    %1398 = vmatpush1.xpose.msra.mxu0 0.0
    %1399 = vmatprep.subr.mxu0 0.0
    %1400 = vmatpush1.xpose.msra.mxu0 0.0
    %1401 = vmatprep.subr.mxu0 0.0
    %1402 = vmatpush1.xpose.msra.mxu0 0.0
    %1403 = vmatprep.subr.mxu0 0.0
    %1404 = vmatpush1.xpose.msra.mxu0 0.0
    %1405 = vmatprep.subr.mxu0 0.0
    %1406 = vmatpush1.xpose.msra.mxu0 0.0
    %1407 = vmatprep.subr.mxu0 0.0
    %1408 = vmatpush1.xpose.msra.mxu0 0.0
    %1409 = vmatprep.subr.mxu0 0.0
    %1410 = vmatpush1.xpose.msra.mxu0 0.0
    %1411 = vmatprep.subr.mxu0 0.0
    %1412 = vmatpush1.xpose.msra.mxu0 0.0
    %1413 = vmatprep.subr.mxu0 0.0
    %1414 = vmatpush1.xpose.msra.mxu0 0.0
    %1415 = vmatprep.subr.mxu0 0.0
    %1416 = vmatpush1.xpose.msra.mxu0 0.0
    %1417 = vmatprep.subr.mxu0 0.0
    %1418 = vmatpush1.xpose.msra.mxu0 0.0
    %1419 = vmatprep.subr.mxu0 0.0
    %1420 = vmatpush1.xpose.msra.mxu0 0.0
    %1421 = vmatprep.subr.mxu0 0.0
    %1422 = vmatpush1.xpose.msra.mxu0 0.0
    %1423 = vmatprep.subr.mxu0 0.0
    %1424 = vmatpush1.xpose.msra.mxu0 0.0
    %1425 = vmatprep.mubr.f32.mxu0 0.0
    %v1426 = vand.u32 %v933, 4294901760
    %1427 = vmatmul.mubr.f32.gmra.mrb[0].mxu0 %v1426
    %v1428 = vpop.f32.mrb[0].mxu0
    %v1429 = vadd.f32 %v1354, %v1428
    %v1430 = vpop.f32.mrb[0].mxu0
    %1431 = vdwg.mxu0
    %v1432 = vadd.f32 %v882, %v1429
    %v1433 = vtanh.pop %v1432
    %v1435 = vsel %vm104, %v1433, 0
    %1437 = vmatprep.subr.mxu0 0.0
    %v1438 = vand.u32 %v936, 4294901760
    %1439 = vmatpush1.xpose.msra.mxu0 %v1438
    %1440 = vmatprep.subr.mxu0 0.0
    %v1441 = vand.u32 %v939, 4294901760
    %1442 = vmatpush1.xpose.msra.mxu0 %v1441
    %1443 = vmatprep.subr.mxu0 0.0
    %v1444 = vand.u32 %v942, 4294901760
    %1445 = vmatpush1.xpose.msra.mxu0 %v1444
    %1446 = vmatprep.subr.mxu0 0.0
    %v1447 = vand.u32 %v945, 4294901760
    %1448 = vmatpush1.xpose.msra.mxu0 %v1447
    %1449 = vmatprep.subr.mxu0 0.0
    %1450 = vmatpush1.xpose.msra.mxu0 0.0
    %1451 = vmatprep.subr.mxu0 0.0
    %1452 = vmatpush1.xpose.msra.mxu0 0.0
    %1453 = vmatprep.subr.mxu0 0.0
    %1454 = vmatpush1.xpose.msra.mxu0 0.0
    %1455 = vmatprep.subr.mxu0 0.0
    %1456 = vmatpush1.xpose.msra.mxu0 0.0
    %1457 = vmatprep.subr.mxu0 0.0
    %1458 = vmatpush1.xpose.msra.mxu0 0.0
    %1459 = vmatprep.subr.mxu0 0.0
    %1460 = vmatpush1.xpose.msra.mxu0 0.0
    %1461 = vmatprep.subr.mxu0 0.0
    %1462 = vmatpush1.xpose.msra.mxu0 0.0
    %1463 = vmatprep.subr.mxu0 0.0
    %1464 = vmatpush1.xpose.msra.mxu0 0.0
    %1465 = vmatprep.subr.mxu0 0.0
    %1466 = vmatpush1.xpose.msra.mxu0 0.0
    %1467 = vmatprep.subr.mxu0 0.0
    %1468 = vmatpush1.xpose.msra.mxu0 0.0
    %1469 = vmatprep.subr.mxu0 0.0
    %1470 = vmatpush1.xpose.msra.mxu0 0.0
    %1471 = vmatprep.subr.mxu0 0.0
    %1472 = vmatpush1.xpose.msra.mxu0 0.0
    %1473 = vmatprep.subr.mxu0 0.0
    %1474 = vmatpush1.xpose.msra.mxu0 0.0
    %1475 = vmatprep.subr.mxu0 0.0
    %1476 = vmatpush1.xpose.msra.mxu0 0.0
    %1477 = vmatprep.subr.mxu0 0.0
    %1478 = vmatpush1.xpose.msra.mxu0 0.0
    %1479 = vmatprep.subr.mxu0 0.0
    %1480 = vmatpush1.xpose.msra.mxu0 0.0
    %1481 = vmatprep.subr.mxu0 0.0
    %1482 = vmatpush1.xpose.msra.mxu0 0.0
    %1483 = vmatprep.subr.mxu0 0.0
    %1484 = vmatpush1.xpose.msra.mxu0 0.0
    %1485 = vmatprep.subr.mxu0 0.0
    %1486 = vmatpush1.xpose.msra.mxu0 0.0
    %1487 = vmatprep.subr.mxu0 0.0
    %1488 = vmatpush1.xpose.msra.mxu0 0.0
    %1489 = vmatprep.subr.mxu0 0.0
    %1490 = vmatpush1.xpose.msra.mxu0 0.0
    %1491 = vmatprep.subr.mxu0 0.0
    %1492 = vmatpush1.xpose.msra.mxu0 0.0
    %1493 = vmatprep.subr.mxu0 0.0
    %1494 = vmatpush1.xpose.msra.mxu0 0.0
    %1495 = vmatprep.subr.mxu0 0.0
    %1496 = vmatpush1.xpose.msra.mxu0 0.0
    %1497 = vmatprep.subr.mxu0 0.0
    %1498 = vmatpush1.xpose.msra.mxu0 0.0
    %1499 = vmatprep.subr.mxu0 0.0
    %1500 = vmatpush1.xpose.msra.mxu0 0.0
    %1501 = vmatprep.subr.mxu0 0.0
    %1502 = vmatpush1.xpose.msra.mxu0 0.0
    %1503 = vmatprep.subr.mxu0 0.0
    %1504 = vmatpush1.xpose.msra.mxu0 0.0
    %1505 = vmatprep.mubr.f32.mxu0 0.0
    %v1506 = vand.u32 %v1435, 4294901760
    %v1507 = vsub.f32 %v1435, %v1506
    %v1508 = vand.u32 %v1507, 4294901760
    %v1509 = vsub.f32 %v1507, %v1508
    %v1510 = vand.u32 %v1509, 4294901760
    %1511 = vmatmul.mubr.f32.gmra.mrb[0].mxu0 %v1510
    %v1512 = vpop.f32.mrb[0].mxu0
    %v1513 = vadd.f32 0.0, %v1512
    %v1514 = vpop.f32.mrb[0].mxu0
    %1515 = vdwg.mxu0
    %1516 = vmatprep.subr.mxu0 0.0
    %v1517 = vand.u32 %v936, 4294901760
    %v1518 = vsub.f32 %v936, %v1517
    %v1519 = vand.u32 %v1518, 4294901760
    %v1520 = vsub.f32 %v1518, %v1519
    %v1521 = vand.u32 %v1520, 4294901760
    %1522 = vmatpush1.xpose.msra.mxu0 %v1521
    %1523 = vmatprep.subr.mxu0 0.0
    %v1524 = vand.u32 %v939, 4294901760
    %v1525 = vsub.f32 %v939, %v1524
    %v1526 = vand.u32 %v1525, 4294901760
    %v1527 = vsub.f32 %v1525, %v1526
    %v1528 = vand.u32 %v1527, 4294901760
    %1529 = vmatpush1.xpose.msra.mxu0 %v1528
    %1530 = vmatprep.subr.mxu0 0.0
    %v1531 = vand.u32 %v942, 4294901760
    %v1532 = vsub.f32 %v942, %v1531
    %v1533 = vand.u32 %v1532, 4294901760
    %v1534 = vsub.f32 %v1532, %v1533
    %v1535 = vand.u32 %v1534, 4294901760
    %1536 = vmatpush1.xpose.msra.mxu0 %v1535
    %1537 = vmatprep.subr.mxu0 0.0
    %v1538 = vand.u32 %v945, 4294901760
    %v1539 = vsub.f32 %v945, %v1538
    %v1540 = vand.u32 %v1539, 4294901760
    %v1541 = vsub.f32 %v1539, %v1540
    %v1542 = vand.u32 %v1541, 4294901760
    %1543 = vmatpush1.xpose.msra.mxu0 %v1542
    %1544 = vmatprep.subr.mxu0 0.0
    %1545 = vmatpush1.xpose.msra.mxu0 0.0
    %1546 = vmatprep.subr.mxu0 0.0
    %1547 = vmatpush1.xpose.msra.mxu0 0.0
    %1548 = vmatprep.subr.mxu0 0.0
    %1549 = vmatpush1.xpose.msra.mxu0 0.0
    %1550 = vmatprep.subr.mxu0 0.0
    %1551 = vmatpush1.xpose.msra.mxu0 0.0
    %1552 = vmatprep.subr.mxu0 0.0
    %1553 = vmatpush1.xpose.msra.mxu0 0.0
    %1554 = vmatprep.subr.mxu0 0.0
    %1555 = vmatpush1.xpose.msra.mxu0 0.0
    %1556 = vmatprep.subr.mxu0 0.0
    %1557 = vmatpush1.xpose.msra.mxu0 0.0
    %1558 = vmatprep.subr.mxu0 0.0
    %1559 = vmatpush1.xpose.msra.mxu0 0.0
    %1560 = vmatprep.subr.mxu0 0.0
    %1561 = vmatpush1.xpose.msra.mxu0 0.0
    %1562 = vmatprep.subr.mxu0 0.0
    %1563 = vmatpush1.xpose.msra.mxu0 0.0
    %1564 = vmatprep.subr.mxu0 0.0
    %1565 = vmatpush1.xpose.msra.mxu0 0.0
    %1566 = vmatprep.subr.mxu0 0.0
    %1567 = vmatpush1.xpose.msra.mxu0 0.0
    %1568 = vmatprep.subr.mxu0 0.0
    %1569 = vmatpush1.xpose.msra.mxu0 0.0
    %1570 = vmatprep.subr.mxu0 0.0
    %1571 = vmatpush1.xpose.msra.mxu0 0.0
    %1572 = vmatprep.subr.mxu0 0.0
    %1573 = vmatpush1.xpose.msra.mxu0 0.0
    %1574 = vmatprep.subr.mxu0 0.0
    %1575 = vmatpush1.xpose.msra.mxu0 0.0
    %1576 = vmatprep.subr.mxu0 0.0
    %1577 = vmatpush1.xpose.msra.mxu0 0.0
    %1578 = vmatprep.subr.mxu0 0.0
    %1579 = vmatpush1.xpose.msra.mxu0 0.0
    %1580 = vmatprep.subr.mxu0 0.0
    %1581 = vmatpush1.xpose.msra.mxu0 0.0
    %1582 = vmatprep.subr.mxu0 0.0
    %1583 = vmatpush1.xpose.msra.mxu0 0.0
    %1584 = vmatprep.subr.mxu0 0.0
    %1585 = vmatpush1.xpose.msra.mxu0 0.0
    %1586 = vmatprep.subr.mxu0 0.0
    %1587 = vmatpush1.xpose.msra.mxu0 0.0
    %1588 = vmatprep.subr.mxu0 0.0
    %1589 = vmatpush1.xpose.msra.mxu0 0.0
    %1590 = vmatprep.subr.mxu0 0.0
    %1591 = vmatpush1.xpose.msra.mxu0 0.0
    %1592 = vmatprep.subr.mxu0 0.0
    %1593 = vmatpush1.xpose.msra.mxu0 0.0
    %1594 = vmatprep.subr.mxu0 0.0
    %1595 = vmatpush1.xpose.msra.mxu0 0.0
    %1596 = vmatprep.subr.mxu0 0.0
    %1597 = vmatpush1.xpose.msra.mxu0 0.0
    %1598 = vmatprep.subr.mxu0 0.0
    %1599 = vmatpush1.xpose.msra.mxu0 0.0
    %1600 = vmatprep.mubr.f32.mxu0 0.0
    %v1601 = vand.u32 %v1435, 4294901760
    %1602 = vmatmul.mubr.f32.gmra.mrb[0].mxu0 %v1601
    %v1603 = vpop.f32.mrb[0].mxu0
    %v1604 = vadd.f32 %v1513, %v1603
    %v1605 = vpop.f32.mrb[0].mxu0
    %1606 = vdwg.mxu0
    %1607 = vmatprep.subr.mxu0 0.0
    %v1608 = vand.u32 %v936, 4294901760
    %v1609 = vsub.f32 %v936, %v1608
    %1610 = vmatpush1.xpose.msra.mxu0 %v1609
    %1611 = vmatprep.subr.mxu0 0.0
    %v1612 = vand.u32 %v939, 4294901760
    %v1613 = vsub.f32 %v939, %v1612
    %1614 = vmatpush1.xpose.msra.mxu0 %v1613
    %1615 = vmatprep.subr.mxu0 0.0
    %v1616 = vand.u32 %v942, 4294901760
    %v1617 = vsub.f32 %v942, %v1616
    %1618 = vmatpush1.xpose.msra.mxu0 %v1617
    %1619 = vmatprep.subr.mxu0 0.0
    %v1620 = vand.u32 %v945, 4294901760
    %v1621 = vsub.f32 %v945, %v1620
    %1622 = vmatpush1.xpose.msra.mxu0 %v1621
    %1623 = vmatprep.subr.mxu0 0.0
    %1624 = vmatpush1.xpose.msra.mxu0 0.0
    %1625 = vmatprep.subr.mxu0 0.0
    %1626 = vmatpush1.xpose.msra.mxu0 0.0
    %1627 = vmatprep.subr.mxu0 0.0
    %1628 = vmatpush1.xpose.msra.mxu0 0.0
    %1629 = vmatprep.subr.mxu0 0.0
    %1630 = vmatpush1.xpose.msra.mxu0 0.0
    %1631 = vmatprep.subr.mxu0 0.0
    %1632 = vmatpush1.xpose.msra.mxu0 0.0
    %1633 = vmatprep.subr.mxu0 0.0
    %1634 = vmatpush1.xpose.msra.mxu0 0.0
    %1635 = vmatprep.subr.mxu0 0.0
    %1636 = vmatpush1.xpose.msra.mxu0 0.0
    %1637 = vmatprep.subr.mxu0 0.0
    %1638 = vmatpush1.xpose.msra.mxu0 0.0
    %1639 = vmatprep.subr.mxu0 0.0
    %1640 = vmatpush1.xpose.msra.mxu0 0.0
    %1641 = vmatprep.subr.mxu0 0.0
    %1642 = vmatpush1.xpose.msra.mxu0 0.0
    %1643 = vmatprep.subr.mxu0 0.0
    %1644 = vmatpush1.xpose.msra.mxu0 0.0
    %1645 = vmatprep.subr.mxu0 0.0
    %1646 = vmatpush1.xpose.msra.mxu0 0.0
    %1647 = vmatprep.subr.mxu0 0.0
    %1648 = vmatpush1.xpose.msra.mxu0 0.0
    %1649 = vmatprep.subr.mxu0 0.0
    %1650 = vmatpush1.xpose.msra.mxu0 0.0
    %1651 = vmatprep.subr.mxu0 0.0
    %1652 = vmatpush1.xpose.msra.mxu0 0.0
    %1653 = vmatprep.subr.mxu0 0.0
    %1654 = vmatpush1.xpose.msra.mxu0 0.0
    %1655 = vmatprep.subr.mxu0 0.0
    %1656 = vmatpush1.xpose.msra.mxu0 0.0
    %1657 = vmatprep.subr.mxu0 0.0
    %1658 = vmatpush1.xpose.msra.mxu0 0.0
    %1659 = vmatprep.subr.mxu0 0.0
    %1660 = vmatpush1.xpose.msra.mxu0 0.0
    %1661 = vmatprep.subr.mxu0 0.0
    %1662 = vmatpush1.xpose.msra.mxu0 0.0
    %1663 = vmatprep.subr.mxu0 0.0
    %1664 = vmatpush1.xpose.msra.mxu0 0.0
    %1665 = vmatprep.subr.mxu0 0.0
    %1666 = vmatpush1.xpose.msra.mxu0 0.0
    %1667 = vmatprep.subr.mxu0 0.0
    %1668 = vmatpush1.xpose.msra.mxu0 0.0
    %1669 = vmatprep.subr.mxu0 0.0
    %1670 = vmatpush1.xpose.msra.mxu0 0.0
    %1671 = vmatprep.subr.mxu0 0.0
    %1672 = vmatpush1.xpose.msra.mxu0 0.0
    %1673 = vmatprep.subr.mxu0 0.0
    %1674 = vmatpush1.xpose.msra.mxu0 0.0
    %1675 = vmatprep.subr.mxu0 0.0
    %1676 = vmatpush1.xpose.msra.mxu0 0.0
    %1677 = vmatprep.subr.mxu0 0.0
    %1678 = vmatpush1.xpose.msra.mxu0 0.0
    %1679 = vmatprep.mubr.f32.mxu0 0.0
    %v1680 = vand.u32 %v1435, 4294901760
    %v1681 = vsub.f32 %v1435, %v1680
    %1682 = vmatmul.mubr.f32.gmra.mrb[0].mxu0 %v1681
    %v1683 = vpop.f32.mrb[0].mxu0
    %v1684 = vadd.f32 %v1604, %v1683
    %v1685 = vpop.f32.mrb[0].mxu0
    %1686 = vdwg.mxu0
    %1687 = vmatprep.subr.mxu0 0.0
    %v1688 = vand.u32 %v936, 4294901760
    %1689 = vmatpush1.xpose.msra.mxu0 %v1688
    %1690 = vmatprep.subr.mxu0 0.0
    %v1691 = vand.u32 %v939, 4294901760
    %1692 = vmatpush1.xpose.msra.mxu0 %v1691
    %1693 = vmatprep.subr.mxu0 0.0
    %v1694 = vand.u32 %v942, 4294901760
    %1695 = vmatpush1.xpose.msra.mxu0 %v1694
    %1696 = vmatprep.subr.mxu0 0.0
    %v1697 = vand.u32 %v945, 4294901760
    %1698 = vmatpush1.xpose.msra.mxu0 %v1697
    %1699 = vmatprep.subr.mxu0 0.0
    %1700 = vmatpush1.xpose.msra.mxu0 0.0
    %1701 = vmatprep.subr.mxu0 0.0
    %1702 = vmatpush1.xpose.msra.mxu0 0.0
    %1703 = vmatprep.subr.mxu0 0.0
    %1704 = vmatpush1.xpose.msra.mxu0 0.0
    %1705 = vmatprep.subr.mxu0 0.0
    %1706 = vmatpush1.xpose.msra.mxu0 0.0
    %1707 = vmatprep.subr.mxu0 0.0
    %1708 = vmatpush1.xpose.msra.mxu0 0.0
    %1709 = vmatprep.subr.mxu0 0.0
    %1710 = vmatpush1.xpose.msra.mxu0 0.0
    %1711 = vmatprep.subr.mxu0 0.0
    %1712 = vmatpush1.xpose.msra.mxu0 0.0
    %1713 = vmatprep.subr.mxu0 0.0
    %1714 = vmatpush1.xpose.msra.mxu0 0.0
    %1715 = vmatprep.subr.mxu0 0.0
    %1716 = vmatpush1.xpose.msra.mxu0 0.0
    %1717 = vmatprep.subr.mxu0 0.0
    %1718 = vmatpush1.xpose.msra.mxu0 0.0
    %1719 = vmatprep.subr.mxu0 0.0
    %1720 = vmatpush1.xpose.msra.mxu0 0.0
    %1721 = vmatprep.subr.mxu0 0.0
    %1722 = vmatpush1.xpose.msra.mxu0 0.0
    %1723 = vmatprep.subr.mxu0 0.0
    %1724 = vmatpush1.xpose.msra.mxu0 0.0
    %1725 = vmatprep.subr.mxu0 0.0
    %1726 = vmatpush1.xpose.msra.mxu0 0.0
    %1727 = vmatprep.subr.mxu0 0.0
    %1728 = vmatpush1.xpose.msra.mxu0 0.0
    %1729 = vmatprep.subr.mxu0 0.0
    %1730 = vmatpush1.xpose.msra.mxu0 0.0
    %1731 = vmatprep.subr.mxu0 0.0
    %1732 = vmatpush1.xpose.msra.mxu0 0.0
    %1733 = vmatprep.subr.mxu0 0.0
    %1734 = vmatpush1.xpose.msra.mxu0 0.0
    %1735 = vmatprep.subr.mxu0 0.0
    %1736 = vmatpush1.xpose.msra.mxu0 0.0
    %1737 = vmatprep.subr.mxu0 0.0
    %1738 = vmatpush1.xpose.msra.mxu0 0.0
    %1739 = vmatprep.subr.mxu0 0.0
    %1740 = vmatpush1.xpose.msra.mxu0 0.0
    %1741 = vmatprep.subr.mxu0 0.0
    %1742 = vmatpush1.xpose.msra.mxu0 0.0
    %1743 = vmatprep.subr.mxu0 0.0
    %1744 = vmatpush1.xpose.msra.mxu0 0.0
    %1745 = vmatprep.subr.mxu0 0.0
    %1746 = vmatpush1.xpose.msra.mxu0 0.0
    %1747 = vmatprep.subr.mxu0 0.0
    %1748 = vmatpush1.xpose.msra.mxu0 0.0
    %1749 = vmatprep.subr.mxu0 0.0
    %1750 = vmatpush1.xpose.msra.mxu0 0.0
    %1751 = vmatprep.subr.mxu0 0.0
    %1752 = vmatpush1.xpose.msra.mxu0 0.0
    %1753 = vmatprep.subr.mxu0 0.0
    %1754 = vmatpush1.xpose.msra.mxu0 0.0
    %1755 = vmatprep.mubr.f32.mxu0 0.0
    %v1756 = vand.u32 %v1435, 4294901760
    %v1757 = vsub.f32 %v1435, %v1756
    %v1758 = vand.u32 %v1757, 4294901760
    %1759 = vmatmul.mubr.f32.gmra.mrb[0].mxu0 %v1758
    %v1760 = vpop.f32.mrb[0].mxu0
    %v1761 = vadd.f32 %v1684, %v1760
    %v1762 = vpop.f32.mrb[0].mxu0
    %1763 = vdwg.mxu0
    %1764 = vmatprep.subr.mxu0 0.0
    %v1765 = vand.u32 %v936, 4294901760
    %v1766 = vsub.f32 %v936, %v1765
    %v1767 = vand.u32 %v1766, 4294901760
    %1768 = vmatpush1.xpose.msra.mxu0 %v1767
    %1769 = vmatprep.subr.mxu0 0.0
    %v1770 = vand.u32 %v939, 4294901760
    %v1771 = vsub.f32 %v939, %v1770
    %v1772 = vand.u32 %v1771, 4294901760
    %1773 = vmatpush1.xpose.msra.mxu0 %v1772
    %1774 = vmatprep.subr.mxu0 0.0
    %v1775 = vand.u32 %v942, 4294901760
    %v1776 = vsub.f32 %v942, %v1775
    %v1777 = vand.u32 %v1776, 4294901760
    %1778 = vmatpush1.xpose.msra.mxu0 %v1777
    %1779 = vmatprep.subr.mxu0 0.0
    %v1780 = vand.u32 %v945, 4294901760
    %v1781 = vsub.f32 %v945, %v1780
    %v1782 = vand.u32 %v1781, 4294901760
    %1783 = vmatpush1.xpose.msra.mxu0 %v1782
    %1784 = vmatprep.subr.mxu0 0.0
    %1785 = vmatpush1.xpose.msra.mxu0 0.0
    %1786 = vmatprep.subr.mxu0 0.0
    %1787 = vmatpush1.xpose.msra.mxu0 0.0
    %1788 = vmatprep.subr.mxu0 0.0
    %1789 = vmatpush1.xpose.msra.mxu0 0.0
    %1790 = vmatprep.subr.mxu0 0.0
    %1791 = vmatpush1.xpose.msra.mxu0 0.0
    %1792 = vmatprep.subr.mxu0 0.0
    %1793 = vmatpush1.xpose.msra.mxu0 0.0
    %1794 = vmatprep.subr.mxu0 0.0
    %1795 = vmatpush1.xpose.msra.mxu0 0.0
    %1796 = vmatprep.subr.mxu0 0.0
    %1797 = vmatpush1.xpose.msra.mxu0 0.0
    %1798 = vmatprep.subr.mxu0 0.0
    %1799 = vmatpush1.xpose.msra.mxu0 0.0
    %1800 = vmatprep.subr.mxu0 0.0
    %1801 = vmatpush1.xpose.msra.mxu0 0.0
    %1802 = vmatprep.subr.mxu0 0.0
    %1803 = vmatpush1.xpose.msra.mxu0 0.0
    %1804 = vmatprep.subr.mxu0 0.0
    %1805 = vmatpush1.xpose.msra.mxu0 0.0
    %1806 = vmatprep.subr.mxu0 0.0
    %1807 = vmatpush1.xpose.msra.mxu0 0.0
    %1808 = vmatprep.subr.mxu0 0.0
    %1809 = vmatpush1.xpose.msra.mxu0 0.0
    %1810 = vmatprep.subr.mxu0 0.0
    %1811 = vmatpush1.xpose.msra.mxu0 0.0
    %1812 = vmatprep.subr.mxu0 0.0
    %1813 = vmatpush1.xpose.msra.mxu0 0.0
    %1814 = vmatprep.subr.mxu0 0.0
    %1815 = vmatpush1.xpose.msra.mxu0 0.0
    %1816 = vmatprep.subr.mxu0 0.0
    %1817 = vmatpush1.xpose.msra.mxu0 0.0
    %1818 = vmatprep.subr.mxu0 0.0
    %1819 = vmatpush1.xpose.msra.mxu0 0.0
    %1820 = vmatprep.subr.mxu0 0.0
    %1821 = vmatpush1.xpose.msra.mxu0 0.0
    %1822 = vmatprep.subr.mxu0 0.0
    %1823 = vmatpush1.xpose.msra.mxu0 0.0
    %1824 = vmatprep.subr.mxu0 0.0
    %1825 = vmatpush1.xpose.msra.mxu0 0.0
    %1826 = vmatprep.subr.mxu0 0.0
    %1827 = vmatpush1.xpose.msra.mxu0 0.0
    %1828 = vmatprep.subr.mxu0 0.0
    %1829 = vmatpush1.xpose.msra.mxu0 0.0
    %1830 = vmatprep.subr.mxu0 0.0
    %1831 = vmatpush1.xpose.msra.mxu0 0.0
    %1832 = vmatprep.subr.mxu0 0.0
    %1833 = vmatpush1.xpose.msra.mxu0 0.0
    %1834 = vmatprep.subr.mxu0 0.0
    %1835 = vmatpush1.xpose.msra.mxu0 0.0
    %1836 = vmatprep.subr.mxu0 0.0
    %1837 = vmatpush1.xpose.msra.mxu0 0.0
    %1838 = vmatprep.subr.mxu0 0.0
    %1839 = vmatpush1.xpose.msra.mxu0 0.0
    %1840 = vmatprep.mubr.f32.mxu0 0.0
    %v1841 = vand.u32 %v1435, 4294901760
    %1842 = vmatmul.mubr.f32.gmra.mrb[0].mxu0 %v1841
    %v1843 = vpop.f32.mrb[0].mxu0
    %v1844 = vadd.f32 %v1761, %v1843
    %v1845 = vpop.f32.mrb[0].mxu0
    %1846 = vdwg.mxu0
    %1847 = vmatprep.subr.mxu0 0.0
    %v1848 = vand.u32 %v936, 4294901760
    %1849 = vmatpush1.xpose.msra.mxu0 %v1848
    %1850 = vmatprep.subr.mxu0 0.0
    %v1851 = vand.u32 %v939, 4294901760
    %1852 = vmatpush1.xpose.msra.mxu0 %v1851
    %1853 = vmatprep.subr.mxu0 0.0
    %v1854 = vand.u32 %v942, 4294901760
    %1855 = vmatpush1.xpose.msra.mxu0 %v1854
    %1856 = vmatprep.subr.mxu0 0.0
    %v1857 = vand.u32 %v945, 4294901760
    %1858 = vmatpush1.xpose.msra.mxu0 %v1857
    %1859 = vmatprep.subr.mxu0 0.0
    %1860 = vmatpush1.xpose.msra.mxu0 0.0
    %1861 = vmatprep.subr.mxu0 0.0
    %1862 = vmatpush1.xpose.msra.mxu0 0.0
    %1863 = vmatprep.subr.mxu0 0.0
    %1864 = vmatpush1.xpose.msra.mxu0 0.0
    %1865 = vmatprep.subr.mxu0 0.0
    %1866 = vmatpush1.xpose.msra.mxu0 0.0
    %1867 = vmatprep.subr.mxu0 0.0
    %1868 = vmatpush1.xpose.msra.mxu0 0.0
    %1869 = vmatprep.subr.mxu0 0.0
    %1870 = vmatpush1.xpose.msra.mxu0 0.0
    %1871 = vmatprep.subr.mxu0 0.0
    %1872 = vmatpush1.xpose.msra.mxu0 0.0
    %1873 = vmatprep.subr.mxu0 0.0
    %1874 = vmatpush1.xpose.msra.mxu0 0.0
    %1875 = vmatprep.subr.mxu0 0.0
    %1876 = vmatpush1.xpose.msra.mxu0 0.0
    %1877 = vmatprep.subr.mxu0 0.0
    %1878 = vmatpush1.xpose.msra.mxu0 0.0
    %1879 = vmatprep.subr.mxu0 0.0
    %1880 = vmatpush1.xpose.msra.mxu0 0.0
    %1881 = vmatprep.subr.mxu0 0.0
    %1882 = vmatpush1.xpose.msra.mxu0 0.0
    %1883 = vmatprep.subr.mxu0 0.0
    %1884 = vmatpush1.xpose.msra.mxu0 0.0
    %1885 = vmatprep.subr.mxu0 0.0
    %1886 = vmatpush1.xpose.msra.mxu0 0.0
    %1887 = vmatprep.subr.mxu0 0.0
    %1888 = vmatpush1.xpose.msra.mxu0 0.0
    %1889 = vmatprep.subr.mxu0 0.0
    %1890 = vmatpush1.xpose.msra.mxu0 0.0
    %1891 = vmatprep.subr.mxu0 0.0
    %1892 = vmatpush1.xpose.msra.mxu0 0.0
    %1893 = vmatprep.subr.mxu0 0.0
    %1894 = vmatpush1.xpose.msra.mxu0 0.0
    %1895 = vmatprep.subr.mxu0 0.0
    %1896 = vmatpush1.xpose.msra.mxu0 0.0
    %1897 = vmatprep.subr.mxu0 0.0
    %1898 = vmatpush1.xpose.msra.mxu0 0.0
    %1899 = vmatprep.subr.mxu0 0.0
    %1900 = vmatpush1.xpose.msra.mxu0 0.0
    %1901 = vmatprep.subr.mxu0 0.0
    %1902 = vmatpush1.xpose.msra.mxu0 0.0
    %1903 = vmatprep.subr.mxu0 0.0
    %1904 = vmatpush1.xpose.msra.mxu0 0.0
    %1905 = vmatprep.subr.mxu0 0.0
    %1906 = vmatpush1.xpose.msra.mxu0 0.0
    %1907 = vmatprep.subr.mxu0 0.0
    %1908 = vmatpush1.xpose.msra.mxu0 0.0
    %1909 = vmatprep.subr.mxu0 0.0
    %1910 = vmatpush1.xpose.msra.mxu0 0.0
    %1911 = vmatprep.subr.mxu0 0.0
    %1912 = vmatpush1.xpose.msra.mxu0 0.0
    %1913 = vmatprep.subr.mxu0 0.0
    %1914 = vmatpush1.xpose.msra.mxu0 0.0
    %1915 = vmatprep.mubr.f32.mxu0 0.0
    %v1916 = vand.u32 %v1435, 4294901760
    %1917 = vmatmul.mubr.f32.gmra.mrb[0].mxu0 %v1916
    %v1918 = vpop.f32.mrb[0].mxu0
    %v1919 = vadd.f32 %v1844, %v1918
    %v1920 = vpop.f32.mrb[0].mxu0
    %1921 = vdwg.mxu0
    %v1922 = vadd.f32 %v888, %v1919
    %v1923 = vtanh.pop %v1922
    %v1925 = vsel %vm104, %v1923, 0
    %1927 = vmatprep.subr.mxu0 0.0
    %v1928 = vand.u32 %v936, 4294901760
    %1929 = vmatpush1.xpose.msra.mxu0 %v1928
    %1930 = vmatprep.subr.mxu0 0.0
    %v1931 = vand.u32 %v939, 4294901760
    %1932 = vmatpush1.xpose.msra.mxu0 %v1931
    %1933 = vmatprep.subr.mxu0 0.0
    %v1934 = vand.u32 %v942, 4294901760
    %1935 = vmatpush1.xpose.msra.mxu0 %v1934
    %1936 = vmatprep.subr.mxu0 0.0
    %v1937 = vand.u32 %v945, 4294901760
    %1938 = vmatpush1.xpose.msra.mxu0 %v1937
    %1939 = vmatprep.subr.mxu0 0.0
    %1940 = vmatpush1.xpose.msra.mxu0 0.0
    %1941 = vmatprep.subr.mxu0 0.0
    %1942 = vmatpush1.xpose.msra.mxu0 0.0
    %1943 = vmatprep.subr.mxu0 0.0
    %1944 = vmatpush1.xpose.msra.mxu0 0.0
    %1945 = vmatprep.subr.mxu0 0.0
    %1946 = vmatpush1.xpose.msra.mxu0 0.0
    %1947 = vmatprep.subr.mxu0 0.0
    %1948 = vmatpush1.xpose.msra.mxu0 0.0
    %1949 = vmatprep.subr.mxu0 0.0
    %1950 = vmatpush1.xpose.msra.mxu0 0.0
    %1951 = vmatprep.subr.mxu0 0.0
    %1952 = vmatpush1.xpose.msra.mxu0 0.0
    %1953 = vmatprep.subr.mxu0 0.0
    %1954 = vmatpush1.xpose.msra.mxu0 0.0
    %1955 = vmatprep.subr.mxu0 0.0
    %1956 = vmatpush1.xpose.msra.mxu0 0.0
    %1957 = vmatprep.subr.mxu0 0.0
    %1958 = vmatpush1.xpose.msra.mxu0 0.0
    %1959 = vmatprep.subr.mxu0 0.0
    %1960 = vmatpush1.xpose.msra.mxu0 0.0
    %1961 = vmatprep.subr.mxu0 0.0
    %1962 = vmatpush1.xpose.msra.mxu0 0.0
    %1963 = vmatprep.subr.mxu0 0.0
    %1964 = vmatpush1.xpose.msra.mxu0 0.0
    %1965 = vmatprep.subr.mxu0 0.0
    %1966 = vmatpush1.xpose.msra.mxu0 0.0
    %1967 = vmatprep.subr.mxu0 0.0
    %1968 = vmatpush1.xpose.msra.mxu0 0.0
    %1969 = vmatprep.subr.mxu0 0.0
    %1970 = vmatpush1.xpose.msra.mxu0 0.0
    %1971 = vmatprep.subr.mxu0 0.0
    %1972 = vmatpush1.xpose.msra.mxu0 0.0
    %1973 = vmatprep.subr.mxu0 0.0
    %1974 = vmatpush1.xpose.msra.mxu0 0.0
    %1975 = vmatprep.subr.mxu0 0.0
    %1976 = vmatpush1.xpose.msra.mxu0 0.0
    %1977 = vmatprep.subr.mxu0 0.0
    %1978 = vmatpush1.xpose.msra.mxu0 0.0
    %1979 = vmatprep.subr.mxu0 0.0
    %1980 = vmatpush1.xpose.msra.mxu0 0.0
    %1981 = vmatprep.subr.mxu0 0.0
    %1982 = vmatpush1.xpose.msra.mxu0 0.0
    %1983 = vmatprep.subr.mxu0 0.0
    %1984 = vmatpush1.xpose.msra.mxu0 0.0
    %1985 = vmatprep.subr.mxu0 0.0
    %1986 = vmatpush1.xpose.msra.mxu0 0.0
    %1987 = vmatprep.subr.mxu0 0.0
    %1988 = vmatpush1.xpose.msra.mxu0 0.0
    %1989 = vmatprep.subr.mxu0 0.0
    %1990 = vmatpush1.xpose.msra.mxu0 0.0
    %1991 = vmatprep.subr.mxu0 0.0
    %1992 = vmatpush1.xpose.msra.mxu0 0.0
    %1993 = vmatprep.subr.mxu0 0.0
    %1994 = vmatpush1.xpose.msra.mxu0 0.0
    %1995 = vmatprep.mubr.f32.mxu0 0.0
    %v1996 = vand.u32 %v1925, 4294901760
    %v1997 = vsub.f32 %v1925, %v1996
    %v1998 = vand.u32 %v1997, 4294901760
    %v1999 = vsub.f32 %v1997, %v1998
    %v2000 = vand.u32 %v1999, 4294901760
    %2001 = vmatmul.mubr.f32.gmra.mrb[0].mxu0 %v2000
    %v2002 = vpop.f32.mrb[0].mxu0
    %v2003 = vadd.f32 0.0, %v2002
    %v2004 = vpop.f32.mrb[0].mxu0
    %2005 = vdwg.mxu0
    %2006 = vmatprep.subr.mxu0 0.0
    %v2007 = vand.u32 %v936, 4294901760
    %v2008 = vsub.f32 %v936, %v2007
    %v2009 = vand.u32 %v2008, 4294901760
    %v2010 = vsub.f32 %v2008, %v2009
    %v2011 = vand.u32 %v2010, 4294901760
    %2012 = vmatpush1.xpose.msra.mxu0 %v2011
    %2013 = vmatprep.subr.mxu0 0.0
    %v2014 = vand.u32 %v939, 4294901760
    %v2015 = vsub.f32 %v939, %v2014
    %v2016 = vand.u32 %v2015, 4294901760
    %v2017 = vsub.f32 %v2015, %v2016
    %v2018 = vand.u32 %v2017, 4294901760
    %2019 = vmatpush1.xpose.msra.mxu0 %v2018
    %2020 = vmatprep.subr.mxu0 0.0
    %v2021 = vand.u32 %v942, 4294901760
    %v2022 = vsub.f32 %v942, %v2021
    %v2023 = vand.u32 %v2022, 4294901760
    %v2024 = vsub.f32 %v2022, %v2023
    %v2025 = vand.u32 %v2024, 4294901760
    %2026 = vmatpush1.xpose.msra.mxu0 %v2025
    %2027 = vmatprep.subr.mxu0 0.0
    %v2028 = vand.u32 %v945, 4294901760
    %v2029 = vsub.f32 %v945, %v2028
    %v2030 = vand.u32 %v2029, 4294901760
    %v2031 = vsub.f32 %v2029, %v2030
    %v2032 = vand.u32 %v2031, 4294901760
    %2033 = vmatpush1.xpose.msra.mxu0 %v2032
    %2034 = vmatprep.subr.mxu0 0.0
    %2035 = vmatpush1.xpose.msra.mxu0 0.0
    %2036 = vmatprep.subr.mxu0 0.0
    %2037 = vmatpush1.xpose.msra.mxu0 0.0
    %2038 = vmatprep.subr.mxu0 0.0
    %2039 = vmatpush1.xpose.msra.mxu0 0.0
    %2040 = vmatprep.subr.mxu0 0.0
    %2041 = vmatpush1.xpose.msra.mxu0 0.0
    %2042 = vmatprep.subr.mxu0 0.0
    %2043 = vmatpush1.xpose.msra.mxu0 0.0
    %2044 = vmatprep.subr.mxu0 0.0
    %2045 = vmatpush1.xpose.msra.mxu0 0.0
    %2046 = vmatprep.subr.mxu0 0.0
    %2047 = vmatpush1.xpose.msra.mxu0 0.0
    %2048 = vmatprep.subr.mxu0 0.0
    %2049 = vmatpush1.xpose.msra.mxu0 0.0
    %2050 = vmatprep.subr.mxu0 0.0
    %2051 = vmatpush1.xpose.msra.mxu0 0.0
    %2052 = vmatprep.subr.mxu0 0.0
    %2053 = vmatpush1.xpose.msra.mxu0 0.0
    %2054 = vmatprep.subr.mxu0 0.0
    %2055 = vmatpush1.xpose.msra.mxu0 0.0
    %2056 = vmatprep.subr.mxu0 0.0
    %2057 = vmatpush1.xpose.msra.mxu0 0.0
    %2058 = vmatprep.subr.mxu0 0.0
    %2059 = vmatpush1.xpose.msra.mxu0 0.0
    %2060 = vmatprep.subr.mxu0 0.0
    %2061 = vmatpush1.xpose.msra.mxu0 0.0
    %2062 = vmatprep.subr.mxu0 0.0
    %2063 = vmatpush1.xpose.msra.mxu0 0.0
    %2064 = vmatprep.subr.mxu0 0.0
    %2065 = vmatpush1.xpose.msra.mxu0 0.0
    %2066 = vmatprep.subr.mxu0 0.0
    %2067 = vmatpush1.xpose.msra.mxu0 0.0
    %2068 = vmatprep.subr.mxu0 0.0
    %2069 = vmatpush1.xpose.msra.mxu0 0.0
    %2070 = vmatprep.subr.mxu0 0.0
    %2071 = vmatpush1.xpose.msra.mxu0 0.0
    %2072 = vmatprep.subr.mxu0 0.0
    %2073 = vmatpush1.xpose.msra.mxu0 0.0
    %2074 = vmatprep.subr.mxu0 0.0
    %2075 = vmatpush1.xpose.msra.mxu0 0.0
    %2076 = vmatprep.subr.mxu0 0.0
    %2077 = vmatpush1.xpose.msra.mxu0 0.0
    %2078 = vmatprep.subr.mxu0 0.0
    %2079 = vmatpush1.xpose.msra.mxu0 0.0
    %2080 = vmatprep.subr.mxu0 0.0
    %2081 = vmatpush1.xpose.msra.mxu0 0.0
    %2082 = vmatprep.subr.mxu0 0.0
    %2083 = vmatpush1.xpose.msra.mxu0 0.0
    %2084 = vmatprep.subr.mxu0 0.0
    %2085 = vmatpush1.xpose.msra.mxu0 0.0
    %2086 = vmatprep.subr.mxu0 0.0
    %2087 = vmatpush1.xpose.msra.mxu0 0.0
    %2088 = vmatprep.subr.mxu0 0.0
    %2089 = vmatpush1.xpose.msra.mxu0 0.0
    %2090 = vmatprep.mubr.f32.mxu0 0.0
    %v2091 = vand.u32 %v1925, 4294901760
    %2092 = vmatmul.mubr.f32.gmra.mrb[0].mxu0 %v2091
    %v2093 = vpop.f32.mrb[0].mxu0
    %v2094 = vadd.f32 %v2003, %v2093
    %v2095 = vpop.f32.mrb[0].mxu0
    %2096 = vdwg.mxu0
    %2097 = vmatprep.subr.mxu0 0.0
    %v2098 = vand.u32 %v936, 4294901760
    %v2099 = vsub.f32 %v936, %v2098
    %2100 = vmatpush1.xpose.msra.mxu0 %v2099
    %2101 = vmatprep.subr.mxu0 0.0
    %v2102 = vand.u32 %v939, 4294901760
    %v2103 = vsub.f32 %v939, %v2102
    %2104 = vmatpush1.xpose.msra.mxu0 %v2103
    %2105 = vmatprep.subr.mxu0 0.0
    %v2106 = vand.u32 %v942, 4294901760
    %v2107 = vsub.f32 %v942, %v2106
    %2108 = vmatpush1.xpose.msra.mxu0 %v2107
    %2109 = vmatprep.subr.mxu0 0.0
    %v2110 = vand.u32 %v945, 4294901760
    %v2111 = vsub.f32 %v945, %v2110
    %2112 = vmatpush1.xpose.msra.mxu0 %v2111
    %2113 = vmatprep.subr.mxu0 0.0
    %2114 = vmatpush1.xpose.msra.mxu0 0.0
    %2115 = vmatprep.subr.mxu0 0.0
    %2116 = vmatpush1.xpose.msra.mxu0 0.0
    %2117 = vmatprep.subr.mxu0 0.0
    %2118 = vmatpush1.xpose.msra.mxu0 0.0
    %2119 = vmatprep.subr.mxu0 0.0
    %2120 = vmatpush1.xpose.msra.mxu0 0.0
    %2121 = vmatprep.subr.mxu0 0.0
    %2122 = vmatpush1.xpose.msra.mxu0 0.0
    %2123 = vmatprep.subr.mxu0 0.0
    %2124 = vmatpush1.xpose.msra.mxu0 0.0
    %2125 = vmatprep.subr.mxu0 0.0
    %2126 = vmatpush1.xpose.msra.mxu0 0.0
    %2127 = vmatprep.subr.mxu0 0.0
    %2128 = vmatpush1.xpose.msra.mxu0 0.0
    %2129 = vmatprep.subr.mxu0 0.0
    %2130 = vmatpush1.xpose.msra.mxu0 0.0
    %2131 = vmatprep.subr.mxu0 0.0
    %2132 = vmatpush1.xpose.msra.mxu0 0.0
    %2133 = vmatprep.subr.mxu0 0.0
    %2134 = vmatpush1.xpose.msra.mxu0 0.0
    %2135 = vmatprep.subr.mxu0 0.0
    %2136 = vmatpush1.xpose.msra.mxu0 0.0
    %2137 = vmatprep.subr.mxu0 0.0
    %2138 = vmatpush1.xpose.msra.mxu0 0.0
    %2139 = vmatprep.subr.mxu0 0.0
    %2140 = vmatpush1.xpose.msra.mxu0 0.0
    %2141 = vmatprep.subr.mxu0 0.0
    %2142 = vmatpush1.xpose.msra.mxu0 0.0
    %2143 = vmatprep.subr.mxu0 0.0
    %2144 = vmatpush1.xpose.msra.mxu0 0.0
    %2145 = vmatprep.subr.mxu0 0.0
    %2146 = vmatpush1.xpose.msra.mxu0 0.0
    %2147 = vmatprep.subr.mxu0 0.0
    %2148 = vmatpush1.xpose.msra.mxu0 0.0
    %2149 = vmatprep.subr.mxu0 0.0
    %2150 = vmatpush1.xpose.msra.mxu0 0.0
    %2151 = vmatprep.subr.mxu0 0.0
    %2152 = vmatpush1.xpose.msra.mxu0 0.0
    %2153 = vmatprep.subr.mxu0 0.0
    %2154 = vmatpush1.xpose.msra.mxu0 0.0
    %2155 = vmatprep.subr.mxu0 0.0
    %2156 = vmatpush1.xpose.msra.mxu0 0.0
    %2157 = vmatprep.subr.mxu0 0.0
    %2158 = vmatpush1.xpose.msra.mxu0 0.0
    %2159 = vmatprep.subr.mxu0 0.0
    %2160 = vmatpush1.xpose.msra.mxu0 0.0
    %2161 = vmatprep.subr.mxu0 0.0
    %2162 = vmatpush1.xpose.msra.mxu0 0.0
    %2163 = vmatprep.subr.mxu0 0.0
    %2164 = vmatpush1.xpose.msra.mxu0 0.0
    %2165 = vmatprep.subr.mxu0 0.0
    %2166 = vmatpush1.xpose.msra.mxu0 0.0
    %2167 = vmatprep.subr.mxu0 0.0
    %2168 = vmatpush1.xpose.msra.mxu0 0.0
    %2169 = vmatprep.mubr.f32.mxu0 0.0
    %v2170 = vand.u32 %v1925, 4294901760
    %v2171 = vsub.f32 %v1925, %v2170
    %2172 = vmatmul.mubr.f32.gmra.mrb[0].mxu0 %v2171
    %v2173 = vpop.f32.mrb[0].mxu0
    %v2174 = vadd.f32 %v2094, %v2173
    %v2175 = vpop.f32.mrb[0].mxu0
    %2176 = vdwg.mxu0
    %2177 = vmatprep.subr.mxu0 0.0
    %v2178 = vand.u32 %v936, 4294901760
    %2179 = vmatpush1.xpose.msra.mxu0 %v2178
    %2180 = vmatprep.subr.mxu0 0.0
    %v2181 = vand.u32 %v939, 4294901760
    %2182 = vmatpush1.xpose.msra.mxu0 %v2181
    %2183 = vmatprep.subr.mxu0 0.0
    %v2184 = vand.u32 %v942, 4294901760
    %2185 = vmatpush1.xpose.msra.mxu0 %v2184
    %2186 = vmatprep.subr.mxu0 0.0
    %v2187 = vand.u32 %v945, 4294901760
    %2188 = vmatpush1.xpose.msra.mxu0 %v2187
    %2189 = vmatprep.subr.mxu0 0.0
    %2190 = vmatpush1.xpose.msra.mxu0 0.0
    %2191 = vmatprep.subr.mxu0 0.0
    %2192 = vmatpush1.xpose.msra.mxu0 0.0
    %2193 = vmatprep.subr.mxu0 0.0
    %2194 = vmatpush1.xpose.msra.mxu0 0.0
    %2195 = vmatprep.subr.mxu0 0.0
    %2196 = vmatpush1.xpose.msra.mxu0 0.0
    %2197 = vmatprep.subr.mxu0 0.0
    %2198 = vmatpush1.xpose.msra.mxu0 0.0
    %2199 = vmatprep.subr.mxu0 0.0
    %2200 = vmatpush1.xpose.msra.mxu0 0.0
    %2201 = vmatprep.subr.mxu0 0.0
    %2202 = vmatpush1.xpose.msra.mxu0 0.0
    %2203 = vmatprep.subr.mxu0 0.0
    %2204 = vmatpush1.xpose.msra.mxu0 0.0
    %2205 = vmatprep.subr.mxu0 0.0
    %2206 = vmatpush1.xpose.msra.mxu0 0.0
    %2207 = vmatprep.subr.mxu0 0.0
    %2208 = vmatpush1.xpose.msra.mxu0 0.0
    %2209 = vmatprep.subr.mxu0 0.0
    %2210 = vmatpush1.xpose.msra.mxu0 0.0
    %2211 = vmatprep.subr.mxu0 0.0
    %2212 = vmatpush1.xpose.msra.mxu0 0.0
    %2213 = vmatprep.subr.mxu0 0.0
    %2214 = vmatpush1.xpose.msra.mxu0 0.0
    %2215 = vmatprep.subr.mxu0 0.0
    %2216 = vmatpush1.xpose.msra.mxu0 0.0
    %2217 = vmatprep.subr.mxu0 0.0
    %2218 = vmatpush1.xpose.msra.mxu0 0.0
    %2219 = vmatprep.subr.mxu0 0.0
    %2220 = vmatpush1.xpose.msra.mxu0 0.0
    %2221 = vmatprep.subr.mxu0 0.0
    %2222 = vmatpush1.xpose.msra.mxu0 0.0
    %2223 = vmatprep.subr.mxu0 0.0
    %2224 = vmatpush1.xpose.msra.mxu0 0.0
    %2225 = vmatprep.subr.mxu0 0.0
    %2226 = vmatpush1.xpose.msra.mxu0 0.0
    %2227 = vmatprep.subr.mxu0 0.0
    %2228 = vmatpush1.xpose.msra.mxu0 0.0
    %2229 = vmatprep.subr.mxu0 0.0
    %2230 = vmatpush1.xpose.msra.mxu0 0.0
    %2231 = vmatprep.subr.mxu0 0.0
    %2232 = vmatpush1.xpose.msra.mxu0 0.0
    %2233 = vmatprep.subr.mxu0 0.0
    %2234 = vmatpush1.xpose.msra.mxu0 0.0
    %2235 = vmatprep.subr.mxu0 0.0
    %2236 = vmatpush1.xpose.msra.mxu0 0.0
    %2237 = vmatprep.subr.mxu0 0.0
    %2238 = vmatpush1.xpose.msra.mxu0 0.0
    %2239 = vmatprep.subr.mxu0 0.0
    %2240 = vmatpush1.xpose.msra.mxu0 0.0
    %2241 = vmatprep.subr.mxu0 0.0
    %2242 = vmatpush1.xpose.msra.mxu0 0.0
    %2243 = vmatprep.subr.mxu0 0.0
    %2244 = vmatpush1.xpose.msra.mxu0 0.0
    %2245 = vmatprep.mubr.f32.mxu0 0.0
    %v2246 = vand.u32 %v1925, 4294901760
    %v2247 = vsub.f32 %v1925, %v2246
    %v2248 = vand.u32 %v2247, 4294901760
    %2249 = vmatmul.mubr.f32.gmra.mrb[0].mxu0 %v2248
    %v2250 = vpop.f32.mrb[0].mxu0
    %v2251 = vadd.f32 %v2174, %v2250
    %v2252 = vpop.f32.mrb[0].mxu0
    %2253 = vdwg.mxu0
    %2254 = vmatprep.subr.mxu0 0.0
    %v2255 = vand.u32 %v936, 4294901760
    %v2256 = vsub.f32 %v936, %v2255
    %v2257 = vand.u32 %v2256, 4294901760
    %2258 = vmatpush1.xpose.msra.mxu0 %v2257
    %2259 = vmatprep.subr.mxu0 0.0
    %v2260 = vand.u32 %v939, 4294901760
    %v2261 = vsub.f32 %v939, %v2260
    %v2262 = vand.u32 %v2261, 4294901760
    %2263 = vmatpush1.xpose.msra.mxu0 %v2262
    %2264 = vmatprep.subr.mxu0 0.0
    %v2265 = vand.u32 %v942, 4294901760
    %v2266 = vsub.f32 %v942, %v2265
    %v2267 = vand.u32 %v2266, 4294901760
    %2268 = vmatpush1.xpose.msra.mxu0 %v2267
    %2269 = vmatprep.subr.mxu0 0.0
    %v2270 = vand.u32 %v945, 4294901760
    %v2271 = vsub.f32 %v945, %v2270
    %v2272 = vand.u32 %v2271, 4294901760
    %2273 = vmatpush1.xpose.msra.mxu0 %v2272
    %2274 = vmatprep.subr.mxu0 0.0
    %2275 = vmatpush1.xpose.msra.mxu0 0.0
    %2276 = vmatprep.subr.mxu0 0.0
    %2277 = vmatpush1.xpose.msra.mxu0 0.0
    %2278 = vmatprep.subr.mxu0 0.0
    %2279 = vmatpush1.xpose.msra.mxu0 0.0
    %2280 = vmatprep.subr.mxu0 0.0
    %2281 = vmatpush1.xpose.msra.mxu0 0.0
    %2282 = vmatprep.subr.mxu0 0.0
    %2283 = vmatpush1.xpose.msra.mxu0 0.0
    %2284 = vmatprep.subr.mxu0 0.0
    %2285 = vmatpush1.xpose.msra.mxu0 0.0
    %2286 = vmatprep.subr.mxu0 0.0
    %2287 = vmatpush1.xpose.msra.mxu0 0.0
    %2288 = vmatprep.subr.mxu0 0.0
    %2289 = vmatpush1.xpose.msra.mxu0 0.0
    %2290 = vmatprep.subr.mxu0 0.0
    %2291 = vmatpush1.xpose.msra.mxu0 0.0
    %2292 = vmatprep.subr.mxu0 0.0
    %2293 = vmatpush1.xpose.msra.mxu0 0.0
    %2294 = vmatprep.subr.mxu0 0.0
    %2295 = vmatpush1.xpose.msra.mxu0 0.0
    %2296 = vmatprep.subr.mxu0 0.0
    %2297 = vmatpush1.xpose.msra.mxu0 0.0
    %2298 = vmatprep.subr.mxu0 0.0
    %2299 = vmatpush1.xpose.msra.mxu0 0.0
    %2300 = vmatprep.subr.mxu0 0.0
    %2301 = vmatpush1.xpose.msra.mxu0 0.0
    %2302 = vmatprep.subr.mxu0 0.0
    %2303 = vmatpush1.xpose.msra.mxu0 0.0
    %2304 = vmatprep.subr.mxu0 0.0
    %2305 = vmatpush1.xpose.msra.mxu0 0.0
    %2306 = vmatprep.subr.mxu0 0.0
    %2307 = vmatpush1.xpose.msra.mxu0 0.0
    %2308 = vmatprep.subr.mxu0 0.0
    %2309 = vmatpush1.xpose.msra.mxu0 0.0
    %2310 = vmatprep.subr.mxu0 0.0
    %2311 = vmatpush1.xpose.msra.mxu0 0.0
    %2312 = vmatprep.subr.mxu0 0.0
    %2313 = vmatpush1.xpose.msra.mxu0 0.0
    %2314 = vmatprep.subr.mxu0 0.0
    %2315 = vmatpush1.xpose.msra.mxu0 0.0
    %2316 = vmatprep.subr.mxu0 0.0
    %2317 = vmatpush1.xpose.msra.mxu0 0.0
    %2318 = vmatprep.subr.mxu0 0.0
    %2319 = vmatpush1.xpose.msra.mxu0 0.0
    %2320 = vmatprep.subr.mxu0 0.0
    %2321 = vmatpush1.xpose.msra.mxu0 0.0
    %2322 = vmatprep.subr.mxu0 0.0
    %2323 = vmatpush1.xpose.msra.mxu0 0.0
    %2324 = vmatprep.subr.mxu0 0.0
    %2325 = vmatpush1.xpose.msra.mxu0 0.0
    %2326 = vmatprep.subr.mxu0 0.0
    %2327 = vmatpush1.xpose.msra.mxu0 0.0
    %2328 = vmatprep.subr.mxu0 0.0
    %2329 = vmatpush1.xpose.msra.mxu0 0.0
    %2330 = vmatprep.mubr.f32.mxu0 0.0
    %v2331 = vand.u32 %v1925, 4294901760
    %2332 = vmatmul.mubr.f32.gmra.mrb[0].mxu0 %v2331
    %v2333 = vpop.f32.mrb[0].mxu0
    %v2334 = vadd.f32 %v2251, %v2333
    %v2335 = vpop.f32.mrb[0].mxu0
    %2336 = vdwg.mxu0
    %2337 = vmatprep.subr.mxu0 0.0
    %v2338 = vand.u32 %v936, 4294901760
    %2339 = vmatpush1.xpose.msra.mxu0 %v2338
    %2340 = vmatprep.subr.mxu0 0.0
    %v2341 = vand.u32 %v939, 4294901760
    %2342 = vmatpush1.xpose.msra.mxu0 %v2341
    %2343 = vmatprep.subr.mxu0 0.0
    %v2344 = vand.u32 %v942, 4294901760
    %2345 = vmatpush1.xpose.msra.mxu0 %v2344
    %2346 = vmatprep.subr.mxu0 0.0
    %v2347 = vand.u32 %v945, 4294901760
    %2348 = vmatpush1.xpose.msra.mxu0 %v2347
    %2349 = vmatprep.subr.mxu0 0.0
    %2350 = vmatpush1.xpose.msra.mxu0 0.0
    %2351 = vmatprep.subr.mxu0 0.0
    %2352 = vmatpush1.xpose.msra.mxu0 0.0
    %2353 = vmatprep.subr.mxu0 0.0
    %2354 = vmatpush1.xpose.msra.mxu0 0.0
    %2355 = vmatprep.subr.mxu0 0.0
    %2356 = vmatpush1.xpose.msra.mxu0 0.0
    %2357 = vmatprep.subr.mxu0 0.0
    %2358 = vmatpush1.xpose.msra.mxu0 0.0
    %2359 = vmatprep.subr.mxu0 0.0
    %2360 = vmatpush1.xpose.msra.mxu0 0.0
    %2361 = vmatprep.subr.mxu0 0.0
    %2362 = vmatpush1.xpose.msra.mxu0 0.0
    %2363 = vmatprep.subr.mxu0 0.0
    %2364 = vmatpush1.xpose.msra.mxu0 0.0
    %2365 = vmatprep.subr.mxu0 0.0
    %2366 = vmatpush1.xpose.msra.mxu0 0.0
    %2367 = vmatprep.subr.mxu0 0.0
    %2368 = vmatpush1.xpose.msra.mxu0 0.0
    %2369 = vmatprep.subr.mxu0 0.0
    %2370 = vmatpush1.xpose.msra.mxu0 0.0
    %2371 = vmatprep.subr.mxu0 0.0
    %2372 = vmatpush1.xpose.msra.mxu0 0.0
    %2373 = vmatprep.subr.mxu0 0.0
    %2374 = vmatpush1.xpose.msra.mxu0 0.0
    %2375 = vmatprep.subr.mxu0 0.0
    %2376 = vmatpush1.xpose.msra.mxu0 0.0
    %2377 = vmatprep.subr.mxu0 0.0
    %2378 = vmatpush1.xpose.msra.mxu0 0.0
    %2379 = vmatprep.subr.mxu0 0.0
    %2380 = vmatpush1.xpose.msra.mxu0 0.0
    %2381 = vmatprep.subr.mxu0 0.0
    %2382 = vmatpush1.xpose.msra.mxu0 0.0
    %2383 = vmatprep.subr.mxu0 0.0
    %2384 = vmatpush1.xpose.msra.mxu0 0.0
    %2385 = vmatprep.subr.mxu0 0.0
    %2386 = vmatpush1.xpose.msra.mxu0 0.0
    %2387 = vmatprep.subr.mxu0 0.0
    %2388 = vmatpush1.xpose.msra.mxu0 0.0
    %2389 = vmatprep.subr.mxu0 0.0
    %2390 = vmatpush1.xpose.msra.mxu0 0.0
    %2391 = vmatprep.subr.mxu0 0.0
    %2392 = vmatpush1.xpose.msra.mxu0 0.0
    %2393 = vmatprep.subr.mxu0 0.0
    %2394 = vmatpush1.xpose.msra.mxu0 0.0
    %2395 = vmatprep.subr.mxu0 0.0
    %2396 = vmatpush1.xpose.msra.mxu0 0.0
    %2397 = vmatprep.subr.mxu0 0.0
    %2398 = vmatpush1.xpose.msra.mxu0 0.0
    %2399 = vmatprep.subr.mxu0 0.0
    %2400 = vmatpush1.xpose.msra.mxu0 0.0
    %2401 = vmatprep.subr.mxu0 0.0
    %2402 = vmatpush1.xpose.msra.mxu0 0.0
    %2403 = vmatprep.subr.mxu0 0.0
    %2404 = vmatpush1.xpose.msra.mxu0 0.0
    %2405 = vmatprep.mubr.f32.mxu0 0.0
    %v2406 = vand.u32 %v1925, 4294901760
    %2407 = vmatmul.mubr.f32.gmra.mrb[0].mxu0 %v2406
    %v2408 = vpop.f32.mrb[0].mxu0
    %v2409 = vadd.f32 %v2334, %v2408
    %v2410 = vpop.f32.mrb[0].mxu0
    %2411 = vdwg.mxu0
    %v2412 = vadd.f32 %v894, %v2409
    %v2413 = vtanh.pop %v2412
    %v2415 = vsel %vm104, %v2413, 0
    %2417 = vmatprep.subr.mxu0 0.0
    %v2418 = vand.u32 %v936, 4294901760
    %2419 = vmatpush1.xpose.msra.mxu0 %v2418
    %2420 = vmatprep.subr.mxu0 0.0
    %v2421 = vand.u32 %v939, 4294901760
    %2422 = vmatpush1.xpose.msra.mxu0 %v2421
    %2423 = vmatprep.subr.mxu0 0.0
    %v2424 = vand.u32 %v942, 4294901760
    %2425 = vmatpush1.xpose.msra.mxu0 %v2424
    %2426 = vmatprep.subr.mxu0 0.0
    %v2427 = vand.u32 %v945, 4294901760
    %2428 = vmatpush1.xpose.msra.mxu0 %v2427
    %2429 = vmatprep.subr.mxu0 0.0
    %2430 = vmatpush1.xpose.msra.mxu0 0.0
    %2431 = vmatprep.subr.mxu0 0.0
    %2432 = vmatpush1.xpose.msra.mxu0 0.0
    %2433 = vmatprep.subr.mxu0 0.0
    %2434 = vmatpush1.xpose.msra.mxu0 0.0
    %2435 = vmatprep.subr.mxu0 0.0
    %2436 = vmatpush1.xpose.msra.mxu0 0.0
    %2437 = vmatprep.subr.mxu0 0.0
    %2438 = vmatpush1.xpose.msra.mxu0 0.0
    %2439 = vmatprep.subr.mxu0 0.0
    %2440 = vmatpush1.xpose.msra.mxu0 0.0
    %2441 = vmatprep.subr.mxu0 0.0
    %2442 = vmatpush1.xpose.msra.mxu0 0.0
    %2443 = vmatprep.subr.mxu0 0.0
    %2444 = vmatpush1.xpose.msra.mxu0 0.0
    %2445 = vmatprep.subr.mxu0 0.0
    %2446 = vmatpush1.xpose.msra.mxu0 0.0
    %2447 = vmatprep.subr.mxu0 0.0
    %2448 = vmatpush1.xpose.msra.mxu0 0.0
    %2449 = vmatprep.subr.mxu0 0.0
    %2450 = vmatpush1.xpose.msra.mxu0 0.0
    %2451 = vmatprep.subr.mxu0 0.0
    %2452 = vmatpush1.xpose.msra.mxu0 0.0
    %2453 = vmatprep.subr.mxu0 0.0
    %2454 = vmatpush1.xpose.msra.mxu0 0.0
    %2455 = vmatprep.subr.mxu0 0.0
    %2456 = vmatpush1.xpose.msra.mxu0 0.0
    %2457 = vmatprep.subr.mxu0 0.0
    %2458 = vmatpush1.xpose.msra.mxu0 0.0
    %2459 = vmatprep.subr.mxu0 0.0
    %2460 = vmatpush1.xpose.msra.mxu0 0.0
    %2461 = vmatprep.subr.mxu0 0.0
    %2462 = vmatpush1.xpose.msra.mxu0 0.0
    %2463 = vmatprep.subr.mxu0 0.0
    %2464 = vmatpush1.xpose.msra.mxu0 0.0
    %2465 = vmatprep.subr.mxu0 0.0
    %2466 = vmatpush1.xpose.msra.mxu0 0.0
    %2467 = vmatprep.subr.mxu0 0.0
    %2468 = vmatpush1.xpose.msra.mxu0 0.0
    %2469 = vmatprep.subr.mxu0 0.0
    %2470 = vmatpush1.xpose.msra.mxu0 0.0
    %2471 = vmatprep.subr.mxu0 0.0
    %2472 = vmatpush1.xpose.msra.mxu0 0.0
    %2473 = vmatprep.subr.mxu0 0.0
    %2474 = vmatpush1.xpose.msra.mxu0 0.0
    %2475 = vmatprep.subr.mxu0 0.0
    %2476 = vmatpush1.xpose.msra.mxu0 0.0
    %2477 = vmatprep.subr.mxu0 0.0
    %2478 = vmatpush1.xpose.msra.mxu0 0.0
    %2479 = vmatprep.subr.mxu0 0.0
    %2480 = vmatpush1.xpose.msra.mxu0 0.0
    %2481 = vmatprep.subr.mxu0 0.0
    %2482 = vmatpush1.xpose.msra.mxu0 0.0
    %2483 = vmatprep.subr.mxu0 0.0
    %2484 = vmatpush1.xpose.msra.mxu0 0.0
    %2485 = vmatprep.mubr.f32.mxu0 0.0
    %v2486 = vand.u32 %v2415, 4294901760
    %v2487 = vsub.f32 %v2415, %v2486
    %v2488 = vand.u32 %v2487, 4294901760
    %v2489 = vsub.f32 %v2487, %v2488
    %v2490 = vand.u32 %v2489, 4294901760
    %2491 = vmatmul.mubr.f32.gmra.mrb[0].mxu0 %v2490
    %v2492 = vpop.f32.mrb[0].mxu0
    %v2493 = vadd.f32 0.0, %v2492
    %v2494 = vpop.f32.mrb[0].mxu0
    %2495 = vdwg.mxu0
    %2496 = vmatprep.subr.mxu0 0.0
    %v2497 = vand.u32 %v936, 4294901760
    %v2498 = vsub.f32 %v936, %v2497
    %v2499 = vand.u32 %v2498, 4294901760
    %v2500 = vsub.f32 %v2498, %v2499
    %v2501 = vand.u32 %v2500, 4294901760
    %2502 = vmatpush1.xpose.msra.mxu0 %v2501
    %2503 = vmatprep.subr.mxu0 0.0
    %v2504 = vand.u32 %v939, 4294901760
    %v2505 = vsub.f32 %v939, %v2504
    %v2506 = vand.u32 %v2505, 4294901760
    %v2507 = vsub.f32 %v2505, %v2506
    %v2508 = vand.u32 %v2507, 4294901760
    %2509 = vmatpush1.xpose.msra.mxu0 %v2508
    %2510 = vmatprep.subr.mxu0 0.0
    %v2511 = vand.u32 %v942, 4294901760
    %v2512 = vsub.f32 %v942, %v2511
    %v2513 = vand.u32 %v2512, 4294901760
    %v2514 = vsub.f32 %v2512, %v2513
    %v2515 = vand.u32 %v2514, 4294901760
    %2516 = vmatpush1.xpose.msra.mxu0 %v2515
    %2517 = vmatprep.subr.mxu0 0.0
    %v2518 = vand.u32 %v945, 4294901760
    %v2519 = vsub.f32 %v945, %v2518
    %v2520 = vand.u32 %v2519, 4294901760
    %v2521 = vsub.f32 %v2519, %v2520
    %v2522 = vand.u32 %v2521, 4294901760
    %2523 = vmatpush1.xpose.msra.mxu0 %v2522
    %2524 = vmatprep.subr.mxu0 0.0
    %2525 = vmatpush1.xpose.msra.mxu0 0.0
    %2526 = vmatprep.subr.mxu0 0.0
    %2527 = vmatpush1.xpose.msra.mxu0 0.0
    %2528 = vmatprep.subr.mxu0 0.0
    %2529 = vmatpush1.xpose.msra.mxu0 0.0
    %2530 = vmatprep.subr.mxu0 0.0
    %2531 = vmatpush1.xpose.msra.mxu0 0.0
    %2532 = vmatprep.subr.mxu0 0.0
    %2533 = vmatpush1.xpose.msra.mxu0 0.0
    %2534 = vmatprep.subr.mxu0 0.0
    %2535 = vmatpush1.xpose.msra.mxu0 0.0
    %2536 = vmatprep.subr.mxu0 0.0
    %2537 = vmatpush1.xpose.msra.mxu0 0.0
    %2538 = vmatprep.subr.mxu0 0.0
    %2539 = vmatpush1.xpose.msra.mxu0 0.0
    %2540 = vmatprep.subr.mxu0 0.0
    %2541 = vmatpush1.xpose.msra.mxu0 0.0
    %2542 = vmatprep.subr.mxu0 0.0
    %2543 = vmatpush1.xpose.msra.mxu0 0.0
    %2544 = vmatprep.subr.mxu0 0.0
    %2545 = vmatpush1.xpose.msra.mxu0 0.0
    %2546 = vmatprep.subr.mxu0 0.0
    %2547 = vmatpush1.xpose.msra.mxu0 0.0
    %2548 = vmatprep.subr.mxu0 0.0
    %2549 = vmatpush1.xpose.msra.mxu0 0.0
    %2550 = vmatprep.subr.mxu0 0.0
    %2551 = vmatpush1.xpose.msra.mxu0 0.0
    %2552 = vmatprep.subr.mxu0 0.0
    %2553 = vmatpush1.xpose.msra.mxu0 0.0
    %2554 = vmatprep.subr.mxu0 0.0
    %2555 = vmatpush1.xpose.msra.mxu0 0.0
    %2556 = vmatprep.subr.mxu0 0.0
    %2557 = vmatpush1.xpose.msra.mxu0 0.0
    %2558 = vmatprep.subr.mxu0 0.0
    %2559 = vmatpush1.xpose.msra.mxu0 0.0
    %2560 = vmatprep.subr.mxu0 0.0
    %2561 = vmatpush1.xpose.msra.mxu0 0.0
    %2562 = vmatprep.subr.mxu0 0.0
    %2563 = vmatpush1.xpose.msra.mxu0 0.0
    %2564 = vmatprep.subr.mxu0 0.0
    %2565 = vmatpush1.xpose.msra.mxu0 0.0
    %2566 = vmatprep.subr.mxu0 0.0
    %2567 = vmatpush1.xpose.msra.mxu0 0.0
    %2568 = vmatprep.subr.mxu0 0.0
    %2569 = vmatpush1.xpose.msra.mxu0 0.0
    %2570 = vmatprep.subr.mxu0 0.0
    %2571 = vmatpush1.xpose.msra.mxu0 0.0
    %2572 = vmatprep.subr.mxu0 0.0
    %2573 = vmatpush1.xpose.msra.mxu0 0.0
    %2574 = vmatprep.subr.mxu0 0.0
    %2575 = vmatpush1.xpose.msra.mxu0 0.0
    %2576 = vmatprep.subr.mxu0 0.0
    %2577 = vmatpush1.xpose.msra.mxu0 0.0
    %2578 = vmatprep.subr.mxu0 0.0
    %2579 = vmatpush1.xpose.msra.mxu0 0.0
    %2580 = vmatprep.mubr.f32.mxu0 0.0
    %v2581 = vand.u32 %v2415, 4294901760
    %2582 = vmatmul.mubr.f32.gmra.mrb[0].mxu0 %v2581
    %v2583 = vpop.f32.mrb[0].mxu0
    %v2584 = vadd.f32 %v2493, %v2583
    %v2585 = vpop.f32.mrb[0].mxu0
    %2586 = vdwg.mxu0
    %2587 = vmatprep.subr.mxu0 0.0
    %v2588 = vand.u32 %v936, 4294901760
    %v2589 = vsub.f32 %v936, %v2588
    %2590 = vmatpush1.xpose.msra.mxu0 %v2589
    %2591 = vmatprep.subr.mxu0 0.0
    %v2592 = vand.u32 %v939, 4294901760
    %v2593 = vsub.f32 %v939, %v2592
    %2594 = vmatpush1.xpose.msra.mxu0 %v2593
    %2595 = vmatprep.subr.mxu0 0.0
    %v2596 = vand.u32 %v942, 4294901760
    %v2597 = vsub.f32 %v942, %v2596
    %2598 = vmatpush1.xpose.msra.mxu0 %v2597
    %2599 = vmatprep.subr.mxu0 0.0
    %v2600 = vand.u32 %v945, 4294901760
    %v2601 = vsub.f32 %v945, %v2600
    %2602 = vmatpush1.xpose.msra.mxu0 %v2601
    %2603 = vmatprep.subr.mxu0 0.0
    %2604 = vmatpush1.xpose.msra.mxu0 0.0
    %2605 = vmatprep.subr.mxu0 0.0
    %2606 = vmatpush1.xpose.msra.mxu0 0.0
    %2607 = vmatprep.subr.mxu0 0.0
    %2608 = vmatpush1.xpose.msra.mxu0 0.0
    %2609 = vmatprep.subr.mxu0 0.0
    %2610 = vmatpush1.xpose.msra.mxu0 0.0
    %2611 = vmatprep.subr.mxu0 0.0
    %2612 = vmatpush1.xpose.msra.mxu0 0.0
    %2613 = vmatprep.subr.mxu0 0.0
    %2614 = vmatpush1.xpose.msra.mxu0 0.0
    %2615 = vmatprep.subr.mxu0 0.0
    %2616 = vmatpush1.xpose.msra.mxu0 0.0
    %2617 = vmatprep.subr.mxu0 0.0
    %2618 = vmatpush1.xpose.msra.mxu0 0.0
    %2619 = vmatprep.subr.mxu0 0.0
    %2620 = vmatpush1.xpose.msra.mxu0 0.0
    %2621 = vmatprep.subr.mxu0 0.0
    %2622 = vmatpush1.xpose.msra.mxu0 0.0
    %2623 = vmatprep.subr.mxu0 0.0
    %2624 = vmatpush1.xpose.msra.mxu0 0.0
    %2625 = vmatprep.subr.mxu0 0.0
    %2626 = vmatpush1.xpose.msra.mxu0 0.0
    %2627 = vmatprep.subr.mxu0 0.0
    %2628 = vmatpush1.xpose.msra.mxu0 0.0
    %2629 = vmatprep.subr.mxu0 0.0
    %2630 = vmatpush1.xpose.msra.mxu0 0.0
    %2631 = vmatprep.subr.mxu0 0.0
    %2632 = vmatpush1.xpose.msra.mxu0 0.0
    %2633 = vmatprep.subr.mxu0 0.0
    %2634 = vmatpush1.xpose.msra.mxu0 0.0
    %2635 = vmatprep.subr.mxu0 0.0
    %2636 = vmatpush1.xpose.msra.mxu0 0.0
    %2637 = vmatprep.subr.mxu0 0.0
    %2638 = vmatpush1.xpose.msra.mxu0 0.0
    %2639 = vmatprep.subr.mxu0 0.0
    %2640 = vmatpush1.xpose.msra.mxu0 0.0
    %2641 = vmatprep.subr.mxu0 0.0
    %2642 = vmatpush1.xpose.msra.mxu0 0.0
    %2643 = vmatprep.subr.mxu0 0.0
    %2644 = vmatpush1.xpose.msra.mxu0 0.0
    %2645 = vmatprep.subr.mxu0 0.0
    %2646 = vmatpush1.xpose.msra.mxu0 0.0
    %2647 = vmatprep.subr.mxu0 0.0
    %2648 = vmatpush1.xpose.msra.mxu0 0.0
    %2649 = vmatprep.subr.mxu0 0.0
    %2650 = vmatpush1.xpose.msra.mxu0 0.0
    %2651 = vmatprep.subr.mxu0 0.0
    %2652 = vmatpush1.xpose.msra.mxu0 0.0
    %2653 = vmatprep.subr.mxu0 0.0
    %2654 = vmatpush1.xpose.msra.mxu0 0.0
    %2655 = vmatprep.subr.mxu0 0.0
    %2656 = vmatpush1.xpose.msra.mxu0 0.0
    %2657 = vmatprep.subr.mxu0 0.0
    %2658 = vmatpush1.xpose.msra.mxu0 0.0
    %2659 = vmatprep.mubr.f32.mxu0 0.0
    %v2660 = vand.u32 %v2415, 4294901760
    %v2661 = vsub.f32 %v2415, %v2660
    %2662 = vmatmul.mubr.f32.gmra.mrb[0].mxu0 %v2661
    %v2663 = vpop.f32.mrb[0].mxu0
    %v2664 = vadd.f32 %v2584, %v2663
    %v2665 = vpop.f32.mrb[0].mxu0
    %2666 = vdwg.mxu0
    %2667 = vmatprep.subr.mxu0 0.0
    %v2668 = vand.u32 %v936, 4294901760
    %2669 = vmatpush1.xpose.msra.mxu0 %v2668
    %2670 = vmatprep.subr.mxu0 0.0
    %v2671 = vand.u32 %v939, 4294901760
    %2672 = vmatpush1.xpose.msra.mxu0 %v2671
    %2673 = vmatprep.subr.mxu0 0.0
    %v2674 = vand.u32 %v942, 4294901760
    %2675 = vmatpush1.xpose.msra.mxu0 %v2674
    %2676 = vmatprep.subr.mxu0 0.0
    %v2677 = vand.u32 %v945, 4294901760
    %2678 = vmatpush1.xpose.msra.mxu0 %v2677
    %2679 = vmatprep.subr.mxu0 0.0
    %2680 = vmatpush1.xpose.msra.mxu0 0.0
    %2681 = vmatprep.subr.mxu0 0.0
    %2682 = vmatpush1.xpose.msra.mxu0 0.0
    %2683 = vmatprep.subr.mxu0 0.0
    %2684 = vmatpush1.xpose.msra.mxu0 0.0
    %2685 = vmatprep.subr.mxu0 0.0
    %2686 = vmatpush1.xpose.msra.mxu0 0.0
    %2687 = vmatprep.subr.mxu0 0.0
    %2688 = vmatpush1.xpose.msra.mxu0 0.0
    %2689 = vmatprep.subr.mxu0 0.0
    %2690 = vmatpush1.xpose.msra.mxu0 0.0
    %2691 = vmatprep.subr.mxu0 0.0
    %2692 = vmatpush1.xpose.msra.mxu0 0.0
    %2693 = vmatprep.subr.mxu0 0.0
    %2694 = vmatpush1.xpose.msra.mxu0 0.0
    %2695 = vmatprep.subr.mxu0 0.0
    %2696 = vmatpush1.xpose.msra.mxu0 0.0
    %2697 = vmatprep.subr.mxu0 0.0
    %2698 = vmatpush1.xpose.msra.mxu0 0.0
    %2699 = vmatprep.subr.mxu0 0.0
    %2700 = vmatpush1.xpose.msra.mxu0 0.0
    %2701 = vmatprep.subr.mxu0 0.0
    %2702 = vmatpush1.xpose.msra.mxu0 0.0
    %2703 = vmatprep.subr.mxu0 0.0
    %2704 = vmatpush1.xpose.msra.mxu0 0.0
    %2705 = vmatprep.subr.mxu0 0.0
    %2706 = vmatpush1.xpose.msra.mxu0 0.0
    %2707 = vmatprep.subr.mxu0 0.0
    %2708 = vmatpush1.xpose.msra.mxu0 0.0
    %2709 = vmatprep.subr.mxu0 0.0
    %2710 = vmatpush1.xpose.msra.mxu0 0.0
    %2711 = vmatprep.subr.mxu0 0.0
    %2712 = vmatpush1.xpose.msra.mxu0 0.0
    %2713 = vmatprep.subr.mxu0 0.0
    %2714 = vmatpush1.xpose.msra.mxu0 0.0
    %2715 = vmatprep.subr.mxu0 0.0
    %2716 = vmatpush1.xpose.msra.mxu0 0.0
    %2717 = vmatprep.subr.mxu0 0.0
    %2718 = vmatpush1.xpose.msra.mxu0 0.0
    %2719 = vmatprep.subr.mxu0 0.0
    %2720 = vmatpush1.xpose.msra.mxu0 0.0
    %2721 = vmatprep.subr.mxu0 0.0
    %2722 = vmatpush1.xpose.msra.mxu0 0.0
    %2723 = vmatprep.subr.mxu0 0.0
    %2724 = vmatpush1.xpose.msra.mxu0 0.0
    %2725 = vmatprep.subr.mxu0 0.0
    %2726 = vmatpush1.xpose.msra.mxu0 0.0
    %2727 = vmatprep.subr.mxu0 0.0
    %2728 = vmatpush1.xpose.msra.mxu0 0.0
    %2729 = vmatprep.subr.mxu0 0.0
    %2730 = vmatpush1.xpose.msra.mxu0 0.0
    %2731 = vmatprep.subr.mxu0 0.0
    %2732 = vmatpush1.xpose.msra.mxu0 0.0
    %2733 = vmatprep.subr.mxu0 0.0
    %2734 = vmatpush1.xpose.msra.mxu0 0.0
    %2735 = vmatprep.mubr.f32.mxu0 0.0
    %v2736 = vand.u32 %v2415, 4294901760
    %v2737 = vsub.f32 %v2415, %v2736
    %v2738 = vand.u32 %v2737, 4294901760
    %2739 = vmatmul.mubr.f32.gmra.mrb[0].mxu0 %v2738
    %v2740 = vpop.f32.mrb[0].mxu0
    %v2741 = vadd.f32 %v2664, %v2740
    %v2742 = vpop.f32.mrb[0].mxu0
    %2743 = vdwg.mxu0
    %2744 = vmatprep.subr.mxu0 0.0
    %v2745 = vand.u32 %v936, 4294901760
    %v2746 = vsub.f32 %v936, %v2745
    %v2747 = vand.u32 %v2746, 4294901760
    %2748 = vmatpush1.xpose.msra.mxu0 %v2747
    %2749 = vmatprep.subr.mxu0 0.0
    %v2750 = vand.u32 %v939, 4294901760
    %v2751 = vsub.f32 %v939, %v2750
    %v2752 = vand.u32 %v2751, 4294901760
    %2753 = vmatpush1.xpose.msra.mxu0 %v2752
    %2754 = vmatprep.subr.mxu0 0.0
    %v2755 = vand.u32 %v942, 4294901760
    %v2756 = vsub.f32 %v942, %v2755
    %v2757 = vand.u32 %v2756, 4294901760
    %2758 = vmatpush1.xpose.msra.mxu0 %v2757
    %2759 = vmatprep.subr.mxu0 0.0
    %v2760 = vand.u32 %v945, 4294901760
    %v2761 = vsub.f32 %v945, %v2760
    %v2762 = vand.u32 %v2761, 4294901760
    %2763 = vmatpush1.xpose.msra.mxu0 %v2762
    %2764 = vmatprep.subr.mxu0 0.0
    %2765 = vmatpush1.xpose.msra.mxu0 0.0
    %2766 = vmatprep.subr.mxu0 0.0
    %2767 = vmatpush1.xpose.msra.mxu0 0.0
    %2768 = vmatprep.subr.mxu0 0.0
    %2769 = vmatpush1.xpose.msra.mxu0 0.0
    %2770 = vmatprep.subr.mxu0 0.0
    %2771 = vmatpush1.xpose.msra.mxu0 0.0
    %2772 = vmatprep.subr.mxu0 0.0
    %2773 = vmatpush1.xpose.msra.mxu0 0.0
    %2774 = vmatprep.subr.mxu0 0.0
    %2775 = vmatpush1.xpose.msra.mxu0 0.0
    %2776 = vmatprep.subr.mxu0 0.0
    %2777 = vmatpush1.xpose.msra.mxu0 0.0
    %2778 = vmatprep.subr.mxu0 0.0
    %2779 = vmatpush1.xpose.msra.mxu0 0.0
    %2780 = vmatprep.subr.mxu0 0.0
    %2781 = vmatpush1.xpose.msra.mxu0 0.0
    %2782 = vmatprep.subr.mxu0 0.0
    %2783 = vmatpush1.xpose.msra.mxu0 0.0
    %2784 = vmatprep.subr.mxu0 0.0
    %2785 = vmatpush1.xpose.msra.mxu0 0.0
    %2786 = vmatprep.subr.mxu0 0.0
    %2787 = vmatpush1.xpose.msra.mxu0 0.0
    %2788 = vmatprep.subr.mxu0 0.0
    %2789 = vmatpush1.xpose.msra.mxu0 0.0
    %2790 = vmatprep.subr.mxu0 0.0
    %2791 = vmatpush1.xpose.msra.mxu0 0.0
    %2792 = vmatprep.subr.mxu0 0.0
    %2793 = vmatpush1.xpose.msra.mxu0 0.0
    %2794 = vmatprep.subr.mxu0 0.0
    %2795 = vmatpush1.xpose.msra.mxu0 0.0
    %2796 = vmatprep.subr.mxu0 0.0
    %2797 = vmatpush1.xpose.msra.mxu0 0.0
    %2798 = vmatprep.subr.mxu0 0.0
    %2799 = vmatpush1.xpose.msra.mxu0 0.0
    %2800 = vmatprep.subr.mxu0 0.0
    %2801 = vmatpush1.xpose.msra.mxu0 0.0
    %2802 = vmatprep.subr.mxu0 0.0
    %2803 = vmatpush1.xpose.msra.mxu0 0.0
    %2804 = vmatprep.subr.mxu0 0.0
    %2805 = vmatpush1.xpose.msra.mxu0 0.0
    %2806 = vmatprep.subr.mxu0 0.0
    %2807 = vmatpush1.xpose.msra.mxu0 0.0
    %2808 = vmatprep.subr.mxu0 0.0
    %2809 = vmatpush1.xpose.msra.mxu0 0.0
    %2810 = vmatprep.subr.mxu0 0.0
    %2811 = vmatpush1.xpose.msra.mxu0 0.0
    %2812 = vmatprep.subr.mxu0 0.0
    %2813 = vmatpush1.xpose.msra.mxu0 0.0
    %2814 = vmatprep.subr.mxu0 0.0
    %2815 = vmatpush1.xpose.msra.mxu0 0.0
    %2816 = vmatprep.subr.mxu0 0.0
    %2817 = vmatpush1.xpose.msra.mxu0 0.0
    %2818 = vmatprep.subr.mxu0 0.0
    %2819 = vmatpush1.xpose.msra.mxu0 0.0
    %2820 = vmatprep.mubr.f32.mxu0 0.0
    %v2821 = vand.u32 %v2415, 4294901760
    %2822 = vmatmul.mubr.f32.gmra.mrb[0].mxu0 %v2821
    %v2823 = vpop.f32.mrb[0].mxu0
    %v2824 = vadd.f32 %v2741, %v2823
    %v2825 = vpop.f32.mrb[0].mxu0
    %2826 = vdwg.mxu0
    %2827 = vmatprep.subr.mxu0 0.0
    %v2828 = vand.u32 %v936, 4294901760
    %2829 = vmatpush1.xpose.msra.mxu0 %v2828
    %2830 = vmatprep.subr.mxu0 0.0
    %v2831 = vand.u32 %v939, 4294901760
    %2832 = vmatpush1.xpose.msra.mxu0 %v2831
    %2833 = vmatprep.subr.mxu0 0.0
    %v2834 = vand.u32 %v942, 4294901760
    %2835 = vmatpush1.xpose.msra.mxu0 %v2834
    %2836 = vmatprep.subr.mxu0 0.0
    %v2837 = vand.u32 %v945, 4294901760
    %2838 = vmatpush1.xpose.msra.mxu0 %v2837
    %2839 = vmatprep.subr.mxu0 0.0
    %2840 = vmatpush1.xpose.msra.mxu0 0.0
    %2841 = vmatprep.subr.mxu0 0.0
    %2842 = vmatpush1.xpose.msra.mxu0 0.0
    %2843 = vmatprep.subr.mxu0 0.0
    %2844 = vmatpush1.xpose.msra.mxu0 0.0
    %2845 = vmatprep.subr.mxu0 0.0
    %2846 = vmatpush1.xpose.msra.mxu0 0.0
    %2847 = vmatprep.subr.mxu0 0.0
    %2848 = vmatpush1.xpose.msra.mxu0 0.0
    %2849 = vmatprep.subr.mxu0 0.0
    %2850 = vmatpush1.xpose.msra.mxu0 0.0
    %2851 = vmatprep.subr.mxu0 0.0
    %2852 = vmatpush1.xpose.msra.mxu0 0.0
    %2853 = vmatprep.subr.mxu0 0.0
    %2854 = vmatpush1.xpose.msra.mxu0 0.0
    %2855 = vmatprep.subr.mxu0 0.0
    %2856 = vmatpush1.xpose.msra.mxu0 0.0
    %2857 = vmatprep.subr.mxu0 0.0
    %2858 = vmatpush1.xpose.msra.mxu0 0.0
    %2859 = vmatprep.subr.mxu0 0.0
    %2860 = vmatpush1.xpose.msra.mxu0 0.0
    %2861 = vmatprep.subr.mxu0 0.0
    %2862 = vmatpush1.xpose.msra.mxu0 0.0
    %2863 = vmatprep.subr.mxu0 0.0
    %2864 = vmatpush1.xpose.msra.mxu0 0.0
    %2865 = vmatprep.subr.mxu0 0.0
    %2866 = vmatpush1.xpose.msra.mxu0 0.0
    %2867 = vmatprep.subr.mxu0 0.0
    %2868 = vmatpush1.xpose.msra.mxu0 0.0
    %2869 = vmatprep.subr.mxu0 0.0
    %2870 = vmatpush1.xpose.msra.mxu0 0.0
    %2871 = vmatprep.subr.mxu0 0.0
    %2872 = vmatpush1.xpose.msra.mxu0 0.0
    %2873 = vmatprep.subr.mxu0 0.0
    %2874 = vmatpush1.xpose.msra.mxu0 0.0
    %2875 = vmatprep.subr.mxu0 0.0
    %2876 = vmatpush1.xpose.msra.mxu0 0.0
    %2877 = vmatprep.subr.mxu0 0.0
    %2878 = vmatpush1.xpose.msra.mxu0 0.0
    %2879 = vmatprep.subr.mxu0 0.0
    %2880 = vmatpush1.xpose.msra.mxu0 0.0
    %2881 = vmatprep.subr.mxu0 0.0
    %2882 = vmatpush1.xpose.msra.mxu0 0.0
    %2883 = vmatprep.subr.mxu0 0.0
    %2884 = vmatpush1.xpose.msra.mxu0 0.0
    %2885 = vmatprep.subr.mxu0 0.0
    %2886 = vmatpush1.xpose.msra.mxu0 0.0
    %2887 = vmatprep.subr.mxu0 0.0
    %2888 = vmatpush1.xpose.msra.mxu0 0.0
    %2889 = vmatprep.subr.mxu0 0.0
    %2890 = vmatpush1.xpose.msra.mxu0 0.0
    %2891 = vmatprep.subr.mxu0 0.0
    %2892 = vmatpush1.xpose.msra.mxu0 0.0
    %2893 = vmatprep.subr.mxu0 0.0
    %2894 = vmatpush1.xpose.msra.mxu0 0.0
    %2895 = vmatprep.mubr.f32.mxu0 0.0
    %v2896 = vand.u32 %v2415, 4294901760
    %2897 = vmatmul.mubr.f32.gmra.mrb[0].mxu0 %v2896
    %v2898 = vpop.f32.mrb[0].mxu0
    %v2899 = vadd.f32 %v2824, %v2898
    %v2900 = vpop.f32.mrb[0].mxu0
    %2901 = vdwg.mxu0
    %v2902 = vadd.f32 %v900, %v2899
    %v2903 = vtanh.pop %v2902
    %v2905 = vsel %vm104, %v2903, 0
    %2907 = vmatprep.subr.mxu0 0.0
    %v2908 = vand.u32 %v936, 4294901760
    %2909 = vmatpush1.xpose.msra.mxu0 %v2908
    %2910 = vmatprep.subr.mxu0 0.0
    %v2911 = vand.u32 %v939, 4294901760
    %2912 = vmatpush1.xpose.msra.mxu0 %v2911
    %2913 = vmatprep.subr.mxu0 0.0
    %v2914 = vand.u32 %v942, 4294901760
    %2915 = vmatpush1.xpose.msra.mxu0 %v2914
    %2916 = vmatprep.subr.mxu0 0.0
    %v2917 = vand.u32 %v945, 4294901760
    %2918 = vmatpush1.xpose.msra.mxu0 %v2917
    %2919 = vmatprep.subr.mxu0 0.0
    %2920 = vmatpush1.xpose.msra.mxu0 0.0
    %2921 = vmatprep.subr.mxu0 0.0
    %2922 = vmatpush1.xpose.msra.mxu0 0.0
    %2923 = vmatprep.subr.mxu0 0.0
    %2924 = vmatpush1.xpose.msra.mxu0 0.0
    %2925 = vmatprep.subr.mxu0 0.0
    %2926 = vmatpush1.xpose.msra.mxu0 0.0
    %2927 = vmatprep.subr.mxu0 0.0
    %2928 = vmatpush1.xpose.msra.mxu0 0.0
    %2929 = vmatprep.subr.mxu0 0.0
    %2930 = vmatpush1.xpose.msra.mxu0 0.0
    %2931 = vmatprep.subr.mxu0 0.0
    %2932 = vmatpush1.xpose.msra.mxu0 0.0
    %2933 = vmatprep.subr.mxu0 0.0
    %2934 = vmatpush1.xpose.msra.mxu0 0.0
    %2935 = vmatprep.subr.mxu0 0.0
    %2936 = vmatpush1.xpose.msra.mxu0 0.0
    %2937 = vmatprep.subr.mxu0 0.0
    %2938 = vmatpush1.xpose.msra.mxu0 0.0
    %2939 = vmatprep.subr.mxu0 0.0
    %2940 = vmatpush1.xpose.msra.mxu0 0.0
    %2941 = vmatprep.subr.mxu0 0.0
    %2942 = vmatpush1.xpose.msra.mxu0 0.0
    %2943 = vmatprep.subr.mxu0 0.0
    %2944 = vmatpush1.xpose.msra.mxu0 0.0
    %2945 = vmatprep.subr.mxu0 0.0
    %2946 = vmatpush1.xpose.msra.mxu0 0.0
    %2947 = vmatprep.subr.mxu0 0.0
    %2948 = vmatpush1.xpose.msra.mxu0 0.0
    %2949 = vmatprep.subr.mxu0 0.0
    %2950 = vmatpush1.xpose.msra.mxu0 0.0
    %2951 = vmatprep.subr.mxu0 0.0
    %2952 = vmatpush1.xpose.msra.mxu0 0.0
    %2953 = vmatprep.subr.mxu0 0.0
    %2954 = vmatpush1.xpose.msra.mxu0 0.0
    %2955 = vmatprep.subr.mxu0 0.0
    %2956 = vmatpush1.xpose.msra.mxu0 0.0
    %2957 = vmatprep.subr.mxu0 0.0
    %2958 = vmatpush1.xpose.msra.mxu0 0.0
    %2959 = vmatprep.subr.mxu0 0.0
    %2960 = vmatpush1.xpose.msra.mxu0 0.0
    %2961 = vmatprep.subr.mxu0 0.0
    %2962 = vmatpush1.xpose.msra.mxu0 0.0
    %2963 = vmatprep.subr.mxu0 0.0
    %2964 = vmatpush1.xpose.msra.mxu0 0.0
    %2965 = vmatprep.subr.mxu0 0.0
    %2966 = vmatpush1.xpose.msra.mxu0 0.0
    %2967 = vmatprep.subr.mxu0 0.0
    %2968 = vmatpush1.xpose.msra.mxu0 0.0
    %2969 = vmatprep.subr.mxu0 0.0
    %2970 = vmatpush1.xpose.msra.mxu0 0.0
    %2971 = vmatprep.subr.mxu0 0.0
    %2972 = vmatpush1.xpose.msra.mxu0 0.0
    %2973 = vmatprep.subr.mxu0 0.0
    %2974 = vmatpush1.xpose.msra.mxu0 0.0
    %2975 = vmatprep.mubr.f32.mxu0 0.0
    %v2976 = vand.u32 %v2905, 4294901760
    %v2977 = vsub.f32 %v2905, %v2976
    %v2978 = vand.u32 %v2977, 4294901760
    %v2979 = vsub.f32 %v2977, %v2978
    %v2980 = vand.u32 %v2979, 4294901760
    %2981 = vmatmul.mubr.f32.gmra.mrb[0].mxu0 %v2980
    %v2982 = vpop.f32.mrb[0].mxu0
    %v2983 = vadd.f32 0.0, %v2982
    %v2984 = vpop.f32.mrb[0].mxu0
    %2985 = vdwg.mxu0
    %2986 = vmatprep.subr.mxu0 0.0
    %v2987 = vand.u32 %v936, 4294901760
    %v2988 = vsub.f32 %v936, %v2987
    %v2989 = vand.u32 %v2988, 4294901760
    %v2990 = vsub.f32 %v2988, %v2989
    %v2991 = vand.u32 %v2990, 4294901760
    %2992 = vmatpush1.xpose.msra.mxu0 %v2991
    %2993 = vmatprep.subr.mxu0 0.0
    %v2994 = vand.u32 %v939, 4294901760
    %v2995 = vsub.f32 %v939, %v2994
    %v2996 = vand.u32 %v2995, 4294901760
    %v2997 = vsub.f32 %v2995, %v2996
    %v2998 = vand.u32 %v2997, 4294901760
    %2999 = vmatpush1.xpose.msra.mxu0 %v2998
    %3000 = vmatprep.subr.mxu0 0.0
    %v3001 = vand.u32 %v942, 4294901760
    %v3002 = vsub.f32 %v942, %v3001
    %v3003 = vand.u32 %v3002, 4294901760
    %v3004 = vsub.f32 %v3002, %v3003
    %v3005 = vand.u32 %v3004, 4294901760
    %3006 = vmatpush1.xpose.msra.mxu0 %v3005
    %3007 = vmatprep.subr.mxu0 0.0
    %v3008 = vand.u32 %v945, 4294901760
    %v3009 = vsub.f32 %v945, %v3008
    %v3010 = vand.u32 %v3009, 4294901760
    %v3011 = vsub.f32 %v3009, %v3010
    %v3012 = vand.u32 %v3011, 4294901760
    %3013 = vmatpush1.xpose.msra.mxu0 %v3012
    %3014 = vmatprep.subr.mxu0 0.0
    %3015 = vmatpush1.xpose.msra.mxu0 0.0
    %3016 = vmatprep.subr.mxu0 0.0
    %3017 = vmatpush1.xpose.msra.mxu0 0.0
    %3018 = vmatprep.subr.mxu0 0.0
    %3019 = vmatpush1.xpose.msra.mxu0 0.0
    %3020 = vmatprep.subr.mxu0 0.0
    %3021 = vmatpush1.xpose.msra.mxu0 0.0
    %3022 = vmatprep.subr.mxu0 0.0
    %3023 = vmatpush1.xpose.msra.mxu0 0.0
    %3024 = vmatprep.subr.mxu0 0.0
    %3025 = vmatpush1.xpose.msra.mxu0 0.0
    %3026 = vmatprep.subr.mxu0 0.0
    %3027 = vmatpush1.xpose.msra.mxu0 0.0
    %3028 = vmatprep.subr.mxu0 0.0
    %3029 = vmatpush1.xpose.msra.mxu0 0.0
    %3030 = vmatprep.subr.mxu0 0.0
    %3031 = vmatpush1.xpose.msra.mxu0 0.0
    %3032 = vmatprep.subr.mxu0 0.0
    %3033 = vmatpush1.xpose.msra.mxu0 0.0
    %3034 = vmatprep.subr.mxu0 0.0
    %3035 = vmatpush1.xpose.msra.mxu0 0.0
    %3036 = vmatprep.subr.mxu0 0.0
    %3037 = vmatpush1.xpose.msra.mxu0 0.0
    %3038 = vmatprep.subr.mxu0 0.0
    %3039 = vmatpush1.xpose.msra.mxu0 0.0
    %3040 = vmatprep.subr.mxu0 0.0
    %3041 = vmatpush1.xpose.msra.mxu0 0.0
    %3042 = vmatprep.subr.mxu0 0.0
    %3043 = vmatpush1.xpose.msra.mxu0 0.0
    %3044 = vmatprep.subr.mxu0 0.0
    %3045 = vmatpush1.xpose.msra.mxu0 0.0
    %3046 = vmatprep.subr.mxu0 0.0
    %3047 = vmatpush1.xpose.msra.mxu0 0.0
    %3048 = vmatprep.subr.mxu0 0.0
    %3049 = vmatpush1.xpose.msra.mxu0 0.0
    %3050 = vmatprep.subr.mxu0 0.0
    %3051 = vmatpush1.xpose.msra.mxu0 0.0
    %3052 = vmatprep.subr.mxu0 0.0
    %3053 = vmatpush1.xpose.msra.mxu0 0.0
    %3054 = vmatprep.subr.mxu0 0.0
    %3055 = vmatpush1.xpose.msra.mxu0 0.0
    %3056 = vmatprep.subr.mxu0 0.0
    %3057 = vmatpush1.xpose.msra.mxu0 0.0
    %3058 = vmatprep.subr.mxu0 0.0
    %3059 = vmatpush1.xpose.msra.mxu0 0.0
    %3060 = vmatprep.subr.mxu0 0.0
    %3061 = vmatpush1.xpose.msra.mxu0 0.0
    %3062 = vmatprep.subr.mxu0 0.0
    %3063 = vmatpush1.xpose.msra.mxu0 0.0
    %3064 = vmatprep.subr.mxu0 0.0
    %3065 = vmatpush1.xpose.msra.mxu0 0.0
    %3066 = vmatprep.subr.mxu0 0.0
    %3067 = vmatpush1.xpose.msra.mxu0 0.0
    %3068 = vmatprep.subr.mxu0 0.0
    %3069 = vmatpush1.xpose.msra.mxu0 0.0
    %3070 = vmatprep.mubr.f32.mxu0 0.0
    %v3071 = vand.u32 %v2905, 4294901760
    %3072 = vmatmul.mubr.f32.gmra.mrb[0].mxu0 %v3071
    %v3073 = vpop.f32.mrb[0].mxu0
    %v3074 = vadd.f32 %v2983, %v3073
    %v3075 = vpop.f32.mrb[0].mxu0
    %3076 = vdwg.mxu0
    %3077 = vmatprep.subr.mxu0 0.0
    %v3078 = vand.u32 %v936, 4294901760
    %v3079 = vsub.f32 %v936, %v3078
    %3080 = vmatpush1.xpose.msra.mxu0 %v3079
    %3081 = vmatprep.subr.mxu0 0.0
    %v3082 = vand.u32 %v939, 4294901760
    %v3083 = vsub.f32 %v939, %v3082
    %3084 = vmatpush1.xpose.msra.mxu0 %v3083
    %3085 = vmatprep.subr.mxu0 0.0
    %v3086 = vand.u32 %v942, 4294901760
    %v3087 = vsub.f32 %v942, %v3086
    %3088 = vmatpush1.xpose.msra.mxu0 %v3087
    %3089 = vmatprep.subr.mxu0 0.0
    %v3090 = vand.u32 %v945, 4294901760
    %v3091 = vsub.f32 %v945, %v3090
    %3092 = vmatpush1.xpose.msra.mxu0 %v3091
    %3093 = vmatprep.subr.mxu0 0.0
    %3094 = vmatpush1.xpose.msra.mxu0 0.0
    %3095 = vmatprep.subr.mxu0 0.0
    %3096 = vmatpush1.xpose.msra.mxu0 0.0
    %3097 = vmatprep.subr.mxu0 0.0
    %3098 = vmatpush1.xpose.msra.mxu0 0.0
    %3099 = vmatprep.subr.mxu0 0.0
    %3100 = vmatpush1.xpose.msra.mxu0 0.0
    %3101 = vmatprep.subr.mxu0 0.0
    %3102 = vmatpush1.xpose.msra.mxu0 0.0
    %3103 = vmatprep.subr.mxu0 0.0
    %3104 = vmatpush1.xpose.msra.mxu0 0.0
    %3105 = vmatprep.subr.mxu0 0.0
    %3106 = vmatpush1.xpose.msra.mxu0 0.0
    %3107 = vmatprep.subr.mxu0 0.0
    %3108 = vmatpush1.xpose.msra.mxu0 0.0
    %3109 = vmatprep.subr.mxu0 0.0
    %3110 = vmatpush1.xpose.msra.mxu0 0.0
    %3111 = vmatprep.subr.mxu0 0.0
    %3112 = vmatpush1.xpose.msra.mxu0 0.0
    %3113 = vmatprep.subr.mxu0 0.0
    %3114 = vmatpush1.xpose.msra.mxu0 0.0
    %3115 = vmatprep.subr.mxu0 0.0
    %3116 = vmatpush1.xpose.msra.mxu0 0.0
    %3117 = vmatprep.subr.mxu0 0.0
    %3118 = vmatpush1.xpose.msra.mxu0 0.0
    %3119 = vmatprep.subr.mxu0 0.0
    %3120 = vmatpush1.xpose.msra.mxu0 0.0
    %3121 = vmatprep.subr.mxu0 0.0
    %3122 = vmatpush1.xpose.msra.mxu0 0.0
    %3123 = vmatprep.subr.mxu0 0.0
    %3124 = vmatpush1.xpose.msra.mxu0 0.0
    %3125 = vmatprep.subr.mxu0 0.0
    %3126 = vmatpush1.xpose.msra.mxu0 0.0
    %3127 = vmatprep.subr.mxu0 0.0
    %3128 = vmatpush1.xpose.msra.mxu0 0.0
    %3129 = vmatprep.subr.mxu0 0.0
    %3130 = vmatpush1.xpose.msra.mxu0 0.0
    %3131 = vmatprep.subr.mxu0 0.0
    %3132 = vmatpush1.xpose.msra.mxu0 0.0
    %3133 = vmatprep.subr.mxu0 0.0
    %3134 = vmatpush1.xpose.msra.mxu0 0.0
    %3135 = vmatprep.subr.mxu0 0.0
    %3136 = vmatpush1.xpose.msra.mxu0 0.0
    %3137 = vmatprep.subr.mxu0 0.0
    %3138 = vmatpush1.xpose.msra.mxu0 0.0
    %3139 = vmatprep.subr.mxu0 0.0
    %3140 = vmatpush1.xpose.msra.mxu0 0.0
    %3141 = vmatprep.subr.mxu0 0.0
    %3142 = vmatpush1.xpose.msra.mxu0 0.0
    %3143 = vmatprep.subr.mxu0 0.0
    %3144 = vmatpush1.xpose.msra.mxu0 0.0
    %3145 = vmatprep.subr.mxu0 0.0
    %3146 = vmatpush1.xpose.msra.mxu0 0.0
    %3147 = vmatprep.subr.mxu0 0.0
    %3148 = vmatpush1.xpose.msra.mxu0 0.0
    %3149 = vmatprep.mubr.f32.mxu0 0.0
    %v3150 = vand.u32 %v2905, 4294901760
    %v3151 = vsub.f32 %v2905, %v3150
    %3152 = vmatmul.mubr.f32.gmra.mrb[0].mxu0 %v3151
    %v3153 = vpop.f32.mrb[0].mxu0
    %v3154 = vadd.f32 %v3074, %v3153
    %v3155 = vpop.f32.mrb[0].mxu0
    %3156 = vdwg.mxu0
    %3157 = vmatprep.subr.mxu0 0.0
    %v3158 = vand.u32 %v936, 4294901760
    %3159 = vmatpush1.xpose.msra.mxu0 %v3158
    %3160 = vmatprep.subr.mxu0 0.0
    %v3161 = vand.u32 %v939, 4294901760
    %3162 = vmatpush1.xpose.msra.mxu0 %v3161
    %3163 = vmatprep.subr.mxu0 0.0
    %v3164 = vand.u32 %v942, 4294901760
    %3165 = vmatpush1.xpose.msra.mxu0 %v3164
    %3166 = vmatprep.subr.mxu0 0.0
    %v3167 = vand.u32 %v945, 4294901760
    %3168 = vmatpush1.xpose.msra.mxu0 %v3167
    %3169 = vmatprep.subr.mxu0 0.0
    %3170 = vmatpush1.xpose.msra.mxu0 0.0
    %3171 = vmatprep.subr.mxu0 0.0
    %3172 = vmatpush1.xpose.msra.mxu0 0.0
    %3173 = vmatprep.subr.mxu0 0.0
    %3174 = vmatpush1.xpose.msra.mxu0 0.0
    %3175 = vmatprep.subr.mxu0 0.0
    %3176 = vmatpush1.xpose.msra.mxu0 0.0
    %3177 = vmatprep.subr.mxu0 0.0
    %3178 = vmatpush1.xpose.msra.mxu0 0.0
    %3179 = vmatprep.subr.mxu0 0.0
    %3180 = vmatpush1.xpose.msra.mxu0 0.0
    %3181 = vmatprep.subr.mxu0 0.0
    %3182 = vmatpush1.xpose.msra.mxu0 0.0
    %3183 = vmatprep.subr.mxu0 0.0
    %3184 = vmatpush1.xpose.msra.mxu0 0.0
    %3185 = vmatprep.subr.mxu0 0.0
    %3186 = vmatpush1.xpose.msra.mxu0 0.0
    %3187 = vmatprep.subr.mxu0 0.0
    %3188 = vmatpush1.xpose.msra.mxu0 0.0
    %3189 = vmatprep.subr.mxu0 0.0
    %3190 = vmatpush1.xpose.msra.mxu0 0.0
    %3191 = vmatprep.subr.mxu0 0.0
    %3192 = vmatpush1.xpose.msra.mxu0 0.0
    %3193 = vmatprep.subr.mxu0 0.0
    %3194 = vmatpush1.xpose.msra.mxu0 0.0
    %3195 = vmatprep.subr.mxu0 0.0
    %3196 = vmatpush1.xpose.msra.mxu0 0.0
    %3197 = vmatprep.subr.mxu0 0.0
    %3198 = vmatpush1.xpose.msra.mxu0 0.0
    %3199 = vmatprep.subr.mxu0 0.0
    %3200 = vmatpush1.xpose.msra.mxu0 0.0
    %3201 = vmatprep.subr.mxu0 0.0
    %3202 = vmatpush1.xpose.msra.mxu0 0.0
    %3203 = vmatprep.subr.mxu0 0.0
    %3204 = vmatpush1.xpose.msra.mxu0 0.0
    %3205 = vmatprep.subr.mxu0 0.0
    %3206 = vmatpush1.xpose.msra.mxu0 0.0
    %3207 = vmatprep.subr.mxu0 0.0
    %3208 = vmatpush1.xpose.msra.mxu0 0.0
    %3209 = vmatprep.subr.mxu0 0.0
    %3210 = vmatpush1.xpose.msra.mxu0 0.0
    %3211 = vmatprep.subr.mxu0 0.0
    %3212 = vmatpush1.xpose.msra.mxu0 0.0
    %3213 = vmatprep.subr.mxu0 0.0
    %3214 = vmatpush1.xpose.msra.mxu0 0.0
    %3215 = vmatprep.subr.mxu0 0.0
    %3216 = vmatpush1.xpose.msra.mxu0 0.0
    %3217 = vmatprep.subr.mxu0 0.0
    %3218 = vmatpush1.xpose.msra.mxu0 0.0
    %3219 = vmatprep.subr.mxu0 0.0
    %3220 = vmatpush1.xpose.msra.mxu0 0.0
    %3221 = vmatprep.subr.mxu0 0.0
    %3222 = vmatpush1.xpose.msra.mxu0 0.0
    %3223 = vmatprep.subr.mxu0 0.0
    %3224 = vmatpush1.xpose.msra.mxu0 0.0
    %3225 = vmatprep.mubr.f32.mxu0 0.0
    %v3226 = vand.u32 %v2905, 4294901760
    %v3227 = vsub.f32 %v2905, %v3226
    %v3228 = vand.u32 %v3227, 4294901760
    %3229 = vmatmul.mubr.f32.gmra.mrb[0].mxu0 %v3228
    %v3230 = vpop.f32.mrb[0].mxu0
    %v3231 = vadd.f32 %v3154, %v3230
    %v3232 = vpop.f32.mrb[0].mxu0
    %3233 = vdwg.mxu0
    %3234 = vmatprep.subr.mxu0 0.0
    %v3235 = vand.u32 %v936, 4294901760
    %v3236 = vsub.f32 %v936, %v3235
    %v3237 = vand.u32 %v3236, 4294901760
    %3238 = vmatpush1.xpose.msra.mxu0 %v3237
    %3239 = vmatprep.subr.mxu0 0.0
    %v3240 = vand.u32 %v939, 4294901760
    %v3241 = vsub.f32 %v939, %v3240
    %v3242 = vand.u32 %v3241, 4294901760
    %3243 = vmatpush1.xpose.msra.mxu0 %v3242
    %3244 = vmatprep.subr.mxu0 0.0
    %v3245 = vand.u32 %v942, 4294901760
    %v3246 = vsub.f32 %v942, %v3245
    %v3247 = vand.u32 %v3246, 4294901760
    %3248 = vmatpush1.xpose.msra.mxu0 %v3247
    %3249 = vmatprep.subr.mxu0 0.0
    %v3250 = vand.u32 %v945, 4294901760
    %v3251 = vsub.f32 %v945, %v3250
    %v3252 = vand.u32 %v3251, 4294901760
    %3253 = vmatpush1.xpose.msra.mxu0 %v3252
    %3254 = vmatprep.subr.mxu0 0.0
    %3255 = vmatpush1.xpose.msra.mxu0 0.0
    %3256 = vmatprep.subr.mxu0 0.0
    %3257 = vmatpush1.xpose.msra.mxu0 0.0
    %3258 = vmatprep.subr.mxu0 0.0
    %3259 = vmatpush1.xpose.msra.mxu0 0.0
    %3260 = vmatprep.subr.mxu0 0.0
    %3261 = vmatpush1.xpose.msra.mxu0 0.0
    %3262 = vmatprep.subr.mxu0 0.0
    %3263 = vmatpush1.xpose.msra.mxu0 0.0
    %3264 = vmatprep.subr.mxu0 0.0
    %3265 = vmatpush1.xpose.msra.mxu0 0.0
    %3266 = vmatprep.subr.mxu0 0.0
    %3267 = vmatpush1.xpose.msra.mxu0 0.0
    %3268 = vmatprep.subr.mxu0 0.0
    %3269 = vmatpush1.xpose.msra.mxu0 0.0
    %3270 = vmatprep.subr.mxu0 0.0
    %3271 = vmatpush1.xpose.msra.mxu0 0.0
    %3272 = vmatprep.subr.mxu0 0.0
    %3273 = vmatpush1.xpose.msra.mxu0 0.0
    %3274 = vmatprep.subr.mxu0 0.0
    %3275 = vmatpush1.xpose.msra.mxu0 0.0
    %3276 = vmatprep.subr.mxu0 0.0
    %3277 = vmatpush1.xpose.msra.mxu0 0.0
    %3278 = vmatprep.subr.mxu0 0.0
    %3279 = vmatpush1.xpose.msra.mxu0 0.0
    %3280 = vmatprep.subr.mxu0 0.0
    %3281 = vmatpush1.xpose.msra.mxu0 0.0
    %3282 = vmatprep.subr.mxu0 0.0
    %3283 = vmatpush1.xpose.msra.mxu0 0.0
    %3284 = vmatprep.subr.mxu0 0.0
    %3285 = vmatpush1.xpose.msra.mxu0 0.0
    %3286 = vmatprep.subr.mxu0 0.0
    %3287 = vmatpush1.xpose.msra.mxu0 0.0
    %3288 = vmatprep.subr.mxu0 0.0
    %3289 = vmatpush1.xpose.msra.mxu0 0.0
    %3290 = vmatprep.subr.mxu0 0.0
    %3291 = vmatpush1.xpose.msra.mxu0 0.0
    %3292 = vmatprep.subr.mxu0 0.0
    %3293 = vmatpush1.xpose.msra.mxu0 0.0
    %3294 = vmatprep.subr.mxu0 0.0
    %3295 = vmatpush1.xpose.msra.mxu0 0.0
    %3296 = vmatprep.subr.mxu0 0.0
    %3297 = vmatpush1.xpose.msra.mxu0 0.0
    %3298 = vmatprep.subr.mxu0 0.0
    %3299 = vmatpush1.xpose.msra.mxu0 0.0
    %3300 = vmatprep.subr.mxu0 0.0
    %3301 = vmatpush1.xpose.msra.mxu0 0.0
    %3302 = vmatprep.subr.mxu0 0.0
    %3303 = vmatpush1.xpose.msra.mxu0 0.0
    %3304 = vmatprep.subr.mxu0 0.0
    %3305 = vmatpush1.xpose.msra.mxu0 0.0
    %3306 = vmatprep.subr.mxu0 0.0
    %3307 = vmatpush1.xpose.msra.mxu0 0.0
    %3308 = vmatprep.subr.mxu0 0.0
    %3309 = vmatpush1.xpose.msra.mxu0 0.0
    %3310 = vmatprep.mubr.f32.mxu0 0.0
    %v3311 = vand.u32 %v2905, 4294901760
    %3312 = vmatmul.mubr.f32.gmra.mrb[0].mxu0 %v3311
    %v3313 = vpop.f32.mrb[0].mxu0
    %v3314 = vadd.f32 %v3231, %v3313
    %v3315 = vpop.f32.mrb[0].mxu0
    %3316 = vdwg.mxu0
    %3317 = vmatprep.subr.mxu0 0.0
    %v3318 = vand.u32 %v936, 4294901760
    %3319 = vmatpush1.xpose.msra.mxu0 %v3318
    %3320 = vmatprep.subr.mxu0 0.0
    %v3321 = vand.u32 %v939, 4294901760
    %3322 = vmatpush1.xpose.msra.mxu0 %v3321
    %3323 = vmatprep.subr.mxu0 0.0
    %v3324 = vand.u32 %v942, 4294901760
    %3325 = vmatpush1.xpose.msra.mxu0 %v3324
    %3326 = vmatprep.subr.mxu0 0.0
    %v3327 = vand.u32 %v945, 4294901760
    %3328 = vmatpush1.xpose.msra.mxu0 %v3327
    %3329 = vmatprep.subr.mxu0 0.0
    %3330 = vmatpush1.xpose.msra.mxu0 0.0
    %3331 = vmatprep.subr.mxu0 0.0
    %3332 = vmatpush1.xpose.msra.mxu0 0.0
    %3333 = vmatprep.subr.mxu0 0.0
    %3334 = vmatpush1.xpose.msra.mxu0 0.0
    %3335 = vmatprep.subr.mxu0 0.0
    %3336 = vmatpush1.xpose.msra.mxu0 0.0
    %3337 = vmatprep.subr.mxu0 0.0
    %3338 = vmatpush1.xpose.msra.mxu0 0.0
    %3339 = vmatprep.subr.mxu0 0.0
    %3340 = vmatpush1.xpose.msra.mxu0 0.0
    %3341 = vmatprep.subr.mxu0 0.0
    %3342 = vmatpush1.xpose.msra.mxu0 0.0
    %3343 = vmatprep.subr.mxu0 0.0
    %3344 = vmatpush1.xpose.msra.mxu0 0.0
    %3345 = vmatprep.subr.mxu0 0.0
    %3346 = vmatpush1.xpose.msra.mxu0 0.0
    %3347 = vmatprep.subr.mxu0 0.0
    %3348 = vmatpush1.xpose.msra.mxu0 0.0
    %3349 = vmatprep.subr.mxu0 0.0
    %3350 = vmatpush1.xpose.msra.mxu0 0.0
    %3351 = vmatprep.subr.mxu0 0.0
    %3352 = vmatpush1.xpose.msra.mxu0 0.0
    %3353 = vmatprep.subr.mxu0 0.0
    %3354 = vmatpush1.xpose.msra.mxu0 0.0
    %3355 = vmatprep.subr.mxu0 0.0
    %3356 = vmatpush1.xpose.msra.mxu0 0.0
    %3357 = vmatprep.subr.mxu0 0.0
    %3358 = vmatpush1.xpose.msra.mxu0 0.0
    %3359 = vmatprep.subr.mxu0 0.0
    %3360 = vmatpush1.xpose.msra.mxu0 0.0
    %3361 = vmatprep.subr.mxu0 0.0
    %3362 = vmatpush1.xpose.msra.mxu0 0.0
    %3363 = vmatprep.subr.mxu0 0.0
    %3364 = vmatpush1.xpose.msra.mxu0 0.0
    %3365 = vmatprep.subr.mxu0 0.0
    %3366 = vmatpush1.xpose.msra.mxu0 0.0
    %3367 = vmatprep.subr.mxu0 0.0
    %3368 = vmatpush1.xpose.msra.mxu0 0.0
    %3369 = vmatprep.subr.mxu0 0.0
    %3370 = vmatpush1.xpose.msra.mxu0 0.0
    %3371 = vmatprep.subr.mxu0 0.0
    %3372 = vmatpush1.xpose.msra.mxu0 0.0
    %3373 = vmatprep.subr.mxu0 0.0
    %3374 = vmatpush1.xpose.msra.mxu0 0.0
    %3375 = vmatprep.subr.mxu0 0.0
    %3376 = vmatpush1.xpose.msra.mxu0 0.0
    %3377 = vmatprep.subr.mxu0 0.0
    %3378 = vmatpush1.xpose.msra.mxu0 0.0
    %3379 = vmatprep.subr.mxu0 0.0
    %3380 = vmatpush1.xpose.msra.mxu0 0.0
    %3381 = vmatprep.subr.mxu0 0.0
    %3382 = vmatpush1.xpose.msra.mxu0 0.0
    %3383 = vmatprep.subr.mxu0 0.0
    %3384 = vmatpush1.xpose.msra.mxu0 0.0
    %3385 = vmatprep.mubr.f32.mxu0 0.0
    %v3386 = vand.u32 %v2905, 4294901760
    %3387 = vmatmul.mubr.f32.gmra.mrb[0].mxu0 %v3386
    %v3388 = vpop.f32.mrb[0].mxu0
    %v3389 = vadd.f32 %v3314, %v3388
    %v3390 = vpop.f32.mrb[0].mxu0
    %3391 = vdwg.mxu0
    %v3392 = vadd.f32 %v906, %v3389
    %v3393 = vtanh.pop %v3392
    %v3395 = vsel %vm104, %v3393, 0
    %3397 = vmatprep.subr.mxu0 0.0
    %v3398 = vand.u32 %v936, 4294901760
    %3399 = vmatpush1.xpose.msra.mxu0 %v3398
    %3400 = vmatprep.subr.mxu0 0.0
    %v3401 = vand.u32 %v939, 4294901760
    %3402 = vmatpush1.xpose.msra.mxu0 %v3401
    %3403 = vmatprep.subr.mxu0 0.0
    %v3404 = vand.u32 %v942, 4294901760
    %3405 = vmatpush1.xpose.msra.mxu0 %v3404
    %3406 = vmatprep.subr.mxu0 0.0
    %v3407 = vand.u32 %v945, 4294901760
    %3408 = vmatpush1.xpose.msra.mxu0 %v3407
    %3409 = vmatprep.subr.mxu0 0.0
    %3410 = vmatpush1.xpose.msra.mxu0 0.0
    %3411 = vmatprep.subr.mxu0 0.0
    %3412 = vmatpush1.xpose.msra.mxu0 0.0
    %3413 = vmatprep.subr.mxu0 0.0
    %3414 = vmatpush1.xpose.msra.mxu0 0.0
    %3415 = vmatprep.subr.mxu0 0.0
    %3416 = vmatpush1.xpose.msra.mxu0 0.0
    %3417 = vmatprep.subr.mxu0 0.0
    %3418 = vmatpush1.xpose.msra.mxu0 0.0
    %3419 = vmatprep.subr.mxu0 0.0
    %3420 = vmatpush1.xpose.msra.mxu0 0.0
    %3421 = vmatprep.subr.mxu0 0.0
    %3422 = vmatpush1.xpose.msra.mxu0 0.0
    %3423 = vmatprep.subr.mxu0 0.0
    %3424 = vmatpush1.xpose.msra.mxu0 0.0
    %3425 = vmatprep.subr.mxu0 0.0
    %3426 = vmatpush1.xpose.msra.mxu0 0.0
    %3427 = vmatprep.subr.mxu0 0.0
    %3428 = vmatpush1.xpose.msra.mxu0 0.0
    %3429 = vmatprep.subr.mxu0 0.0
    %3430 = vmatpush1.xpose.msra.mxu0 0.0
    %3431 = vmatprep.subr.mxu0 0.0
    %3432 = vmatpush1.xpose.msra.mxu0 0.0
    %3433 = vmatprep.subr.mxu0 0.0
    %3434 = vmatpush1.xpose.msra.mxu0 0.0
    %3435 = vmatprep.subr.mxu0 0.0
    %3436 = vmatpush1.xpose.msra.mxu0 0.0
    %3437 = vmatprep.subr.mxu0 0.0
    %3438 = vmatpush1.xpose.msra.mxu0 0.0
    %3439 = vmatprep.subr.mxu0 0.0
    %3440 = vmatpush1.xpose.msra.mxu0 0.0
    %3441 = vmatprep.subr.mxu0 0.0
    %3442 = vmatpush1.xpose.msra.mxu0 0.0
    %3443 = vmatprep.subr.mxu0 0.0
    %3444 = vmatpush1.xpose.msra.mxu0 0.0
    %3445 = vmatprep.subr.mxu0 0.0
    %3446 = vmatpush1.xpose.msra.mxu0 0.0
    %3447 = vmatprep.subr.mxu0 0.0
    %3448 = vmatpush1.xpose.msra.mxu0 0.0
    %3449 = vmatprep.subr.mxu0 0.0
    %3450 = vmatpush1.xpose.msra.mxu0 0.0
    %3451 = vmatprep.subr.mxu0 0.0
    %3452 = vmatpush1.xpose.msra.mxu0 0.0
    %3453 = vmatprep.subr.mxu0 0.0
    %3454 = vmatpush1.xpose.msra.mxu0 0.0
    %3455 = vmatprep.subr.mxu0 0.0
    %3456 = vmatpush1.xpose.msra.mxu0 0.0
    %3457 = vmatprep.subr.mxu0 0.0
    %3458 = vmatpush1.xpose.msra.mxu0 0.0
    %3459 = vmatprep.subr.mxu0 0.0
    %3460 = vmatpush1.xpose.msra.mxu0 0.0
    %3461 = vmatprep.subr.mxu0 0.0
    %3462 = vmatpush1.xpose.msra.mxu0 0.0
    %3463 = vmatprep.subr.mxu0 0.0
    %3464 = vmatpush1.xpose.msra.mxu0 0.0
    %3465 = vmatprep.mubr.f32.mxu0 0.0
    %v3466 = vand.u32 %v3395, 4294901760
    %v3467 = vsub.f32 %v3395, %v3466
    %v3468 = vand.u32 %v3467, 4294901760
    %v3469 = vsub.f32 %v3467, %v3468
    %v3470 = vand.u32 %v3469, 4294901760
    %3471 = vmatmul.mubr.f32.gmra.mrb[0].mxu0 %v3470
    %v3472 = vpop.f32.mrb[0].mxu0
    %v3473 = vadd.f32 0.0, %v3472
    %v3474 = vpop.f32.mrb[0].mxu0
    %3475 = vdwg.mxu0
    %3476 = vmatprep.subr.mxu0 0.0
    %v3477 = vand.u32 %v936, 4294901760
    %v3478 = vsub.f32 %v936, %v3477
    %v3479 = vand.u32 %v3478, 4294901760
    %v3480 = vsub.f32 %v3478, %v3479
    %v3481 = vand.u32 %v3480, 4294901760
    %3482 = vmatpush1.xpose.msra.mxu0 %v3481
    %3483 = vmatprep.subr.mxu0 0.0
    %v3484 = vand.u32 %v939, 4294901760
    %v3485 = vsub.f32 %v939, %v3484
    %v3486 = vand.u32 %v3485, 4294901760
    %v3487 = vsub.f32 %v3485, %v3486
    %v3488 = vand.u32 %v3487, 4294901760
    %3489 = vmatpush1.xpose.msra.mxu0 %v3488
    %3490 = vmatprep.subr.mxu0 0.0
    %v3491 = vand.u32 %v942, 4294901760
    %v3492 = vsub.f32 %v942, %v3491
    %v3493 = vand.u32 %v3492, 4294901760
    %v3494 = vsub.f32 %v3492, %v3493
    %v3495 = vand.u32 %v3494, 4294901760
    %3496 = vmatpush1.xpose.msra.mxu0 %v3495
    %3497 = vmatprep.subr.mxu0 0.0
    %v3498 = vand.u32 %v945, 4294901760
    %v3499 = vsub.f32 %v945, %v3498
    %v3500 = vand.u32 %v3499, 4294901760
    %v3501 = vsub.f32 %v3499, %v3500
    %v3502 = vand.u32 %v3501, 4294901760
    %3503 = vmatpush1.xpose.msra.mxu0 %v3502
    %3504 = vmatprep.subr.mxu0 0.0
    %3505 = vmatpush1.xpose.msra.mxu0 0.0
    %3506 = vmatprep.subr.mxu0 0.0
    %3507 = vmatpush1.xpose.msra.mxu0 0.0
    %3508 = vmatprep.subr.mxu0 0.0
    %3509 = vmatpush1.xpose.msra.mxu0 0.0
    %3510 = vmatprep.subr.mxu0 0.0
    %3511 = vmatpush1.xpose.msra.mxu0 0.0
    %3512 = vmatprep.subr.mxu0 0.0
    %3513 = vmatpush1.xpose.msra.mxu0 0.0
    %3514 = vmatprep.subr.mxu0 0.0
    %3515 = vmatpush1.xpose.msra.mxu0 0.0
    %3516 = vmatprep.subr.mxu0 0.0
    %3517 = vmatpush1.xpose.msra.mxu0 0.0
    %3518 = vmatprep.subr.mxu0 0.0
    %3519 = vmatpush1.xpose.msra.mxu0 0.0
    %3520 = vmatprep.subr.mxu0 0.0
    %3521 = vmatpush1.xpose.msra.mxu0 0.0
    %3522 = vmatprep.subr.mxu0 0.0
    %3523 = vmatpush1.xpose.msra.mxu0 0.0
    %3524 = vmatprep.subr.mxu0 0.0
    %3525 = vmatpush1.xpose.msra.mxu0 0.0
    %3526 = vmatprep.subr.mxu0 0.0
    %3527 = vmatpush1.xpose.msra.mxu0 0.0
    %3528 = vmatprep.subr.mxu0 0.0
    %3529 = vmatpush1.xpose.msra.mxu0 0.0
    %3530 = vmatprep.subr.mxu0 0.0
    %3531 = vmatpush1.xpose.msra.mxu0 0.0
    %3532 = vmatprep.subr.mxu0 0.0
    %3533 = vmatpush1.xpose.msra.mxu0 0.0
    %3534 = vmatprep.subr.mxu0 0.0
    %3535 = vmatpush1.xpose.msra.mxu0 0.0
    %3536 = vmatprep.subr.mxu0 0.0
    %3537 = vmatpush1.xpose.msra.mxu0 0.0
    %3538 = vmatprep.subr.mxu0 0.0
    %3539 = vmatpush1.xpose.msra.mxu0 0.0
    %3540 = vmatprep.subr.mxu0 0.0
    %3541 = vmatpush1.xpose.msra.mxu0 0.0
    %3542 = vmatprep.subr.mxu0 0.0
    %3543 = vmatpush1.xpose.msra.mxu0 0.0
    %3544 = vmatprep.subr.mxu0 0.0
    %3545 = vmatpush1.xpose.msra.mxu0 0.0
    %3546 = vmatprep.subr.mxu0 0.0
    %3547 = vmatpush1.xpose.msra.mxu0 0.0
    %3548 = vmatprep.subr.mxu0 0.0
    %3549 = vmatpush1.xpose.msra.mxu0 0.0
    %3550 = vmatprep.subr.mxu0 0.0
    %3551 = vmatpush1.xpose.msra.mxu0 0.0
    %3552 = vmatprep.subr.mxu0 0.0
    %3553 = vmatpush1.xpose.msra.mxu0 0.0
    %3554 = vmatprep.subr.mxu0 0.0
    %3555 = vmatpush1.xpose.msra.mxu0 0.0
    %3556 = vmatprep.subr.mxu0 0.0
    %3557 = vmatpush1.xpose.msra.mxu0 0.0
    %3558 = vmatprep.subr.mxu0 0.0
    %3559 = vmatpush1.xpose.msra.mxu0 0.0
    %3560 = vmatprep.mubr.f32.mxu0 0.0
    %v3561 = vand.u32 %v3395, 4294901760
    %3562 = vmatmul.mubr.f32.gmra.mrb[0].mxu0 %v3561
    %v3563 = vpop.f32.mrb[0].mxu0
    %v3564 = vadd.f32 %v3473, %v3563
    %v3565 = vpop.f32.mrb[0].mxu0
    %3566 = vdwg.mxu0
    %3567 = vmatprep.subr.mxu0 0.0
    %v3568 = vand.u32 %v936, 4294901760
    %v3569 = vsub.f32 %v936, %v3568
    %3570 = vmatpush1.xpose.msra.mxu0 %v3569
    %3571 = vmatprep.subr.mxu0 0.0
    %v3572 = vand.u32 %v939, 4294901760
    %v3573 = vsub.f32 %v939, %v3572
    %3574 = vmatpush1.xpose.msra.mxu0 %v3573
    %3575 = vmatprep.subr.mxu0 0.0
    %v3576 = vand.u32 %v942, 4294901760
    %v3577 = vsub.f32 %v942, %v3576
    %3578 = vmatpush1.xpose.msra.mxu0 %v3577
    %3579 = vmatprep.subr.mxu0 0.0
    %v3580 = vand.u32 %v945, 4294901760
    %v3581 = vsub.f32 %v945, %v3580
    %3582 = vmatpush1.xpose.msra.mxu0 %v3581
    %3583 = vmatprep.subr.mxu0 0.0
    %3584 = vmatpush1.xpose.msra.mxu0 0.0
    %3585 = vmatprep.subr.mxu0 0.0
    %3586 = vmatpush1.xpose.msra.mxu0 0.0
    %3587 = vmatprep.subr.mxu0 0.0
    %3588 = vmatpush1.xpose.msra.mxu0 0.0
    %3589 = vmatprep.subr.mxu0 0.0
    %3590 = vmatpush1.xpose.msra.mxu0 0.0
    %3591 = vmatprep.subr.mxu0 0.0
    %3592 = vmatpush1.xpose.msra.mxu0 0.0
    %3593 = vmatprep.subr.mxu0 0.0
    %3594 = vmatpush1.xpose.msra.mxu0 0.0
    %3595 = vmatprep.subr.mxu0 0.0
    %3596 = vmatpush1.xpose.msra.mxu0 0.0
    %3597 = vmatprep.subr.mxu0 0.0
    %3598 = vmatpush1.xpose.msra.mxu0 0.0
    %3599 = vmatprep.subr.mxu0 0.0
    %3600 = vmatpush1.xpose.msra.mxu0 0.0
    %3601 = vmatprep.subr.mxu0 0.0
    %3602 = vmatpush1.xpose.msra.mxu0 0.0
    %3603 = vmatprep.subr.mxu0 0.0
    %3604 = vmatpush1.xpose.msra.mxu0 0.0
    %3605 = vmatprep.subr.mxu0 0.0
    %3606 = vmatpush1.xpose.msra.mxu0 0.0
    %3607 = vmatprep.subr.mxu0 0.0
    %3608 = vmatpush1.xpose.msra.mxu0 0.0
    %3609 = vmatprep.subr.mxu0 0.0
    %3610 = vmatpush1.xpose.msra.mxu0 0.0
    %3611 = vmatprep.subr.mxu0 0.0
    %3612 = vmatpush1.xpose.msra.mxu0 0.0
    %3613 = vmatprep.subr.mxu0 0.0
    %3614 = vmatpush1.xpose.msra.mxu0 0.0
    %3615 = vmatprep.subr.mxu0 0.0
    %3616 = vmatpush1.xpose.msra.mxu0 0.0
    %3617 = vmatprep.subr.mxu0 0.0
    %3618 = vmatpush1.xpose.msra.mxu0 0.0
    %3619 = vmatprep.subr.mxu0 0.0
    %3620 = vmatpush1.xpose.msra.mxu0 0.0
    %3621 = vmatprep.subr.mxu0 0.0
    %3622 = vmatpush1.xpose.msra.mxu0 0.0
    %3623 = vmatprep.subr.mxu0 0.0
    %3624 = vmatpush1.xpose.msra.mxu0 0.0
    %3625 = vmatprep.subr.mxu0 0.0
    %3626 = vmatpush1.xpose.msra.mxu0 0.0
    %3627 = vmatprep.subr.mxu0 0.0
    %3628 = vmatpush1.xpose.msra.mxu0 0.0
    %3629 = vmatprep.subr.mxu0 0.0
    %3630 = vmatpush1.xpose.msra.mxu0 0.0
    %3631 = vmatprep.subr.mxu0 0.0
    %3632 = vmatpush1.xpose.msra.mxu0 0.0
    %3633 = vmatprep.subr.mxu0 0.0
    %3634 = vmatpush1.xpose.msra.mxu0 0.0
    %3635 = vmatprep.subr.mxu0 0.0
    %3636 = vmatpush1.xpose.msra.mxu0 0.0
    %3637 = vmatprep.subr.mxu0 0.0
    %3638 = vmatpush1.xpose.msra.mxu0 0.0
    %3639 = vmatprep.mubr.f32.mxu0 0.0
    %v3640 = vand.u32 %v3395, 4294901760
    %v3641 = vsub.f32 %v3395, %v3640
    %3642 = vmatmul.mubr.f32.gmra.mrb[0].mxu0 %v3641
    %v3643 = vpop.f32.mrb[0].mxu0
    %v3644 = vadd.f32 %v3564, %v3643
    %v3645 = vpop.f32.mrb[0].mxu0
    %3646 = vdwg.mxu0
    %3647 = vmatprep.subr.mxu0 0.0
    %v3648 = vand.u32 %v936, 4294901760
    %3649 = vmatpush1.xpose.msra.mxu0 %v3648
    %3650 = vmatprep.subr.mxu0 0.0
    %v3651 = vand.u32 %v939, 4294901760
    %3652 = vmatpush1.xpose.msra.mxu0 %v3651
    %3653 = vmatprep.subr.mxu0 0.0
    %v3654 = vand.u32 %v942, 4294901760
    %3655 = vmatpush1.xpose.msra.mxu0 %v3654
    %3656 = vmatprep.subr.mxu0 0.0
    %v3657 = vand.u32 %v945, 4294901760
    %3658 = vmatpush1.xpose.msra.mxu0 %v3657
    %3659 = vmatprep.subr.mxu0 0.0
    %3660 = vmatpush1.xpose.msra.mxu0 0.0
    %3661 = vmatprep.subr.mxu0 0.0
    %3662 = vmatpush1.xpose.msra.mxu0 0.0
    %3663 = vmatprep.subr.mxu0 0.0
    %3664 = vmatpush1.xpose.msra.mxu0 0.0
    %3665 = vmatprep.subr.mxu0 0.0
    %3666 = vmatpush1.xpose.msra.mxu0 0.0
    %3667 = vmatprep.subr.mxu0 0.0
    %3668 = vmatpush1.xpose.msra.mxu0 0.0
    %3669 = vmatprep.subr.mxu0 0.0
    %3670 = vmatpush1.xpose.msra.mxu0 0.0
    %3671 = vmatprep.subr.mxu0 0.0
    %3672 = vmatpush1.xpose.msra.mxu0 0.0
    %3673 = vmatprep.subr.mxu0 0.0
    %3674 = vmatpush1.xpose.msra.mxu0 0.0
    %3675 = vmatprep.subr.mxu0 0.0
    %3676 = vmatpush1.xpose.msra.mxu0 0.0
    %3677 = vmatprep.subr.mxu0 0.0
    %3678 = vmatpush1.xpose.msra.mxu0 0.0
    %3679 = vmatprep.subr.mxu0 0.0
    %3680 = vmatpush1.xpose.msra.mxu0 0.0
    %3681 = vmatprep.subr.mxu0 0.0
    %3682 = vmatpush1.xpose.msra.mxu0 0.0
    %3683 = vmatprep.subr.mxu0 0.0
    %3684 = vmatpush1.xpose.msra.mxu0 0.0
    %3685 = vmatprep.subr.mxu0 0.0
    %3686 = vmatpush1.xpose.msra.mxu0 0.0
    %3687 = vmatprep.subr.mxu0 0.0
    %3688 = vmatpush1.xpose.msra.mxu0 0.0
    %3689 = vmatprep.subr.mxu0 0.0
    %3690 = vmatpush1.xpose.msra.mxu0 0.0
    %3691 = vmatprep.subr.mxu0 0.0
    %3692 = vmatpush1.xpose.msra.mxu0 0.0
    %3693 = vmatprep.subr.mxu0 0.0
    %3694 = vmatpush1.xpose.msra.mxu0 0.0
    %3695 = vmatprep.subr.mxu0 0.0
    %3696 = vmatpush1.xpose.msra.mxu0 0.0
    %3697 = vmatprep.subr.mxu0 0.0
    %3698 = vmatpush1.xpose.msra.mxu0 0.0
    %3699 = vmatprep.subr.mxu0 0.0
    %3700 = vmatpush1.xpose.msra.mxu0 0.0
    %3701 = vmatprep.subr.mxu0 0.0
    %3702 = vmatpush1.xpose.msra.mxu0 0.0
    %3703 = vmatprep.subr.mxu0 0.0
    %3704 = vmatpush1.xpose.msra.mxu0 0.0
    %3705 = vmatprep.subr.mxu0 0.0
    %3706 = vmatpush1.xpose.msra.mxu0 0.0
    %3707 = vmatprep.subr.mxu0 0.0
    %3708 = vmatpush1.xpose.msra.mxu0 0.0
    %3709 = vmatprep.subr.mxu0 0.0
    %3710 = vmatpush1.xpose.msra.mxu0 0.0
    %3711 = vmatprep.subr.mxu0 0.0
    %3712 = vmatpush1.xpose.msra.mxu0 0.0
    %3713 = vmatprep.subr.mxu0 0.0
    %3714 = vmatpush1.xpose.msra.mxu0 0.0
    %3715 = vmatprep.mubr.f32.mxu0 0.0
    %v3716 = vand.u32 %v3395, 4294901760
    %v3717 = vsub.f32 %v3395, %v3716
    %v3718 = vand.u32 %v3717, 4294901760
    %3719 = vmatmul.mubr.f32.gmra.mrb[0].mxu0 %v3718
    %v3720 = vpop.f32.mrb[0].mxu0
    %v3721 = vadd.f32 %v3644, %v3720
    %v3722 = vpop.f32.mrb[0].mxu0
    %3723 = vdwg.mxu0
    %3724 = vmatprep.subr.mxu0 0.0
    %v3725 = vand.u32 %v936, 4294901760
    %v3726 = vsub.f32 %v936, %v3725
    %v3727 = vand.u32 %v3726, 4294901760
    %3728 = vmatpush1.xpose.msra.mxu0 %v3727
    %3729 = vmatprep.subr.mxu0 0.0
    %v3730 = vand.u32 %v939, 4294901760
    %v3731 = vsub.f32 %v939, %v3730
    %v3732 = vand.u32 %v3731, 4294901760
    %3733 = vmatpush1.xpose.msra.mxu0 %v3732
    %3734 = vmatprep.subr.mxu0 0.0
    %v3735 = vand.u32 %v942, 4294901760
    %v3736 = vsub.f32 %v942, %v3735
    %v3737 = vand.u32 %v3736, 4294901760
    %3738 = vmatpush1.xpose.msra.mxu0 %v3737
    %3739 = vmatprep.subr.mxu0 0.0
    %v3740 = vand.u32 %v945, 4294901760
    %v3741 = vsub.f32 %v945, %v3740
    %v3742 = vand.u32 %v3741, 4294901760
    %3743 = vmatpush1.xpose.msra.mxu0 %v3742
    %3744 = vmatprep.subr.mxu0 0.0
    %3745 = vmatpush1.xpose.msra.mxu0 0.0
    %3746 = vmatprep.subr.mxu0 0.0
    %3747 = vmatpush1.xpose.msra.mxu0 0.0
    %3748 = vmatprep.subr.mxu0 0.0
    %3749 = vmatpush1.xpose.msra.mxu0 0.0
    %3750 = vmatprep.subr.mxu0 0.0
    %3751 = vmatpush1.xpose.msra.mxu0 0.0
    %3752 = vmatprep.subr.mxu0 0.0
    %3753 = vmatpush1.xpose.msra.mxu0 0.0
    %3754 = vmatprep.subr.mxu0 0.0
    %3755 = vmatpush1.xpose.msra.mxu0 0.0
    %3756 = vmatprep.subr.mxu0 0.0
    %3757 = vmatpush1.xpose.msra.mxu0 0.0
    %3758 = vmatprep.subr.mxu0 0.0
    %3759 = vmatpush1.xpose.msra.mxu0 0.0
    %3760 = vmatprep.subr.mxu0 0.0
    %3761 = vmatpush1.xpose.msra.mxu0 0.0
    %3762 = vmatprep.subr.mxu0 0.0
    %3763 = vmatpush1.xpose.msra.mxu0 0.0
    %3764 = vmatprep.subr.mxu0 0.0
    %3765 = vmatpush1.xpose.msra.mxu0 0.0
    %3766 = vmatprep.subr.mxu0 0.0
    %3767 = vmatpush1.xpose.msra.mxu0 0.0
    %3768 = vmatprep.subr.mxu0 0.0
    %3769 = vmatpush1.xpose.msra.mxu0 0.0
    %3770 = vmatprep.subr.mxu0 0.0
    %3771 = vmatpush1.xpose.msra.mxu0 0.0
    %3772 = vmatprep.subr.mxu0 0.0
    %3773 = vmatpush1.xpose.msra.mxu0 0.0
    %3774 = vmatprep.subr.mxu0 0.0
    %3775 = vmatpush1.xpose.msra.mxu0 0.0
    %3776 = vmatprep.subr.mxu0 0.0
    %3777 = vmatpush1.xpose.msra.mxu0 0.0
    %3778 = vmatprep.subr.mxu0 0.0
    %3779 = vmatpush1.xpose.msra.mxu0 0.0
    %3780 = vmatprep.subr.mxu0 0.0
    %3781 = vmatpush1.xpose.msra.mxu0 0.0
    %3782 = vmatprep.subr.mxu0 0.0
    %3783 = vmatpush1.xpose.msra.mxu0 0.0
    %3784 = vmatprep.subr.mxu0 0.0
    %3785 = vmatpush1.xpose.msra.mxu0 0.0
    %3786 = vmatprep.subr.mxu0 0.0
    %3787 = vmatpush1.xpose.msra.mxu0 0.0
    %3788 = vmatprep.subr.mxu0 0.0
    %3789 = vmatpush1.xpose.msra.mxu0 0.0
    %3790 = vmatprep.subr.mxu0 0.0
    %3791 = vmatpush1.xpose.msra.mxu0 0.0
    %3792 = vmatprep.subr.mxu0 0.0
    %3793 = vmatpush1.xpose.msra.mxu0 0.0
    %3794 = vmatprep.subr.mxu0 0.0
    %3795 = vmatpush1.xpose.msra.mxu0 0.0
    %3796 = vmatprep.subr.mxu0 0.0
    %3797 = vmatpush1.xpose.msra.mxu0 0.0
    %3798 = vmatprep.subr.mxu0 0.0
    %3799 = vmatpush1.xpose.msra.mxu0 0.0
    %3800 = vmatprep.mubr.f32.mxu0 0.0
    %v3801 = vand.u32 %v3395, 4294901760
    %3802 = vmatmul.mubr.f32.gmra.mrb[0].mxu0 %v3801
    %v3803 = vpop.f32.mrb[0].mxu0
    %v3804 = vadd.f32 %v3721, %v3803
    %v3805 = vpop.f32.mrb[0].mxu0
    %3806 = vdwg.mxu0
    %3807 = vmatprep.subr.mxu0 0.0
    %v3808 = vand.u32 %v936, 4294901760
    %3809 = vmatpush1.xpose.msra.mxu0 %v3808
    %3810 = vmatprep.subr.mxu0 0.0
    %v3811 = vand.u32 %v939, 4294901760
    %3812 = vmatpush1.xpose.msra.mxu0 %v3811
    %3813 = vmatprep.subr.mxu0 0.0
    %v3814 = vand.u32 %v942, 4294901760
    %3815 = vmatpush1.xpose.msra.mxu0 %v3814
    %3816 = vmatprep.subr.mxu0 0.0
    %v3817 = vand.u32 %v945, 4294901760
    %3818 = vmatpush1.xpose.msra.mxu0 %v3817
    %3819 = vmatprep.subr.mxu0 0.0
    %3820 = vmatpush1.xpose.msra.mxu0 0.0
    %3821 = vmatprep.subr.mxu0 0.0
    %3822 = vmatpush1.xpose.msra.mxu0 0.0
    %3823 = vmatprep.subr.mxu0 0.0
    %3824 = vmatpush1.xpose.msra.mxu0 0.0
    %3825 = vmatprep.subr.mxu0 0.0
    %3826 = vmatpush1.xpose.msra.mxu0 0.0
    %3827 = vmatprep.subr.mxu0 0.0
    %3828 = vmatpush1.xpose.msra.mxu0 0.0
    %3829 = vmatprep.subr.mxu0 0.0
    %3830 = vmatpush1.xpose.msra.mxu0 0.0
    %3831 = vmatprep.subr.mxu0 0.0
    %3832 = vmatpush1.xpose.msra.mxu0 0.0
    %3833 = vmatprep.subr.mxu0 0.0
    %3834 = vmatpush1.xpose.msra.mxu0 0.0
    %3835 = vmatprep.subr.mxu0 0.0
    %3836 = vmatpush1.xpose.msra.mxu0 0.0
    %3837 = vmatprep.subr.mxu0 0.0
    %3838 = vmatpush1.xpose.msra.mxu0 0.0
    %3839 = vmatprep.subr.mxu0 0.0
    %3840 = vmatpush1.xpose.msra.mxu0 0.0
    %3841 = vmatprep.subr.mxu0 0.0
    %3842 = vmatpush1.xpose.msra.mxu0 0.0
    %3843 = vmatprep.subr.mxu0 0.0
    %3844 = vmatpush1.xpose.msra.mxu0 0.0
    %3845 = vmatprep.subr.mxu0 0.0
    %3846 = vmatpush1.xpose.msra.mxu0 0.0
    %3847 = vmatprep.subr.mxu0 0.0
    %3848 = vmatpush1.xpose.msra.mxu0 0.0
    %3849 = vmatprep.subr.mxu0 0.0
    %3850 = vmatpush1.xpose.msra.mxu0 0.0
    %3851 = vmatprep.subr.mxu0 0.0
    %3852 = vmatpush1.xpose.msra.mxu0 0.0
    %3853 = vmatprep.subr.mxu0 0.0
    %3854 = vmatpush1.xpose.msra.mxu0 0.0
    %3855 = vmatprep.subr.mxu0 0.0
    %3856 = vmatpush1.xpose.msra.mxu0 0.0
    %3857 = vmatprep.subr.mxu0 0.0
    %3858 = vmatpush1.xpose.msra.mxu0 0.0
    %3859 = vmatprep.subr.mxu0 0.0
    %3860 = vmatpush1.xpose.msra.mxu0 0.0
    %3861 = vmatprep.subr.mxu0 0.0
    %3862 = vmatpush1.xpose.msra.mxu0 0.0
    %3863 = vmatprep.subr.mxu0 0.0
    %3864 = vmatpush1.xpose.msra.mxu0 0.0
    %3865 = vmatprep.subr.mxu0 0.0
    %3866 = vmatpush1.xpose.msra.mxu0 0.0
    %3867 = vmatprep.subr.mxu0 0.0
    %3868 = vmatpush1.xpose.msra.mxu0 0.0
    %3869 = vmatprep.subr.mxu0 0.0
    %3870 = vmatpush1.xpose.msra.mxu0 0.0
    %3871 = vmatprep.subr.mxu0 0.0
    %3872 = vmatpush1.xpose.msra.mxu0 0.0
    %3873 = vmatprep.subr.mxu0 0.0
    %3874 = vmatpush1.xpose.msra.mxu0 0.0
    %3875 = vmatprep.mubr.f32.mxu0 0.0
    %v3876 = vand.u32 %v3395, 4294901760
    %3877 = vmatmul.mubr.f32.gmra.mrb[0].mxu0 %v3876
    %v3878 = vpop.f32.mrb[0].mxu0
    %v3879 = vadd.f32 %v3804, %v3878
    %v3880 = vpop.f32.mrb[0].mxu0
    %3881 = vdwg.mxu0
    %v3882 = vadd.f32 %v912, %v3879
    %v3883 = vtanh.pop %v3882
    %v3885 = vsel %vm104, %v3883, 0
    %3887 = vmatprep.subr.mxu0 0.0
    %v3888 = vand.u32 %v936, 4294901760
    %3889 = vmatpush1.xpose.msra.mxu0 %v3888
    %3890 = vmatprep.subr.mxu0 0.0
    %v3891 = vand.u32 %v939, 4294901760
    %3892 = vmatpush1.xpose.msra.mxu0 %v3891
    %3893 = vmatprep.subr.mxu0 0.0
    %v3894 = vand.u32 %v942, 4294901760
    %3895 = vmatpush1.xpose.msra.mxu0 %v3894
    %3896 = vmatprep.subr.mxu0 0.0
    %v3897 = vand.u32 %v945, 4294901760
    %3898 = vmatpush1.xpose.msra.mxu0 %v3897
    %3899 = vmatprep.subr.mxu0 0.0
    %3900 = vmatpush1.xpose.msra.mxu0 0.0
    %3901 = vmatprep.subr.mxu0 0.0
    %3902 = vmatpush1.xpose.msra.mxu0 0.0
    %3903 = vmatprep.subr.mxu0 0.0
    %3904 = vmatpush1.xpose.msra.mxu0 0.0
    %3905 = vmatprep.subr.mxu0 0.0
    %3906 = vmatpush1.xpose.msra.mxu0 0.0
    %3907 = vmatprep.subr.mxu0 0.0
    %3908 = vmatpush1.xpose.msra.mxu0 0.0
    %3909 = vmatprep.subr.mxu0 0.0
    %3910 = vmatpush1.xpose.msra.mxu0 0.0
    %3911 = vmatprep.subr.mxu0 0.0
    %3912 = vmatpush1.xpose.msra.mxu0 0.0
    %3913 = vmatprep.subr.mxu0 0.0
    %3914 = vmatpush1.xpose.msra.mxu0 0.0
    %3915 = vmatprep.subr.mxu0 0.0
    %3916 = vmatpush1.xpose.msra.mxu0 0.0
    %3917 = vmatprep.subr.mxu0 0.0
    %3918 = vmatpush1.xpose.msra.mxu0 0.0
    %3919 = vmatprep.subr.mxu0 0.0
    %3920 = vmatpush1.xpose.msra.mxu0 0.0
    %3921 = vmatprep.subr.mxu0 0.0
    %3922 = vmatpush1.xpose.msra.mxu0 0.0
    %3923 = vmatprep.subr.mxu0 0.0
    %3924 = vmatpush1.xpose.msra.mxu0 0.0
    %3925 = vmatprep.subr.mxu0 0.0
    %3926 = vmatpush1.xpose.msra.mxu0 0.0
    %3927 = vmatprep.subr.mxu0 0.0
    %3928 = vmatpush1.xpose.msra.mxu0 0.0
    %3929 = vmatprep.subr.mxu0 0.0
    %3930 = vmatpush1.xpose.msra.mxu0 0.0
    %3931 = vmatprep.subr.mxu0 0.0
    %3932 = vmatpush1.xpose.msra.mxu0 0.0
    %3933 = vmatprep.subr.mxu0 0.0
    %3934 = vmatpush1.xpose.msra.mxu0 0.0
    %3935 = vmatprep.subr.mxu0 0.0
    %3936 = vmatpush1.xpose.msra.mxu0 0.0
    %3937 = vmatprep.subr.mxu0 0.0
    %3938 = vmatpush1.xpose.msra.mxu0 0.0
    %3939 = vmatprep.subr.mxu0 0.0
    %3940 = vmatpush1.xpose.msra.mxu0 0.0
    %3941 = vmatprep.subr.mxu0 0.0
    %3942 = vmatpush1.xpose.msra.mxu0 0.0
    %3943 = vmatprep.subr.mxu0 0.0
    %3944 = vmatpush1.xpose.msra.mxu0 0.0
    %3945 = vmatprep.subr.mxu0 0.0
    %3946 = vmatpush1.xpose.msra.mxu0 0.0
    %3947 = vmatprep.subr.mxu0 0.0
    %3948 = vmatpush1.xpose.msra.mxu0 0.0
    %3949 = vmatprep.subr.mxu0 0.0
    %3950 = vmatpush1.xpose.msra.mxu0 0.0
    %3951 = vmatprep.subr.mxu0 0.0
    %3952 = vmatpush1.xpose.msra.mxu0 0.0
    %3953 = vmatprep.subr.mxu0 0.0
    %3954 = vmatpush1.xpose.msra.mxu0 0.0
    %3955 = vmatprep.mubr.f32.mxu0 0.0
    %v3956 = vand.u32 %v3885, 4294901760
    %v3957 = vsub.f32 %v3885, %v3956
    %v3958 = vand.u32 %v3957, 4294901760
    %v3959 = vsub.f32 %v3957, %v3958
    %v3960 = vand.u32 %v3959, 4294901760
    %3961 = vmatmul.mubr.f32.gmra.mrb[0].mxu0 %v3960
    %v3962 = vpop.f32.mrb[0].mxu0
    %v3963 = vadd.f32 0.0, %v3962
    %v3964 = vpop.f32.mrb[0].mxu0
    %3965 = vdwg.mxu0
    %3966 = vmatprep.subr.mxu0 0.0
    %v3967 = vand.u32 %v936, 4294901760
    %v3968 = vsub.f32 %v936, %v3967
    %v3969 = vand.u32 %v3968, 4294901760
    %v3970 = vsub.f32 %v3968, %v3969
    %v3971 = vand.u32 %v3970, 4294901760
    %3972 = vmatpush1.xpose.msra.mxu0 %v3971
    %3973 = vmatprep.subr.mxu0 0.0
    %v3974 = vand.u32 %v939, 4294901760
    %v3975 = vsub.f32 %v939, %v3974
    %v3976 = vand.u32 %v3975, 4294901760
    %v3977 = vsub.f32 %v3975, %v3976
    %v3978 = vand.u32 %v3977, 4294901760
    %3979 = vmatpush1.xpose.msra.mxu0 %v3978
    %3980 = vmatprep.subr.mxu0 0.0
    %v3981 = vand.u32 %v942, 4294901760
    %v3982 = vsub.f32 %v942, %v3981
    %v3983 = vand.u32 %v3982, 4294901760
    %v3984 = vsub.f32 %v3982, %v3983
    %v3985 = vand.u32 %v3984, 4294901760
    %3986 = vmatpush1.xpose.msra.mxu0 %v3985
    %3987 = vmatprep.subr.mxu0 0.0
    %v3988 = vand.u32 %v945, 4294901760
    %v3989 = vsub.f32 %v945, %v3988
    %v3990 = vand.u32 %v3989, 4294901760
    %v3991 = vsub.f32 %v3989, %v3990
    %v3992 = vand.u32 %v3991, 4294901760
    %3993 = vmatpush1.xpose.msra.mxu0 %v3992
    %3994 = vmatprep.subr.mxu0 0.0
    %3995 = vmatpush1.xpose.msra.mxu0 0.0
    %3996 = vmatprep.subr.mxu0 0.0
    %3997 = vmatpush1.xpose.msra.mxu0 0.0
    %3998 = vmatprep.subr.mxu0 0.0
    %3999 = vmatpush1.xpose.msra.mxu0 0.0
    %4000 = vmatprep.subr.mxu0 0.0
    %4001 = vmatpush1.xpose.msra.mxu0 0.0
    %4002 = vmatprep.subr.mxu0 0.0
    %4003 = vmatpush1.xpose.msra.mxu0 0.0
    %4004 = vmatprep.subr.mxu0 0.0
    %4005 = vmatpush1.xpose.msra.mxu0 0.0
    %4006 = vmatprep.subr.mxu0 0.0
    %4007 = vmatpush1.xpose.msra.mxu0 0.0
    %4008 = vmatprep.subr.mxu0 0.0
    %4009 = vmatpush1.xpose.msra.mxu0 0.0
    %4010 = vmatprep.subr.mxu0 0.0
    %4011 = vmatpush1.xpose.msra.mxu0 0.0
    %4012 = vmatprep.subr.mxu0 0.0
    %4013 = vmatpush1.xpose.msra.mxu0 0.0
    %4014 = vmatprep.subr.mxu0 0.0
    %4015 = vmatpush1.xpose.msra.mxu0 0.0
    %4016 = vmatprep.subr.mxu0 0.0
    %4017 = vmatpush1.xpose.msra.mxu0 0.0
    %4018 = vmatprep.subr.mxu0 0.0
    %4019 = vmatpush1.xpose.msra.mxu0 0.0
    %4020 = vmatprep.subr.mxu0 0.0
    %4021 = vmatpush1.xpose.msra.mxu0 0.0
    %4022 = vmatprep.subr.mxu0 0.0
    %4023 = vmatpush1.xpose.msra.mxu0 0.0
    %4024 = vmatprep.subr.mxu0 0.0
    %4025 = vmatpush1.xpose.msra.mxu0 0.0
    %4026 = vmatprep.subr.mxu0 0.0
    %4027 = vmatpush1.xpose.msra.mxu0 0.0
    %4028 = vmatprep.subr.mxu0 0.0
    %4029 = vmatpush1.xpose.msra.mxu0 0.0
    %4030 = vmatprep.subr.mxu0 0.0
    %4031 = vmatpush1.xpose.msra.mxu0 0.0
    %4032 = vmatprep.subr.mxu0 0.0
    %4033 = vmatpush1.xpose.msra.mxu0 0.0
    %4034 = vmatprep.subr.mxu0 0.0
    %4035 = vmatpush1.xpose.msra.mxu0 0.0
    %4036 = vmatprep.subr.mxu0 0.0
    %4037 = vmatpush1.xpose.msra.mxu0 0.0
    %4038 = vmatprep.subr.mxu0 0.0
    %4039 = vmatpush1.xpose.msra.mxu0 0.0
    %4040 = vmatprep.subr.mxu0 0.0
    %4041 = vmatpush1.xpose.msra.mxu0 0.0
    %4042 = vmatprep.subr.mxu0 0.0
    %4043 = vmatpush1.xpose.msra.mxu0 0.0
    %4044 = vmatprep.subr.mxu0 0.0
    %4045 = vmatpush1.xpose.msra.mxu0 0.0
    %4046 = vmatprep.subr.mxu0 0.0
    %4047 = vmatpush1.xpose.msra.mxu0 0.0
    %4048 = vmatprep.subr.mxu0 0.0
    %4049 = vmatpush1.xpose.msra.mxu0 0.0
    %4050 = vmatprep.mubr.f32.mxu0 0.0
    %v4051 = vand.u32 %v3885, 4294901760
    %4052 = vmatmul.mubr.f32.gmra.mrb[0].mxu0 %v4051
    %v4053 = vpop.f32.mrb[0].mxu0
    %v4054 = vadd.f32 %v3963, %v4053
    %v4055 = vpop.f32.mrb[0].mxu0
    %4056 = vdwg.mxu0
    %4057 = vmatprep.subr.mxu0 0.0
    %v4058 = vand.u32 %v936, 4294901760
    %v4059 = vsub.f32 %v936, %v4058
    %4060 = vmatpush1.xpose.msra.mxu0 %v4059
    %4061 = vmatprep.subr.mxu0 0.0
    %v4062 = vand.u32 %v939, 4294901760
    %v4063 = vsub.f32 %v939, %v4062
    %4064 = vmatpush1.xpose.msra.mxu0 %v4063
    %4065 = vmatprep.subr.mxu0 0.0
    %v4066 = vand.u32 %v942, 4294901760
    %v4067 = vsub.f32 %v942, %v4066
    %4068 = vmatpush1.xpose.msra.mxu0 %v4067
    %4069 = vmatprep.subr.mxu0 0.0
    %v4070 = vand.u32 %v945, 4294901760
    %v4071 = vsub.f32 %v945, %v4070
    %4072 = vmatpush1.xpose.msra.mxu0 %v4071
    %4073 = vmatprep.subr.mxu0 0.0
    %4074 = vmatpush1.xpose.msra.mxu0 0.0
    %4075 = vmatprep.subr.mxu0 0.0
    %4076 = vmatpush1.xpose.msra.mxu0 0.0
    %4077 = vmatprep.subr.mxu0 0.0
    %4078 = vmatpush1.xpose.msra.mxu0 0.0
    %4079 = vmatprep.subr.mxu0 0.0
    %4080 = vmatpush1.xpose.msra.mxu0 0.0
    %4081 = vmatprep.subr.mxu0 0.0
    %4082 = vmatpush1.xpose.msra.mxu0 0.0
    %4083 = vmatprep.subr.mxu0 0.0
    %4084 = vmatpush1.xpose.msra.mxu0 0.0
    %4085 = vmatprep.subr.mxu0 0.0
    %4086 = vmatpush1.xpose.msra.mxu0 0.0
    %4087 = vmatprep.subr.mxu0 0.0
    %4088 = vmatpush1.xpose.msra.mxu0 0.0
    %4089 = vmatprep.subr.mxu0 0.0
    %4090 = vmatpush1.xpose.msra.mxu0 0.0
    %4091 = vmatprep.subr.mxu0 0.0
    %4092 = vmatpush1.xpose.msra.mxu0 0.0
    %4093 = vmatprep.subr.mxu0 0.0
    %4094 = vmatpush1.xpose.msra.mxu0 0.0
    %4095 = vmatprep.subr.mxu0 0.0
    %4096 = vmatpush1.xpose.msra.mxu0 0.0
    %4097 = vmatprep.subr.mxu0 0.0
    %4098 = vmatpush1.xpose.msra.mxu0 0.0
    %4099 = vmatprep.subr.mxu0 0.0
    %4100 = vmatpush1.xpose.msra.mxu0 0.0
    %4101 = vmatprep.subr.mxu0 0.0
    %4102 = vmatpush1.xpose.msra.mxu0 0.0
    %4103 = vmatprep.subr.mxu0 0.0
    %4104 = vmatpush1.xpose.msra.mxu0 0.0
    %4105 = vmatprep.subr.mxu0 0.0
    %4106 = vmatpush1.xpose.msra.mxu0 0.0
    %4107 = vmatprep.subr.mxu0 0.0
    %4108 = vmatpush1.xpose.msra.mxu0 0.0
    %4109 = vmatprep.subr.mxu0 0.0
    %4110 = vmatpush1.xpose.msra.mxu0 0.0
    %4111 = vmatprep.subr.mxu0 0.0
    %4112 = vmatpush1.xpose.msra.mxu0 0.0
    %4113 = vmatprep.subr.mxu0 0.0
    %4114 = vmatpush1.xpose.msra.mxu0 0.0
    %4115 = vmatprep.subr.mxu0 0.0
    %4116 = vmatpush1.xpose.msra.mxu0 0.0
    %4117 = vmatprep.subr.mxu0 0.0
    %4118 = vmatpush1.xpose.msra.mxu0 0.0
    %4119 = vmatprep.subr.mxu0 0.0
    %4120 = vmatpush1.xpose.msra.mxu0 0.0
    %4121 = vmatprep.subr.mxu0 0.0
    %4122 = vmatpush1.xpose.msra.mxu0 0.0
    %4123 = vmatprep.subr.mxu0 0.0
    %4124 = vmatpush1.xpose.msra.mxu0 0.0
    %4125 = vmatprep.subr.mxu0 0.0
    %4126 = vmatpush1.xpose.msra.mxu0 0.0
    %4127 = vmatprep.subr.mxu0 0.0
    %4128 = vmatpush1.xpose.msra.mxu0 0.0
    %4129 = vmatprep.mubr.f32.mxu0 0.0
    %v4130 = vand.u32 %v3885, 4294901760
    %v4131 = vsub.f32 %v3885, %v4130
    %4132 = vmatmul.mubr.f32.gmra.mrb[0].mxu0 %v4131
    %v4133 = vpop.f32.mrb[0].mxu0
    %v4134 = vadd.f32 %v4054, %v4133
    %v4135 = vpop.f32.mrb[0].mxu0
    %4136 = vdwg.mxu0
    %4137 = vmatprep.subr.mxu0 0.0
    %v4138 = vand.u32 %v936, 4294901760
    %4139 = vmatpush1.xpose.msra.mxu0 %v4138
    %4140 = vmatprep.subr.mxu0 0.0
    %v4141 = vand.u32 %v939, 4294901760
    %4142 = vmatpush1.xpose.msra.mxu0 %v4141
    %4143 = vmatprep.subr.mxu0 0.0
    %v4144 = vand.u32 %v942, 4294901760
    %4145 = vmatpush1.xpose.msra.mxu0 %v4144
    %4146 = vmatprep.subr.mxu0 0.0
    %v4147 = vand.u32 %v945, 4294901760
    %4148 = vmatpush1.xpose.msra.mxu0 %v4147
    %4149 = vmatprep.subr.mxu0 0.0
    %4150 = vmatpush1.xpose.msra.mxu0 0.0
    %4151 = vmatprep.subr.mxu0 0.0
    %4152 = vmatpush1.xpose.msra.mxu0 0.0
    %4153 = vmatprep.subr.mxu0 0.0
    %4154 = vmatpush1.xpose.msra.mxu0 0.0
    %4155 = vmatprep.subr.mxu0 0.0
    %4156 = vmatpush1.xpose.msra.mxu0 0.0
    %4157 = vmatprep.subr.mxu0 0.0
    %4158 = vmatpush1.xpose.msra.mxu0 0.0
    %4159 = vmatprep.subr.mxu0 0.0
    %4160 = vmatpush1.xpose.msra.mxu0 0.0
    %4161 = vmatprep.subr.mxu0 0.0
    %4162 = vmatpush1.xpose.msra.mxu0 0.0
    %4163 = vmatprep.subr.mxu0 0.0
    %4164 = vmatpush1.xpose.msra.mxu0 0.0
    %4165 = vmatprep.subr.mxu0 0.0
    %4166 = vmatpush1.xpose.msra.mxu0 0.0
    %4167 = vmatprep.subr.mxu0 0.0
    %4168 = vmatpush1.xpose.msra.mxu0 0.0
    %4169 = vmatprep.subr.mxu0 0.0
    %4170 = vmatpush1.xpose.msra.mxu0 0.0
    %4171 = vmatprep.subr.mxu0 0.0
    %4172 = vmatpush1.xpose.msra.mxu0 0.0
    %4173 = vmatprep.subr.mxu0 0.0
    %4174 = vmatpush1.xpose.msra.mxu0 0.0
    %4175 = vmatprep.subr.mxu0 0.0
    %4176 = vmatpush1.xpose.msra.mxu0 0.0
    %4177 = vmatprep.subr.mxu0 0.0
    %4178 = vmatpush1.xpose.msra.mxu0 0.0
    %4179 = vmatprep.subr.mxu0 0.0
    %4180 = vmatpush1.xpose.msra.mxu0 0.0
    %4181 = vmatprep.subr.mxu0 0.0
    %4182 = vmatpush1.xpose.msra.mxu0 0.0
    %4183 = vmatprep.subr.mxu0 0.0
    %4184 = vmatpush1.xpose.msra.mxu0 0.0
    %4185 = vmatprep.subr.mxu0 0.0
    %4186 = vmatpush1.xpose.msra.mxu0 0.0
    %4187 = vmatprep.subr.mxu0 0.0
    %4188 = vmatpush1.xpose.msra.mxu0 0.0
    %4189 = vmatprep.subr.mxu0 0.0
    %4190 = vmatpush1.xpose.msra.mxu0 0.0
    %4191 = vmatprep.subr.mxu0 0.0
    %4192 = vmatpush1.xpose.msra.mxu0 0.0
    %4193 = vmatprep.subr.mxu0 0.0
    %4194 = vmatpush1.xpose.msra.mxu0 0.0
    %4195 = vmatprep.subr.mxu0 0.0
    %4196 = vmatpush1.xpose.msra.mxu0 0.0
    %4197 = vmatprep.subr.mxu0 0.0
    %4198 = vmatpush1.xpose.msra.mxu0 0.0
    %4199 = vmatprep.subr.mxu0 0.0
    %4200 = vmatpush1.xpose.msra.mxu0 0.0
    %4201 = vmatprep.subr.mxu0 0.0
    %4202 = vmatpush1.xpose.msra.mxu0 0.0
    %4203 = vmatprep.subr.mxu0 0.0
    %4204 = vmatpush1.xpose.msra.mxu0 0.0
    %4205 = vmatprep.mubr.f32.mxu0 0.0
    %v4206 = vand.u32 %v3885, 4294901760
    %v4207 = vsub.f32 %v3885, %v4206
    %v4208 = vand.u32 %v4207, 4294901760
    %4209 = vmatmul.mubr.f32.gmra.mrb[0].mxu0 %v4208
    %v4210 = vpop.f32.mrb[0].mxu0
    %v4211 = vadd.f32 %v4134, %v4210
    %v4212 = vpop.f32.mrb[0].mxu0
    %4213 = vdwg.mxu0
    %4214 = vmatprep.subr.mxu0 0.0
    %v4215 = vand.u32 %v936, 4294901760
    %v4216 = vsub.f32 %v936, %v4215
    %v4217 = vand.u32 %v4216, 4294901760
    %4218 = vmatpush1.xpose.msra.mxu0 %v4217
    %4219 = vmatprep.subr.mxu0 0.0
    %v4220 = vand.u32 %v939, 4294901760
    %v4221 = vsub.f32 %v939, %v4220
    %v4222 = vand.u32 %v4221, 4294901760
    %4223 = vmatpush1.xpose.msra.mxu0 %v4222
    %4224 = vmatprep.subr.mxu0 0.0
    %v4225 = vand.u32 %v942, 4294901760
    %v4226 = vsub.f32 %v942, %v4225
    %v4227 = vand.u32 %v4226, 4294901760
    %4228 = vmatpush1.xpose.msra.mxu0 %v4227
    %4229 = vmatprep.subr.mxu0 0.0
    %v4230 = vand.u32 %v945, 4294901760
    %v4231 = vsub.f32 %v945, %v4230
    %v4232 = vand.u32 %v4231, 4294901760
    %4233 = vmatpush1.xpose.msra.mxu0 %v4232
    %4234 = vmatprep.subr.mxu0 0.0
    %4235 = vmatpush1.xpose.msra.mxu0 0.0
    %4236 = vmatprep.subr.mxu0 0.0
    %4237 = vmatpush1.xpose.msra.mxu0 0.0
    %4238 = vmatprep.subr.mxu0 0.0
    %4239 = vmatpush1.xpose.msra.mxu0 0.0
    %4240 = vmatprep.subr.mxu0 0.0
    %4241 = vmatpush1.xpose.msra.mxu0 0.0
    %4242 = vmatprep.subr.mxu0 0.0
    %4243 = vmatpush1.xpose.msra.mxu0 0.0
    %4244 = vmatprep.subr.mxu0 0.0
    %4245 = vmatpush1.xpose.msra.mxu0 0.0
    %4246 = vmatprep.subr.mxu0 0.0
    %4247 = vmatpush1.xpose.msra.mxu0 0.0
    %4248 = vmatprep.subr.mxu0 0.0
    %4249 = vmatpush1.xpose.msra.mxu0 0.0
    %4250 = vmatprep.subr.mxu0 0.0
    %4251 = vmatpush1.xpose.msra.mxu0 0.0
    %4252 = vmatprep.subr.mxu0 0.0
    %4253 = vmatpush1.xpose.msra.mxu0 0.0
    %4254 = vmatprep.subr.mxu0 0.0
    %4255 = vmatpush1.xpose.msra.mxu0 0.0
    %4256 = vmatprep.subr.mxu0 0.0
    %4257 = vmatpush1.xpose.msra.mxu0 0.0
    %4258 = vmatprep.subr.mxu0 0.0
    %4259 = vmatpush1.xpose.msra.mxu0 0.0
    %4260 = vmatprep.subr.mxu0 0.0
    %4261 = vmatpush1.xpose.msra.mxu0 0.0
    %4262 = vmatprep.subr.mxu0 0.0
    %4263 = vmatpush1.xpose.msra.mxu0 0.0
    %4264 = vmatprep.subr.mxu0 0.0
    %4265 = vmatpush1.xpose.msra.mxu0 0.0
    %4266 = vmatprep.subr.mxu0 0.0
    %4267 = vmatpush1.xpose.msra.mxu0 0.0
    %4268 = vmatprep.subr.mxu0 0.0
    %4269 = vmatpush1.xpose.msra.mxu0 0.0
    %4270 = vmatprep.subr.mxu0 0.0
    %4271 = vmatpush1.xpose.msra.mxu0 0.0
    %4272 = vmatprep.subr.mxu0 0.0
    %4273 = vmatpush1.xpose.msra.mxu0 0.0
    %4274 = vmatprep.subr.mxu0 0.0
    %4275 = vmatpush1.xpose.msra.mxu0 0.0
    %4276 = vmatprep.subr.mxu0 0.0
    %4277 = vmatpush1.xpose.msra.mxu0 0.0
    %4278 = vmatprep.subr.mxu0 0.0
    %4279 = vmatpush1.xpose.msra.mxu0 0.0
    %4280 = vmatprep.subr.mxu0 0.0
    %4281 = vmatpush1.xpose.msra.mxu0 0.0
    %4282 = vmatprep.subr.mxu0 0.0
    %4283 = vmatpush1.xpose.msra.mxu0 0.0
    %4284 = vmatprep.subr.mxu0 0.0
    %4285 = vmatpush1.xpose.msra.mxu0 0.0
    %4286 = vmatprep.subr.mxu0 0.0
    %4287 = vmatpush1.xpose.msra.mxu0 0.0
    %4288 = vmatprep.subr.mxu0 0.0
    %4289 = vmatpush1.xpose.msra.mxu0 0.0
    %4290 = vmatprep.mubr.f32.mxu0 0.0
    %v4291 = vand.u32 %v3885, 4294901760
    %4292 = vmatmul.mubr.f32.gmra.mrb[0].mxu0 %v4291
    %v4293 = vpop.f32.mrb[0].mxu0
    %v4294 = vadd.f32 %v4211, %v4293
    %v4295 = vpop.f32.mrb[0].mxu0
    %4296 = vdwg.mxu0
    %4297 = vmatprep.subr.mxu0 0.0
    %v4298 = vand.u32 %v936, 4294901760
    %4299 = vmatpush1.xpose.msra.mxu0 %v4298
    %4300 = vmatprep.subr.mxu0 0.0
    %v4301 = vand.u32 %v939, 4294901760
    %4302 = vmatpush1.xpose.msra.mxu0 %v4301
    %4303 = vmatprep.subr.mxu0 0.0
    %v4304 = vand.u32 %v942, 4294901760
    %4305 = vmatpush1.xpose.msra.mxu0 %v4304
    %4306 = vmatprep.subr.mxu0 0.0
    %v4307 = vand.u32 %v945, 4294901760
    %4308 = vmatpush1.xpose.msra.mxu0 %v4307
    %4309 = vmatprep.subr.mxu0 0.0
    %4310 = vmatpush1.xpose.msra.mxu0 0.0
    %4311 = vmatprep.subr.mxu0 0.0
    %4312 = vmatpush1.xpose.msra.mxu0 0.0
    %4313 = vmatprep.subr.mxu0 0.0
    %4314 = vmatpush1.xpose.msra.mxu0 0.0
    %4315 = vmatprep.subr.mxu0 0.0
    %4316 = vmatpush1.xpose.msra.mxu0 0.0
    %4317 = vmatprep.subr.mxu0 0.0
    %4318 = vmatpush1.xpose.msra.mxu0 0.0
    %4319 = vmatprep.subr.mxu0 0.0
    %4320 = vmatpush1.xpose.msra.mxu0 0.0
    %4321 = vmatprep.subr.mxu0 0.0
    %4322 = vmatpush1.xpose.msra.mxu0 0.0
    %4323 = vmatprep.subr.mxu0 0.0
    %4324 = vmatpush1.xpose.msra.mxu0 0.0
    %4325 = vmatprep.subr.mxu0 0.0
    %4326 = vmatpush1.xpose.msra.mxu0 0.0
    %4327 = vmatprep.subr.mxu0 0.0
    %4328 = vmatpush1.xpose.msra.mxu0 0.0
    %4329 = vmatprep.subr.mxu0 0.0
    %4330 = vmatpush1.xpose.msra.mxu0 0.0
    %4331 = vmatprep.subr.mxu0 0.0
    %4332 = vmatpush1.xpose.msra.mxu0 0.0
    %4333 = vmatprep.subr.mxu0 0.0
    %4334 = vmatpush1.xpose.msra.mxu0 0.0
    %4335 = vmatprep.subr.mxu0 0.0
    %4336 = vmatpush1.xpose.msra.mxu0 0.0
    %4337 = vmatprep.subr.mxu0 0.0
    %4338 = vmatpush1.xpose.msra.mxu0 0.0
    %4339 = vmatprep.subr.mxu0 0.0
    %4340 = vmatpush1.xpose.msra.mxu0 0.0
    %4341 = vmatprep.subr.mxu0 0.0
    %4342 = vmatpush1.xpose.msra.mxu0 0.0
    %4343 = vmatprep.subr.mxu0 0.0
    %4344 = vmatpush1.xpose.msra.mxu0 0.0
    %4345 = vmatprep.subr.mxu0 0.0
    %4346 = vmatpush1.xpose.msra.mxu0 0.0
    %4347 = vmatprep.subr.mxu0 0.0
    %4348 = vmatpush1.xpose.msra.mxu0 0.0
    %4349 = vmatprep.subr.mxu0 0.0
    %4350 = vmatpush1.xpose.msra.mxu0 0.0
    %4351 = vmatprep.subr.mxu0 0.0
    %4352 = vmatpush1.xpose.msra.mxu0 0.0
    %4353 = vmatprep.subr.mxu0 0.0
    %4354 = vmatpush1.xpose.msra.mxu0 0.0
    %4355 = vmatprep.subr.mxu0 0.0
    %4356 = vmatpush1.xpose.msra.mxu0 0.0
    %4357 = vmatprep.subr.mxu0 0.0
    %4358 = vmatpush1.xpose.msra.mxu0 0.0
    %4359 = vmatprep.subr.mxu0 0.0
    %4360 = vmatpush1.xpose.msra.mxu0 0.0
    %4361 = vmatprep.subr.mxu0 0.0
    %4362 = vmatpush1.xpose.msra.mxu0 0.0
    %4363 = vmatprep.subr.mxu0 0.0
    %4364 = vmatpush1.xpose.msra.mxu0 0.0
    %4365 = vmatprep.mubr.f32.mxu0 0.0
    %v4366 = vand.u32 %v3885, 4294901760
    %4367 = vmatmul.mubr.f32.gmra.mrb[0].mxu0 %v4366
    %v4368 = vpop.f32.mrb[0].mxu0
    %v4369 = vadd.f32 %v4294, %v4368
    %v4370 = vpop.f32.mrb[0].mxu0
    %4371 = vdwg.mxu0
    %v4372 = vadd.f32 %v918, %v4369
    %v4373 = vtanh.pop %v4372
    %v4375 = vsel %vm104, %v4373, 0
    %4377 = vmatprep.subr.mxu0 0.0
    %v4378 = vand.u32 %v936, 4294901760
    %4379 = vmatpush1.xpose.msra.mxu0 %v4378
    %4380 = vmatprep.subr.mxu0 0.0
    %v4381 = vand.u32 %v939, 4294901760
    %4382 = vmatpush1.xpose.msra.mxu0 %v4381
    %4383 = vmatprep.subr.mxu0 0.0
    %v4384 = vand.u32 %v942, 4294901760
    %4385 = vmatpush1.xpose.msra.mxu0 %v4384
    %4386 = vmatprep.subr.mxu0 0.0
    %v4387 = vand.u32 %v945, 4294901760
    %4388 = vmatpush1.xpose.msra.mxu0 %v4387
    %4389 = vmatprep.subr.mxu0 0.0
    %4390 = vmatpush1.xpose.msra.mxu0 0.0
    %4391 = vmatprep.subr.mxu0 0.0
    %4392 = vmatpush1.xpose.msra.mxu0 0.0
    %4393 = vmatprep.subr.mxu0 0.0
    %4394 = vmatpush1.xpose.msra.mxu0 0.0
    %4395 = vmatprep.subr.mxu0 0.0
    %4396 = vmatpush1.xpose.msra.mxu0 0.0
    %4397 = vmatprep.subr.mxu0 0.0
    %4398 = vmatpush1.xpose.msra.mxu0 0.0
    %4399 = vmatprep.subr.mxu0 0.0
    %4400 = vmatpush1.xpose.msra.mxu0 0.0
    %4401 = vmatprep.subr.mxu0 0.0
    %4402 = vmatpush1.xpose.msra.mxu0 0.0
    %4403 = vmatprep.subr.mxu0 0.0
    %4404 = vmatpush1.xpose.msra.mxu0 0.0
    %4405 = vmatprep.subr.mxu0 0.0
    %4406 = vmatpush1.xpose.msra.mxu0 0.0
    %4407 = vmatprep.subr.mxu0 0.0
    %4408 = vmatpush1.xpose.msra.mxu0 0.0
    %4409 = vmatprep.subr.mxu0 0.0
    %4410 = vmatpush1.xpose.msra.mxu0 0.0
    %4411 = vmatprep.subr.mxu0 0.0
    %4412 = vmatpush1.xpose.msra.mxu0 0.0
    %4413 = vmatprep.subr.mxu0 0.0
    %4414 = vmatpush1.xpose.msra.mxu0 0.0
    %4415 = vmatprep.subr.mxu0 0.0
    %4416 = vmatpush1.xpose.msra.mxu0 0.0
    %4417 = vmatprep.subr.mxu0 0.0
    %4418 = vmatpush1.xpose.msra.mxu0 0.0
    %4419 = vmatprep.subr.mxu0 0.0
    %4420 = vmatpush1.xpose.msra.mxu0 0.0
    %4421 = vmatprep.subr.mxu0 0.0
    %4422 = vmatpush1.xpose.msra.mxu0 0.0
    %4423 = vmatprep.subr.mxu0 0.0
    %4424 = vmatpush1.xpose.msra.mxu0 0.0
    %4425 = vmatprep.subr.mxu0 0.0
    %4426 = vmatpush1.xpose.msra.mxu0 0.0
    %4427 = vmatprep.subr.mxu0 0.0
    %4428 = vmatpush1.xpose.msra.mxu0 0.0
    %4429 = vmatprep.subr.mxu0 0.0
    %4430 = vmatpush1.xpose.msra.mxu0 0.0
    %4431 = vmatprep.subr.mxu0 0.0
    %4432 = vmatpush1.xpose.msra.mxu0 0.0
    %4433 = vmatprep.subr.mxu0 0.0
    %4434 = vmatpush1.xpose.msra.mxu0 0.0
    %4435 = vmatprep.subr.mxu0 0.0
    %4436 = vmatpush1.xpose.msra.mxu0 0.0
    %4437 = vmatprep.subr.mxu0 0.0
    %4438 = vmatpush1.xpose.msra.mxu0 0.0
    %4439 = vmatprep.subr.mxu0 0.0
    %4440 = vmatpush1.xpose.msra.mxu0 0.0
    %4441 = vmatprep.subr.mxu0 0.0
    %4442 = vmatpush1.xpose.msra.mxu0 0.0
    %4443 = vmatprep.subr.mxu0 0.0
    %4444 = vmatpush1.xpose.msra.mxu0 0.0
    %4445 = vmatprep.mubr.f32.mxu0 0.0
    %v4446 = vand.u32 %v4375, 4294901760
    %v4447 = vsub.f32 %v4375, %v4446
    %v4448 = vand.u32 %v4447, 4294901760
    %v4449 = vsub.f32 %v4447, %v4448
    %v4450 = vand.u32 %v4449, 4294901760
    %4451 = vmatmul.mubr.f32.gmra.mrb[0].mxu0 %v4450
    %v4452 = vpop.f32.mrb[0].mxu0
    %v4453 = vadd.f32 0.0, %v4452
    %v4454 = vpop.f32.mrb[0].mxu0
    %4455 = vdwg.mxu0
    %4456 = vmatprep.subr.mxu0 0.0
    %v4457 = vand.u32 %v936, 4294901760
    %v4458 = vsub.f32 %v936, %v4457
    %v4459 = vand.u32 %v4458, 4294901760
    %v4460 = vsub.f32 %v4458, %v4459
    %v4461 = vand.u32 %v4460, 4294901760
    %4462 = vmatpush1.xpose.msra.mxu0 %v4461
    %4463 = vmatprep.subr.mxu0 0.0
    %v4464 = vand.u32 %v939, 4294901760
    %v4465 = vsub.f32 %v939, %v4464
    %v4466 = vand.u32 %v4465, 4294901760
    %v4467 = vsub.f32 %v4465, %v4466
    %v4468 = vand.u32 %v4467, 4294901760
    %4469 = vmatpush1.xpose.msra.mxu0 %v4468
    %4470 = vmatprep.subr.mxu0 0.0
    %v4471 = vand.u32 %v942, 4294901760
    %v4472 = vsub.f32 %v942, %v4471
    %v4473 = vand.u32 %v4472, 4294901760
    %v4474 = vsub.f32 %v4472, %v4473
    %v4475 = vand.u32 %v4474, 4294901760
    %4476 = vmatpush1.xpose.msra.mxu0 %v4475
    %4477 = vmatprep.subr.mxu0 0.0
    %v4478 = vand.u32 %v945, 4294901760
    %v4479 = vsub.f32 %v945, %v4478
    %v4480 = vand.u32 %v4479, 4294901760
    %v4481 = vsub.f32 %v4479, %v4480
    %v4482 = vand.u32 %v4481, 4294901760
    %4483 = vmatpush1.xpose.msra.mxu0 %v4482
    %4484 = vmatprep.subr.mxu0 0.0
    %4485 = vmatpush1.xpose.msra.mxu0 0.0
    %4486 = vmatprep.subr.mxu0 0.0
    %4487 = vmatpush1.xpose.msra.mxu0 0.0
    %4488 = vmatprep.subr.mxu0 0.0
    %4489 = vmatpush1.xpose.msra.mxu0 0.0
    %4490 = vmatprep.subr.mxu0 0.0
    %4491 = vmatpush1.xpose.msra.mxu0 0.0
    %4492 = vmatprep.subr.mxu0 0.0
    %4493 = vmatpush1.xpose.msra.mxu0 0.0
    %4494 = vmatprep.subr.mxu0 0.0
    %4495 = vmatpush1.xpose.msra.mxu0 0.0
    %4496 = vmatprep.subr.mxu0 0.0
    %4497 = vmatpush1.xpose.msra.mxu0 0.0
    %4498 = vmatprep.subr.mxu0 0.0
    %4499 = vmatpush1.xpose.msra.mxu0 0.0
    %4500 = vmatprep.subr.mxu0 0.0
    %4501 = vmatpush1.xpose.msra.mxu0 0.0
    %4502 = vmatprep.subr.mxu0 0.0
    %4503 = vmatpush1.xpose.msra.mxu0 0.0
    %4504 = vmatprep.subr.mxu0 0.0
    %4505 = vmatpush1.xpose.msra.mxu0 0.0
    %4506 = vmatprep.subr.mxu0 0.0
    %4507 = vmatpush1.xpose.msra.mxu0 0.0
    %4508 = vmatprep.subr.mxu0 0.0
    %4509 = vmatpush1.xpose.msra.mxu0 0.0
    %4510 = vmatprep.subr.mxu0 0.0
    %4511 = vmatpush1.xpose.msra.mxu0 0.0
    %4512 = vmatprep.subr.mxu0 0.0
    %4513 = vmatpush1.xpose.msra.mxu0 0.0
    %4514 = vmatprep.subr.mxu0 0.0
    %4515 = vmatpush1.xpose.msra.mxu0 0.0
    %4516 = vmatprep.subr.mxu0 0.0
    %4517 = vmatpush1.xpose.msra.mxu0 0.0
    %4518 = vmatprep.subr.mxu0 0.0
    %4519 = vmatpush1.xpose.msra.mxu0 0.0
    %4520 = vmatprep.subr.mxu0 0.0
    %4521 = vmatpush1.xpose.msra.mxu0 0.0
    %4522 = vmatprep.subr.mxu0 0.0
    %4523 = vmatpush1.xpose.msra.mxu0 0.0
    %4524 = vmatprep.subr.mxu0 0.0
    %4525 = vmatpush1.xpose.msra.mxu0 0.0
    %4526 = vmatprep.subr.mxu0 0.0
    %4527 = vmatpush1.xpose.msra.mxu0 0.0
    %4528 = vmatprep.subr.mxu0 0.0
    %4529 = vmatpush1.xpose.msra.mxu0 0.0
    %4530 = vmatprep.subr.mxu0 0.0
    %4531 = vmatpush1.xpose.msra.mxu0 0.0
    %4532 = vmatprep.subr.mxu0 0.0
    %4533 = vmatpush1.xpose.msra.mxu0 0.0
    %4534 = vmatprep.subr.mxu0 0.0
    %4535 = vmatpush1.xpose.msra.mxu0 0.0
    %4536 = vmatprep.subr.mxu0 0.0
    %4537 = vmatpush1.xpose.msra.mxu0 0.0
    %4538 = vmatprep.subr.mxu0 0.0
    %4539 = vmatpush1.xpose.msra.mxu0 0.0
    %4540 = vmatprep.mubr.f32.mxu0 0.0
    %v4541 = vand.u32 %v4375, 4294901760
    %4542 = vmatmul.mubr.f32.gmra.mrb[0].mxu0 %v4541
    %v4543 = vpop.f32.mrb[0].mxu0
    %v4544 = vadd.f32 %v4453, %v4543
    %v4545 = vpop.f32.mrb[0].mxu0
    %4546 = vdwg.mxu0
    %4547 = vmatprep.subr.mxu0 0.0
    %v4548 = vand.u32 %v936, 4294901760
    %v4549 = vsub.f32 %v936, %v4548
    %4550 = vmatpush1.xpose.msra.mxu0 %v4549
    %4551 = vmatprep.subr.mxu0 0.0
    %v4552 = vand.u32 %v939, 4294901760
    %v4553 = vsub.f32 %v939, %v4552
    %4554 = vmatpush1.xpose.msra.mxu0 %v4553
    %4555 = vmatprep.subr.mxu0 0.0
    %v4556 = vand.u32 %v942, 4294901760
    %v4557 = vsub.f32 %v942, %v4556
    %4558 = vmatpush1.xpose.msra.mxu0 %v4557
    %4559 = vmatprep.subr.mxu0 0.0
    %v4560 = vand.u32 %v945, 4294901760
    %v4561 = vsub.f32 %v945, %v4560
    %4562 = vmatpush1.xpose.msra.mxu0 %v4561
    %4563 = vmatprep.subr.mxu0 0.0
    %4564 = vmatpush1.xpose.msra.mxu0 0.0
    %4565 = vmatprep.subr.mxu0 0.0
    %4566 = vmatpush1.xpose.msra.mxu0 0.0
    %4567 = vmatprep.subr.mxu0 0.0
    %4568 = vmatpush1.xpose.msra.mxu0 0.0
    %4569 = vmatprep.subr.mxu0 0.0
    %4570 = vmatpush1.xpose.msra.mxu0 0.0
    %4571 = vmatprep.subr.mxu0 0.0
    %4572 = vmatpush1.xpose.msra.mxu0 0.0
    %4573 = vmatprep.subr.mxu0 0.0
    %4574 = vmatpush1.xpose.msra.mxu0 0.0
    %4575 = vmatprep.subr.mxu0 0.0
    %4576 = vmatpush1.xpose.msra.mxu0 0.0
    %4577 = vmatprep.subr.mxu0 0.0
    %4578 = vmatpush1.xpose.msra.mxu0 0.0
    %4579 = vmatprep.subr.mxu0 0.0
    %4580 = vmatpush1.xpose.msra.mxu0 0.0
    %4581 = vmatprep.subr.mxu0 0.0
    %4582 = vmatpush1.xpose.msra.mxu0 0.0
    %4583 = vmatprep.subr.mxu0 0.0
    %4584 = vmatpush1.xpose.msra.mxu0 0.0
    %4585 = vmatprep.subr.mxu0 0.0
    %4586 = vmatpush1.xpose.msra.mxu0 0.0
    %4587 = vmatprep.subr.mxu0 0.0
    %4588 = vmatpush1.xpose.msra.mxu0 0.0
    %4589 = vmatprep.subr.mxu0 0.0
    %4590 = vmatpush1.xpose.msra.mxu0 0.0
    %4591 = vmatprep.subr.mxu0 0.0
    %4592 = vmatpush1.xpose.msra.mxu0 0.0
    %4593 = vmatprep.subr.mxu0 0.0
    %4594 = vmatpush1.xpose.msra.mxu0 0.0
    %4595 = vmatprep.subr.mxu0 0.0
    %4596 = vmatpush1.xpose.msra.mxu0 0.0
    %4597 = vmatprep.subr.mxu0 0.0
    %4598 = vmatpush1.xpose.msra.mxu0 0.0
    %4599 = vmatprep.subr.mxu0 0.0
    %4600 = vmatpush1.xpose.msra.mxu0 0.0
    %4601 = vmatprep.subr.mxu0 0.0
    %4602 = vmatpush1.xpose.msra.mxu0 0.0
    %4603 = vmatprep.subr.mxu0 0.0
    %4604 = vmatpush1.xpose.msra.mxu0 0.0
    %4605 = vmatprep.subr.mxu0 0.0
    %4606 = vmatpush1.xpose.msra.mxu0 0.0
    %4607 = vmatprep.subr.mxu0 0.0
    %4608 = vmatpush1.xpose.msra.mxu0 0.0
    %4609 = vmatprep.subr.mxu0 0.0
    %4610 = vmatpush1.xpose.msra.mxu0 0.0
    %4611 = vmatprep.subr.mxu0 0.0
    %4612 = vmatpush1.xpose.msra.mxu0 0.0
    %4613 = vmatprep.subr.mxu0 0.0
    %4614 = vmatpush1.xpose.msra.mxu0 0.0
    %4615 = vmatprep.subr.mxu0 0.0
    %4616 = vmatpush1.xpose.msra.mxu0 0.0
    %4617 = vmatprep.subr.mxu0 0.0
    %4618 = vmatpush1.xpose.msra.mxu0 0.0
    %4619 = vmatprep.mubr.f32.mxu0 0.0
    %v4620 = vand.u32 %v4375, 4294901760
    %v4621 = vsub.f32 %v4375, %v4620
    %4622 = vmatmul.mubr.f32.gmra.mrb[0].mxu0 %v4621
    %v4623 = vpop.f32.mrb[0].mxu0
    %v4624 = vadd.f32 %v4544, %v4623
    %v4625 = vpop.f32.mrb[0].mxu0
    %4626 = vdwg.mxu0
    %4627 = vmatprep.subr.mxu0 0.0
    %v4628 = vand.u32 %v936, 4294901760
    %4629 = vmatpush1.xpose.msra.mxu0 %v4628
    %4630 = vmatprep.subr.mxu0 0.0
    %v4631 = vand.u32 %v939, 4294901760
    %4632 = vmatpush1.xpose.msra.mxu0 %v4631
    %4633 = vmatprep.subr.mxu0 0.0
    %v4634 = vand.u32 %v942, 4294901760
    %4635 = vmatpush1.xpose.msra.mxu0 %v4634
    %4636 = vmatprep.subr.mxu0 0.0
    %v4637 = vand.u32 %v945, 4294901760
    %4638 = vmatpush1.xpose.msra.mxu0 %v4637
    %4639 = vmatprep.subr.mxu0 0.0
    %4640 = vmatpush1.xpose.msra.mxu0 0.0
    %4641 = vmatprep.subr.mxu0 0.0
    %4642 = vmatpush1.xpose.msra.mxu0 0.0
    %4643 = vmatprep.subr.mxu0 0.0
    %4644 = vmatpush1.xpose.msra.mxu0 0.0
    %4645 = vmatprep.subr.mxu0 0.0
    %4646 = vmatpush1.xpose.msra.mxu0 0.0
    %4647 = vmatprep.subr.mxu0 0.0
    %4648 = vmatpush1.xpose.msra.mxu0 0.0
    %4649 = vmatprep.subr.mxu0 0.0
    %4650 = vmatpush1.xpose.msra.mxu0 0.0
    %4651 = vmatprep.subr.mxu0 0.0
    %4652 = vmatpush1.xpose.msra.mxu0 0.0
    %4653 = vmatprep.subr.mxu0 0.0
    %4654 = vmatpush1.xpose.msra.mxu0 0.0
    %4655 = vmatprep.subr.mxu0 0.0
    %4656 = vmatpush1.xpose.msra.mxu0 0.0
    %4657 = vmatprep.subr.mxu0 0.0
    %4658 = vmatpush1.xpose.msra.mxu0 0.0
    %4659 = vmatprep.subr.mxu0 0.0
    %4660 = vmatpush1.xpose.msra.mxu0 0.0
    %4661 = vmatprep.subr.mxu0 0.0
    %4662 = vmatpush1.xpose.msra.mxu0 0.0
    %4663 = vmatprep.subr.mxu0 0.0
    %4664 = vmatpush1.xpose.msra.mxu0 0.0
    %4665 = vmatprep.subr.mxu0 0.0
    %4666 = vmatpush1.xpose.msra.mxu0 0.0
    %4667 = vmatprep.subr.mxu0 0.0
    %4668 = vmatpush1.xpose.msra.mxu0 0.0
    %4669 = vmatprep.subr.mxu0 0.0
    %4670 = vmatpush1.xpose.msra.mxu0 0.0
    %4671 = vmatprep.subr.mxu0 0.0
    %4672 = vmatpush1.xpose.msra.mxu0 0.0
    %4673 = vmatprep.subr.mxu0 0.0
    %4674 = vmatpush1.xpose.msra.mxu0 0.0
    %4675 = vmatprep.subr.mxu0 0.0
    %4676 = vmatpush1.xpose.msra.mxu0 0.0
    %4677 = vmatprep.subr.mxu0 0.0
    %4678 = vmatpush1.xpose.msra.mxu0 0.0
    %4679 = vmatprep.subr.mxu0 0.0
    %4680 = vmatpush1.xpose.msra.mxu0 0.0
    %4681 = vmatprep.subr.mxu0 0.0
    %4682 = vmatpush1.xpose.msra.mxu0 0.0
    %4683 = vmatprep.subr.mxu0 0.0
    %4684 = vmatpush1.xpose.msra.mxu0 0.0
    %4685 = vmatprep.subr.mxu0 0.0
    %4686 = vmatpush1.xpose.msra.mxu0 0.0
    %4687 = vmatprep.subr.mxu0 0.0
    %4688 = vmatpush1.xpose.msra.mxu0 0.0
    %4689 = vmatprep.subr.mxu0 0.0
    %4690 = vmatpush1.xpose.msra.mxu0 0.0
    %4691 = vmatprep.subr.mxu0 0.0
    %4692 = vmatpush1.xpose.msra.mxu0 0.0
    %4693 = vmatprep.subr.mxu0 0.0
    %4694 = vmatpush1.xpose.msra.mxu0 0.0
    %4695 = vmatprep.mubr.f32.mxu0 0.0
    %v4696 = vand.u32 %v4375, 4294901760
    %v4697 = vsub.f32 %v4375, %v4696
    %v4698 = vand.u32 %v4697, 4294901760
    %4699 = vmatmul.mubr.f32.gmra.mrb[0].mxu0 %v4698
    %v4700 = vpop.f32.mrb[0].mxu0
    %v4701 = vadd.f32 %v4624, %v4700
    %v4702 = vpop.f32.mrb[0].mxu0
    %4703 = vdwg.mxu0
    %4704 = vmatprep.subr.mxu0 0.0
    %v4705 = vand.u32 %v936, 4294901760
    %v4706 = vsub.f32 %v936, %v4705
    %v4707 = vand.u32 %v4706, 4294901760
    %4708 = vmatpush1.xpose.msra.mxu0 %v4707
    %4709 = vmatprep.subr.mxu0 0.0
    %v4710 = vand.u32 %v939, 4294901760
    %v4711 = vsub.f32 %v939, %v4710
    %v4712 = vand.u32 %v4711, 4294901760
    %4713 = vmatpush1.xpose.msra.mxu0 %v4712
    %4714 = vmatprep.subr.mxu0 0.0
    %v4715 = vand.u32 %v942, 4294901760
    %v4716 = vsub.f32 %v942, %v4715
    %v4717 = vand.u32 %v4716, 4294901760
    %4718 = vmatpush1.xpose.msra.mxu0 %v4717
    %4719 = vmatprep.subr.mxu0 0.0
    %v4720 = vand.u32 %v945, 4294901760
    %v4721 = vsub.f32 %v945, %v4720
    %v4722 = vand.u32 %v4721, 4294901760
    %4723 = vmatpush1.xpose.msra.mxu0 %v4722
    %4724 = vmatprep.subr.mxu0 0.0
    %4725 = vmatpush1.xpose.msra.mxu0 0.0
    %4726 = vmatprep.subr.mxu0 0.0
    %4727 = vmatpush1.xpose.msra.mxu0 0.0
    %4728 = vmatprep.subr.mxu0 0.0
    %4729 = vmatpush1.xpose.msra.mxu0 0.0
    %4730 = vmatprep.subr.mxu0 0.0
    %4731 = vmatpush1.xpose.msra.mxu0 0.0
    %4732 = vmatprep.subr.mxu0 0.0
    %4733 = vmatpush1.xpose.msra.mxu0 0.0
    %4734 = vmatprep.subr.mxu0 0.0
    %4735 = vmatpush1.xpose.msra.mxu0 0.0
    %4736 = vmatprep.subr.mxu0 0.0
    %4737 = vmatpush1.xpose.msra.mxu0 0.0
    %4738 = vmatprep.subr.mxu0 0.0
    %4739 = vmatpush1.xpose.msra.mxu0 0.0
    %4740 = vmatprep.subr.mxu0 0.0
    %4741 = vmatpush1.xpose.msra.mxu0 0.0
    %4742 = vmatprep.subr.mxu0 0.0
    %4743 = vmatpush1.xpose.msra.mxu0 0.0
    %4744 = vmatprep.subr.mxu0 0.0
    %4745 = vmatpush1.xpose.msra.mxu0 0.0
    %4746 = vmatprep.subr.mxu0 0.0
    %4747 = vmatpush1.xpose.msra.mxu0 0.0
    %4748 = vmatprep.subr.mxu0 0.0
    %4749 = vmatpush1.xpose.msra.mxu0 0.0
    %4750 = vmatprep.subr.mxu0 0.0
    %4751 = vmatpush1.xpose.msra.mxu0 0.0
    %4752 = vmatprep.subr.mxu0 0.0
    %4753 = vmatpush1.xpose.msra.mxu0 0.0
    %4754 = vmatprep.subr.mxu0 0.0
    %4755 = vmatpush1.xpose.msra.mxu0 0.0
    %4756 = vmatprep.subr.mxu0 0.0
    %4757 = vmatpush1.xpose.msra.mxu0 0.0
    %4758 = vmatprep.subr.mxu0 0.0
    %4759 = vmatpush1.xpose.msra.mxu0 0.0
    %4760 = vmatprep.subr.mxu0 0.0
    %4761 = vmatpush1.xpose.msra.mxu0 0.0
    %4762 = vmatprep.subr.mxu0 0.0
    %4763 = vmatpush1.xpose.msra.mxu0 0.0
    %4764 = vmatprep.subr.mxu0 0.0
    %4765 = vmatpush1.xpose.msra.mxu0 0.0
    %4766 = vmatprep.subr.mxu0 0.0
    %4767 = vmatpush1.xpose.msra.mxu0 0.0
    %4768 = vmatprep.subr.mxu0 0.0
    %4769 = vmatpush1.xpose.msra.mxu0 0.0
    %4770 = vmatprep.subr.mxu0 0.0
    %4771 = vmatpush1.xpose.msra.mxu0 0.0
    %4772 = vmatprep.subr.mxu0 0.0
    %4773 = vmatpush1.xpose.msra.mxu0 0.0
    %4774 = vmatprep.subr.mxu0 0.0
    %4775 = vmatpush1.xpose.msra.mxu0 0.0
    %4776 = vmatprep.subr.mxu0 0.0
    %4777 = vmatpush1.xpose.msra.mxu0 0.0
    %4778 = vmatprep.subr.mxu0 0.0
    %4779 = vmatpush1.xpose.msra.mxu0 0.0
    %4780 = vmatprep.mubr.f32.mxu0 0.0
    %v4781 = vand.u32 %v4375, 4294901760
    %4782 = vmatmul.mubr.f32.gmra.mrb[0].mxu0 %v4781
    %v4783 = vpop.f32.mrb[0].mxu0
    %v4784 = vadd.f32 %v4701, %v4783
    %v4785 = vpop.f32.mrb[0].mxu0
    %4786 = vdwg.mxu0
    %4787 = vmatprep.subr.mxu0 0.0
    %v4788 = vand.u32 %v936, 4294901760
    %4789 = vmatpush1.xpose.msra.mxu0 %v4788
    %4790 = vmatprep.subr.mxu0 0.0
    %v4791 = vand.u32 %v939, 4294901760
    %4792 = vmatpush1.xpose.msra.mxu0 %v4791
    %4793 = vmatprep.subr.mxu0 0.0
    %v4794 = vand.u32 %v942, 4294901760
    %4795 = vmatpush1.xpose.msra.mxu0 %v4794
    %4796 = vmatprep.subr.mxu0 0.0
    %v4797 = vand.u32 %v945, 4294901760
    %4798 = vmatpush1.xpose.msra.mxu0 %v4797
    %4799 = vmatprep.subr.mxu0 0.0
    %4800 = vmatpush1.xpose.msra.mxu0 0.0
    %4801 = vmatprep.subr.mxu0 0.0
    %4802 = vmatpush1.xpose.msra.mxu0 0.0
    %4803 = vmatprep.subr.mxu0 0.0
    %4804 = vmatpush1.xpose.msra.mxu0 0.0
    %4805 = vmatprep.subr.mxu0 0.0
    %4806 = vmatpush1.xpose.msra.mxu0 0.0
    %4807 = vmatprep.subr.mxu0 0.0
    %4808 = vmatpush1.xpose.msra.mxu0 0.0
    %4809 = vmatprep.subr.mxu0 0.0
    %4810 = vmatpush1.xpose.msra.mxu0 0.0
    %4811 = vmatprep.subr.mxu0 0.0
    %4812 = vmatpush1.xpose.msra.mxu0 0.0
    %4813 = vmatprep.subr.mxu0 0.0
    %4814 = vmatpush1.xpose.msra.mxu0 0.0
    %4815 = vmatprep.subr.mxu0 0.0
    %4816 = vmatpush1.xpose.msra.mxu0 0.0
    %4817 = vmatprep.subr.mxu0 0.0
    %4818 = vmatpush1.xpose.msra.mxu0 0.0
    %4819 = vmatprep.subr.mxu0 0.0
    %4820 = vmatpush1.xpose.msra.mxu0 0.0
    %4821 = vmatprep.subr.mxu0 0.0
    %4822 = vmatpush1.xpose.msra.mxu0 0.0
    %4823 = vmatprep.subr.mxu0 0.0
    %4824 = vmatpush1.xpose.msra.mxu0 0.0
    %4825 = vmatprep.subr.mxu0 0.0
    %4826 = vmatpush1.xpose.msra.mxu0 0.0
    %4827 = vmatprep.subr.mxu0 0.0
    %4828 = vmatpush1.xpose.msra.mxu0 0.0
    %4829 = vmatprep.subr.mxu0 0.0
    %4830 = vmatpush1.xpose.msra.mxu0 0.0
    %4831 = vmatprep.subr.mxu0 0.0
    %4832 = vmatpush1.xpose.msra.mxu0 0.0
    %4833 = vmatprep.subr.mxu0 0.0
    %4834 = vmatpush1.xpose.msra.mxu0 0.0
    %4835 = vmatprep.subr.mxu0 0.0
    %4836 = vmatpush1.xpose.msra.mxu0 0.0
    %4837 = vmatprep.subr.mxu0 0.0
    %4838 = vmatpush1.xpose.msra.mxu0 0.0
    %4839 = vmatprep.subr.mxu0 0.0
    %4840 = vmatpush1.xpose.msra.mxu0 0.0
    %4841 = vmatprep.subr.mxu0 0.0
    %4842 = vmatpush1.xpose.msra.mxu0 0.0
    %4843 = vmatprep.subr.mxu0 0.0
    %4844 = vmatpush1.xpose.msra.mxu0 0.0
    %4845 = vmatprep.subr.mxu0 0.0
    %4846 = vmatpush1.xpose.msra.mxu0 0.0
    %4847 = vmatprep.subr.mxu0 0.0
    %4848 = vmatpush1.xpose.msra.mxu0 0.0
    %4849 = vmatprep.subr.mxu0 0.0
    %4850 = vmatpush1.xpose.msra.mxu0 0.0
    %4851 = vmatprep.subr.mxu0 0.0
    %4852 = vmatpush1.xpose.msra.mxu0 0.0
    %4853 = vmatprep.subr.mxu0 0.0
    %4854 = vmatpush1.xpose.msra.mxu0 0.0
    %4855 = vmatprep.mubr.f32.mxu0 0.0
    %v4856 = vand.u32 %v4375, 4294901760
    %4857 = vmatmul.mubr.f32.gmra.mrb[0].mxu0 %v4856
    %v4858 = vpop.f32.mrb[0].mxu0
    %v4859 = vadd.f32 %v4784, %v4858
    %v4860 = vpop.f32.mrb[0].mxu0
    %4861 = vdwg.mxu0
    %v4862 = vadd.f32 %v924, %v4859
    %v4863 = vtanh.pop %v4862
    %4864 = vst.msk [vmem:[#allocation4] sm:$0xff] %vm104, %v4863
    %v4865 = vld [vmem:[%s6] sm:$0xff]
    %v4866 = vld [vmem:[%s6 + $0x8] sm:$0xff]
    %v4867 = vld [vmem:[%s6 + $0x10] sm:$0xff]
    %v4868 = vld [vmem:[%s6 + $0x18] sm:$0xff]
    %v4869 = vld [vmem:[%s6 + $0x20] sm:$0xff]
    %v4870 = vld [vmem:[%s6 + $0x28] sm:$0xff]
    %v4871 = vld [vmem:[%s6 + $0x30] sm:$0xff]
    %v4872 = vld [vmem:[%s6 + $0x38] sm:$0xff]
    %v4873 = vld [vmem:[%s6 + $0x40] sm:$0xff]
    %v4874 = vld [vmem:[%s6 + $0x48] sm:$0xff]
    %v4875 = vld [vmem:[%s6 + $0x50] sm:$0xff]
    %v4876 = vld [vmem:[%s6 + $0x58] sm:$0xff]
    %v4877 = vld [vmem:[%s6 + $0x60] sm:$0xff]
    %v4878 = vld [vmem:[%s6 + $0x68] sm:$0xff]
    %v4879 = vld [vmem:[%s6 + $0x70] sm:$0xff]
    %v4880 = vld [vmem:[%s6 + $0x78] sm:$0xff]
    %v4881 = vld [vmem:[%s7] sm:$0x1]
    %v4883 = vlaneseq
    %v4884 = vshrl.u32 %v4883, 7
    %v4885 = vsub.s32 0, %v4884
    %v4886 = vrot.slane %v4881, %v4885
    %v4889 = vsel %vm104, %v4863, 0
    %v4892 = vsel %vm104, %v4865, 0
    %v4895 = vsel %vm104, %v4866, 0
    %v4898 = vsel %vm104, %v4867, 0
    %v4901 = vsel %vm104, %v4868, 0
    %v4904 = vsel %vm104, %v4869, 0
    %v4907 = vsel %vm104, %v4870, 0
    %v4910 = vsel %vm104, %v4871, 0
    %v4913 = vsel %vm104, %v4872, 0
    %v4916 = vsel %vm104, %v4873, 0
    %v4919 = vsel %vm104, %v4874, 0
    %v4922 = vsel %vm104, %v4875, 0
    %v4925 = vsel %vm104, %v4876, 0
    %v4928 = vsel %vm104, %v4877, 0
    %v4931 = vsel %vm104, %v4878, 0
    %v4934 = vsel %vm104, %v4879, 0
    %v4937 = vsel %vm104, %v4880, 0
    %4939 = vmatprep.subr.mxu0 0.0
    %v4940 = vand.u32 %v4892, 4294901760
    %4941 = vmatpush1.xpose.msra.mxu0 %v4940
    %4942 = vmatprep.subr.mxu0 0.0
    %v4943 = vand.u32 %v4895, 4294901760
    %4944 = vmatpush1.xpose.msra.mxu0 %v4943
    %4945 = vmatprep.subr.mxu0 0.0
    %v4946 = vand.u32 %v4898, 4294901760
    %4947 = vmatpush1.xpose.msra.mxu0 %v4946
    %4948 = vmatprep.subr.mxu0 0.0
    %v4949 = vand.u32 %v4901, 4294901760
    %4950 = vmatpush1.xpose.msra.mxu0 %v4949
    %4951 = vmatprep.subr.mxu0 0.0
    %v4952 = vand.u32 %v4904, 4294901760
    %4953 = vmatpush1.xpose.msra.mxu0 %v4952
    %4954 = vmatprep.subr.mxu0 0.0
    %v4955 = vand.u32 %v4907, 4294901760
    %4956 = vmatpush1.xpose.msra.mxu0 %v4955
    %4957 = vmatprep.subr.mxu0 0.0
    %v4958 = vand.u32 %v4910, 4294901760
    %4959 = vmatpush1.xpose.msra.mxu0 %v4958
    %4960 = vmatprep.subr.mxu0 0.0
    %v4961 = vand.u32 %v4913, 4294901760
    %4962 = vmatpush1.xpose.msra.mxu0 %v4961
    %4963 = vmatprep.subr.mxu0 0.0
    %v4964 = vand.u32 %v4916, 4294901760
    %4965 = vmatpush1.xpose.msra.mxu0 %v4964
    %4966 = vmatprep.subr.mxu0 0.0
    %v4967 = vand.u32 %v4919, 4294901760
    %4968 = vmatpush1.xpose.msra.mxu0 %v4967
    %4969 = vmatprep.subr.mxu0 0.0
    %v4970 = vand.u32 %v4922, 4294901760
    %4971 = vmatpush1.xpose.msra.mxu0 %v4970
    %4972 = vmatprep.subr.mxu0 0.0
    %v4973 = vand.u32 %v4925, 4294901760
    %4974 = vmatpush1.xpose.msra.mxu0 %v4973
    %4975 = vmatprep.subr.mxu0 0.0
    %v4976 = vand.u32 %v4928, 4294901760
    %4977 = vmatpush1.xpose.msra.mxu0 %v4976
    %4978 = vmatprep.subr.mxu0 0.0
    %v4979 = vand.u32 %v4931, 4294901760
    %4980 = vmatpush1.xpose.msra.mxu0 %v4979
    %4981 = vmatprep.subr.mxu0 0.0
    %v4982 = vand.u32 %v4934, 4294901760
    %4983 = vmatpush1.xpose.msra.mxu0 %v4982
    %4984 = vmatprep.subr.mxu0 0.0
    %v4985 = vand.u32 %v4937, 4294901760
    %4986 = vmatpush1.xpose.msra.mxu0 %v4985
    %4987 = vmatprep.subr.mxu0 0.0
    %4988 = vmatpush1.xpose.msra.mxu0 0.0
    %4989 = vmatprep.subr.mxu0 0.0
    %4990 = vmatpush1.xpose.msra.mxu0 0.0
    %4991 = vmatprep.subr.mxu0 0.0
    %4992 = vmatpush1.xpose.msra.mxu0 0.0
    %4993 = vmatprep.subr.mxu0 0.0
    %4994 = vmatpush1.xpose.msra.mxu0 0.0
    %4995 = vmatprep.subr.mxu0 0.0
    %4996 = vmatpush1.xpose.msra.mxu0 0.0
    %4997 = vmatprep.subr.mxu0 0.0
    %4998 = vmatpush1.xpose.msra.mxu0 0.0
    %4999 = vmatprep.subr.mxu0 0.0
    %5000 = vmatpush1.xpose.msra.mxu0 0.0
    %5001 = vmatprep.subr.mxu0 0.0
    %5002 = vmatpush1.xpose.msra.mxu0 0.0
    %5003 = vmatprep.subr.mxu0 0.0
    %5004 = vmatpush1.xpose.msra.mxu0 0.0
    %5005 = vmatprep.subr.mxu0 0.0
    %5006 = vmatpush1.xpose.msra.mxu0 0.0
    %5007 = vmatprep.subr.mxu0 0.0
    %5008 = vmatpush1.xpose.msra.mxu0 0.0
    %5009 = vmatprep.subr.mxu0 0.0
    %5010 = vmatpush1.xpose.msra.mxu0 0.0
    %5011 = vmatprep.subr.mxu0 0.0
    %5012 = vmatpush1.xpose.msra.mxu0 0.0
    %5013 = vmatprep.subr.mxu0 0.0
    %5014 = vmatpush1.xpose.msra.mxu0 0.0
    %5015 = vmatprep.subr.mxu0 0.0
    %5016 = vmatpush1.xpose.msra.mxu0 0.0
    %5017 = vmatprep.subr.mxu0 0.0
    %5018 = vmatpush1.xpose.msra.mxu0 0.0
    %5019 = vmatprep.mubr.f32.mxu0 0.0
    %v5020 = vand.u32 %v1435, 4294901760
    %v5021 = vsub.f32 %v1435, %v5020
    %v5022 = vand.u32 %v5021, 4294901760
    %v5023 = vsub.f32 %v5021, %v5022
    %v5024 = vand.u32 %v5023, 4294901760
    %5025 = vmatmul.mubr.f32.gmra.mrb[0].mxu0 %v5024
    %v5026 = vpop.f32.mrb[0].mxu0
    %v5027 = vadd.f32 %v4886, %v5026
    %v5028 = vpop.f32.mrb[0].mxu0
    %5029 = vmatprep.mubr.f32.mxu0 0.0
    %v5030 = vand.u32 %v1925, 4294901760
    %v5031 = vsub.f32 %v1925, %v5030
    %v5032 = vand.u32 %v5031, 4294901760
    %v5033 = vsub.f32 %v5031, %v5032
    %v5034 = vand.u32 %v5033, 4294901760
    %5035 = vmatmul.mubr.f32.gmra.mrb[0].mxu0 %v5034
    %v5036 = vpop.f32.mrb[0].mxu0
    %v5037 = vadd.f32 %v4886, %v5036
    %v5038 = vpop.f32.mrb[0].mxu0
    %5039 = vmatprep.mubr.f32.mxu0 0.0
    %v5040 = vand.u32 %v2415, 4294901760
    %v5041 = vsub.f32 %v2415, %v5040
    %v5042 = vand.u32 %v5041, 4294901760
    %v5043 = vsub.f32 %v5041, %v5042
    %v5044 = vand.u32 %v5043, 4294901760
    %5045 = vmatmul.mubr.f32.gmra.mrb[0].mxu0 %v5044
    %v5046 = vpop.f32.mrb[0].mxu0
    %v5047 = vadd.f32 %v4886, %v5046
    %v5048 = vpop.f32.mrb[0].mxu0
    %5049 = vmatprep.mubr.f32.mxu0 0.0
    %v5050 = vand.u32 %v2905, 4294901760
    %v5051 = vsub.f32 %v2905, %v5050
    %v5052 = vand.u32 %v5051, 4294901760
    %v5053 = vsub.f32 %v5051, %v5052
    %v5054 = vand.u32 %v5053, 4294901760
    %5055 = vmatmul.mubr.f32.gmra.mrb[0].mxu0 %v5054
    %v5056 = vpop.f32.mrb[0].mxu0
    %v5057 = vadd.f32 %v4886, %v5056
    %v5058 = vpop.f32.mrb[0].mxu0
    %5059 = vmatprep.mubr.f32.mxu0 0.0
    %v5060 = vand.u32 %v3395, 4294901760
    %v5061 = vsub.f32 %v3395, %v5060
    %v5062 = vand.u32 %v5061, 4294901760
    %v5063 = vsub.f32 %v5061, %v5062
    %v5064 = vand.u32 %v5063, 4294901760
    %5065 = vmatmul.mubr.f32.gmra.mrb[0].mxu0 %v5064
    %v5066 = vpop.f32.mrb[0].mxu0
    %v5067 = vadd.f32 %v4886, %v5066
    %v5068 = vpop.f32.mrb[0].mxu0
    %5069 = vmatprep.mubr.f32.mxu0 0.0
    %v5070 = vand.u32 %v3885, 4294901760
    %v5071 = vsub.f32 %v3885, %v5070
    %v5072 = vand.u32 %v5071, 4294901760
    %v5073 = vsub.f32 %v5071, %v5072
    %v5074 = vand.u32 %v5073, 4294901760
    %5075 = vmatmul.mubr.f32.gmra.mrb[0].mxu0 %v5074
    %v5076 = vpop.f32.mrb[0].mxu0
    %v5077 = vadd.f32 %v4886, %v5076
    %v5078 = vpop.f32.mrb[0].mxu0
    %5079 = vmatprep.mubr.f32.mxu0 0.0
    %v5080 = vand.u32 %v4375, 4294901760
    %v5081 = vsub.f32 %v4375, %v5080
    %v5082 = vand.u32 %v5081, 4294901760
    %v5083 = vsub.f32 %v5081, %v5082
    %v5084 = vand.u32 %v5083, 4294901760
    %5085 = vmatmul.mubr.f32.gmra.mrb[0].mxu0 %v5084
    %v5086 = vpop.f32.mrb[0].mxu0
    %v5087 = vadd.f32 %v4886, %v5086
    %v5088 = vpop.f32.mrb[0].mxu0
    %5089 = vmatprep.mubr.f32.mxu0 0.0
    %v5090 = vand.u32 %v4889, 4294901760
    %v5091 = vsub.f32 %v4889, %v5090
    %v5092 = vand.u32 %v5091, 4294901760
    %v5093 = vsub.f32 %v5091, %v5092
    %v5094 = vand.u32 %v5093, 4294901760
    %5095 = vmatmul.mubr.f32.gmra.mrb[0].mxu0 %v5094
    %v5096 = vpop.f32.mrb[0].mxu0
    %v5097 = vadd.f32 %v4886, %v5096
    %v5098 = vpop.f32.mrb[0].mxu0
    %5099 = vdwg.mxu0
    %5100 = vmatprep.subr.mxu0 0.0
    %v5101 = vand.u32 %v4892, 4294901760
    %v5102 = vsub.f32 %v4892, %v5101
    %v5103 = vand.u32 %v5102, 4294901760
    %v5104 = vsub.f32 %v5102, %v5103
    %v5105 = vand.u32 %v5104, 4294901760
    %5106 = vmatpush1.xpose.msra.mxu0 %v5105
    %5107 = vmatprep.subr.mxu0 0.0
    %v5108 = vand.u32 %v4895, 4294901760
    %v5109 = vsub.f32 %v4895, %v5108
    %v5110 = vand.u32 %v5109, 4294901760
    %v5111 = vsub.f32 %v5109, %v5110
    %v5112 = vand.u32 %v5111, 4294901760
    %5113 = vmatpush1.xpose.msra.mxu0 %v5112
    %5114 = vmatprep.subr.mxu0 0.0
    %v5115 = vand.u32 %v4898, 4294901760
    %v5116 = vsub.f32 %v4898, %v5115
    %v5117 = vand.u32 %v5116, 4294901760
    %v5118 = vsub.f32 %v5116, %v5117
    %v5119 = vand.u32 %v5118, 4294901760
    %5120 = vmatpush1.xpose.msra.mxu0 %v5119
    %5121 = vmatprep.subr.mxu0 0.0
    %v5122 = vand.u32 %v4901, 4294901760
    %v5123 = vsub.f32 %v4901, %v5122
    %v5124 = vand.u32 %v5123, 4294901760
    %v5125 = vsub.f32 %v5123, %v5124
    %v5126 = vand.u32 %v5125, 4294901760
    %5127 = vmatpush1.xpose.msra.mxu0 %v5126
    %5128 = vmatprep.subr.mxu0 0.0
    %v5129 = vand.u32 %v4904, 4294901760
    %v5130 = vsub.f32 %v4904, %v5129
    %v5131 = vand.u32 %v5130, 4294901760
    %v5132 = vsub.f32 %v5130, %v5131
    %v5133 = vand.u32 %v5132, 4294901760
    %5134 = vmatpush1.xpose.msra.mxu0 %v5133
    %5135 = vmatprep.subr.mxu0 0.0
    %v5136 = vand.u32 %v4907, 4294901760
    %v5137 = vsub.f32 %v4907, %v5136
    %v5138 = vand.u32 %v5137, 4294901760
    %v5139 = vsub.f32 %v5137, %v5138
    %v5140 = vand.u32 %v5139, 4294901760
    %5141 = vmatpush1.xpose.msra.mxu0 %v5140
    %5142 = vmatprep.subr.mxu0 0.0
    %v5143 = vand.u32 %v4910, 4294901760
    %v5144 = vsub.f32 %v4910, %v5143
    %v5145 = vand.u32 %v5144, 4294901760
    %v5146 = vsub.f32 %v5144, %v5145
    %v5147 = vand.u32 %v5146, 4294901760
    %5148 = vmatpush1.xpose.msra.mxu0 %v5147
    %5149 = vmatprep.subr.mxu0 0.0
    %v5150 = vand.u32 %v4913, 4294901760
    %v5151 = vsub.f32 %v4913, %v5150
    %v5152 = vand.u32 %v5151, 4294901760
    %v5153 = vsub.f32 %v5151, %v5152
    %v5154 = vand.u32 %v5153, 4294901760
    %5155 = vmatpush1.xpose.msra.mxu0 %v5154
    %5156 = vmatprep.subr.mxu0 0.0
    %v5157 = vand.u32 %v4916, 4294901760
    %v5158 = vsub.f32 %v4916, %v5157
    %v5159 = vand.u32 %v5158, 4294901760
    %v5160 = vsub.f32 %v5158, %v5159
    %v5161 = vand.u32 %v5160, 4294901760
    %5162 = vmatpush1.xpose.msra.mxu0 %v5161
    %5163 = vmatprep.subr.mxu0 0.0
    %v5164 = vand.u32 %v4919, 4294901760
    %v5165 = vsub.f32 %v4919, %v5164
    %v5166 = vand.u32 %v5165, 4294901760
    %v5167 = vsub.f32 %v5165, %v5166
    %v5168 = vand.u32 %v5167, 4294901760
    %5169 = vmatpush1.xpose.msra.mxu0 %v5168
    %5170 = vmatprep.subr.mxu0 0.0
    %v5171 = vand.u32 %v4922, 4294901760
    %v5172 = vsub.f32 %v4922, %v5171
    %v5173 = vand.u32 %v5172, 4294901760
    %v5174 = vsub.f32 %v5172, %v5173
    %v5175 = vand.u32 %v5174, 4294901760
    %5176 = vmatpush1.xpose.msra.mxu0 %v5175
    %5177 = vmatprep.subr.mxu0 0.0
    %v5178 = vand.u32 %v4925, 4294901760
    %v5179 = vsub.f32 %v4925, %v5178
    %v5180 = vand.u32 %v5179, 4294901760
    %v5181 = vsub.f32 %v5179, %v5180
    %v5182 = vand.u32 %v5181, 4294901760
    %5183 = vmatpush1.xpose.msra.mxu0 %v5182
    %5184 = vmatprep.subr.mxu0 0.0
    %v5185 = vand.u32 %v4928, 4294901760
    %v5186 = vsub.f32 %v4928, %v5185
    %v5187 = vand.u32 %v5186, 4294901760
    %v5188 = vsub.f32 %v5186, %v5187
    %v5189 = vand.u32 %v5188, 4294901760
    %5190 = vmatpush1.xpose.msra.mxu0 %v5189
    %5191 = vmatprep.subr.mxu0 0.0
    %v5192 = vand.u32 %v4931, 4294901760
    %v5193 = vsub.f32 %v4931, %v5192
    %v5194 = vand.u32 %v5193, 4294901760
    %v5195 = vsub.f32 %v5193, %v5194
    %v5196 = vand.u32 %v5195, 4294901760
    %5197 = vmatpush1.xpose.msra.mxu0 %v5196
    %5198 = vmatprep.subr.mxu0 0.0
    %v5199 = vand.u32 %v4934, 4294901760
    %v5200 = vsub.f32 %v4934, %v5199
    %v5201 = vand.u32 %v5200, 4294901760
    %v5202 = vsub.f32 %v5200, %v5201
    %v5203 = vand.u32 %v5202, 4294901760
    %5204 = vmatpush1.xpose.msra.mxu0 %v5203
    %5205 = vmatprep.subr.mxu0 0.0
    %v5206 = vand.u32 %v4937, 4294901760
    %v5207 = vsub.f32 %v4937, %v5206
    %v5208 = vand.u32 %v5207, 4294901760
    %v5209 = vsub.f32 %v5207, %v5208
    %v5210 = vand.u32 %v5209, 4294901760
    %5211 = vmatpush1.xpose.msra.mxu0 %v5210
    %5212 = vmatprep.subr.mxu0 0.0
    %5213 = vmatpush1.xpose.msra.mxu0 0.0
    %5214 = vmatprep.subr.mxu0 0.0
    %5215 = vmatpush1.xpose.msra.mxu0 0.0
    %5216 = vmatprep.subr.mxu0 0.0
    %5217 = vmatpush1.xpose.msra.mxu0 0.0
    %5218 = vmatprep.subr.mxu0 0.0
    %5219 = vmatpush1.xpose.msra.mxu0 0.0
    %5220 = vmatprep.subr.mxu0 0.0
    %5221 = vmatpush1.xpose.msra.mxu0 0.0
    %5222 = vmatprep.subr.mxu0 0.0
    %5223 = vmatpush1.xpose.msra.mxu0 0.0
    %5224 = vmatprep.subr.mxu0 0.0
    %5225 = vmatpush1.xpose.msra.mxu0 0.0
    %5226 = vmatprep.subr.mxu0 0.0
    %5227 = vmatpush1.xpose.msra.mxu0 0.0
    %5228 = vmatprep.subr.mxu0 0.0
    %5229 = vmatpush1.xpose.msra.mxu0 0.0
    %5230 = vmatprep.subr.mxu0 0.0
    %5231 = vmatpush1.xpose.msra.mxu0 0.0
    %5232 = vmatprep.subr.mxu0 0.0
    %5233 = vmatpush1.xpose.msra.mxu0 0.0
    %5234 = vmatprep.subr.mxu0 0.0
    %5235 = vmatpush1.xpose.msra.mxu0 0.0
    %5236 = vmatprep.subr.mxu0 0.0
    %5237 = vmatpush1.xpose.msra.mxu0 0.0
    %5238 = vmatprep.subr.mxu0 0.0
    %5239 = vmatpush1.xpose.msra.mxu0 0.0
    %5240 = vmatprep.subr.mxu0 0.0
    %5241 = vmatpush1.xpose.msra.mxu0 0.0
    %5242 = vmatprep.subr.mxu0 0.0
    %5243 = vmatpush1.xpose.msra.mxu0 0.0
    %5244 = vmatprep.mubr.f32.mxu0 0.0
    %v5245 = vand.u32 %v1435, 4294901760
    %5246 = vmatmul.mubr.f32.gmra.mrb[0].mxu0 %v5245
    %v5247 = vpop.f32.mrb[0].mxu0
    %v5248 = vadd.f32 %v5027, %v5247
    %v5249 = vpop.f32.mrb[0].mxu0
    %5250 = vmatprep.mubr.f32.mxu0 0.0
    %v5251 = vand.u32 %v1925, 4294901760
    %5252 = vmatmul.mubr.f32.gmra.mrb[0].mxu0 %v5251
    %v5253 = vpop.f32.mrb[0].mxu0
    %v5254 = vadd.f32 %v5037, %v5253
    %v5255 = vpop.f32.mrb[0].mxu0
    %5256 = vmatprep.mubr.f32.mxu0 0.0
    %v5257 = vand.u32 %v2415, 4294901760
    %5258 = vmatmul.mubr.f32.gmra.mrb[0].mxu0 %v5257
    %v5259 = vpop.f32.mrb[0].mxu0
    %v5260 = vadd.f32 %v5047, %v5259
    %v5261 = vpop.f32.mrb[0].mxu0
    %5262 = vmatprep.mubr.f32.mxu0 0.0
    %v5263 = vand.u32 %v2905, 4294901760
    %5264 = vmatmul.mubr.f32.gmra.mrb[0].mxu0 %v5263
    %v5265 = vpop.f32.mrb[0].mxu0
    %v5266 = vadd.f32 %v5057, %v5265
    %v5267 = vpop.f32.mrb[0].mxu0
    %5268 = vmatprep.mubr.f32.mxu0 0.0
    %v5269 = vand.u32 %v3395, 4294901760
    %5270 = vmatmul.mubr.f32.gmra.mrb[0].mxu0 %v5269
    %v5271 = vpop.f32.mrb[0].mxu0
    %v5272 = vadd.f32 %v5067, %v5271
    %v5273 = vpop.f32.mrb[0].mxu0
    %5274 = vmatprep.mubr.f32.mxu0 0.0
    %v5275 = vand.u32 %v3885, 4294901760
    %5276 = vmatmul.mubr.f32.gmra.mrb[0].mxu0 %v5275
    %v5277 = vpop.f32.mrb[0].mxu0
    %v5278 = vadd.f32 %v5077, %v5277
    %v5279 = vpop.f32.mrb[0].mxu0
    %5280 = vmatprep.mubr.f32.mxu0 0.0
    %v5281 = vand.u32 %v4375, 4294901760
    %5282 = vmatmul.mubr.f32.gmra.mrb[0].mxu0 %v5281
    %v5283 = vpop.f32.mrb[0].mxu0
    %v5284 = vadd.f32 %v5087, %v5283
    %v5285 = vpop.f32.mrb[0].mxu0
    %5286 = vmatprep.mubr.f32.mxu0 0.0
    %v5287 = vand.u32 %v4889, 4294901760
    %5288 = vmatmul.mubr.f32.gmra.mrb[0].mxu0 %v5287
    %v5289 = vpop.f32.mrb[0].mxu0
    %v5290 = vadd.f32 %v5097, %v5289
    %v5291 = vpop.f32.mrb[0].mxu0
    %5292 = vdwg.mxu0
    %5293 = vmatprep.subr.mxu0 0.0
    %v5294 = vand.u32 %v4892, 4294901760
    %v5295 = vsub.f32 %v4892, %v5294
    %5296 = vmatpush1.xpose.msra.mxu0 %v5295
    %5297 = vmatprep.subr.mxu0 0.0
    %v5298 = vand.u32 %v4895, 4294901760
    %v5299 = vsub.f32 %v4895, %v5298
    %5300 = vmatpush1.xpose.msra.mxu0 %v5299
    %5301 = vmatprep.subr.mxu0 0.0
    %v5302 = vand.u32 %v4898, 4294901760
    %v5303 = vsub.f32 %v4898, %v5302
    %5304 = vmatpush1.xpose.msra.mxu0 %v5303
    %5305 = vmatprep.subr.mxu0 0.0
    %v5306 = vand.u32 %v4901, 4294901760
    %v5307 = vsub.f32 %v4901, %v5306
    %5308 = vmatpush1.xpose.msra.mxu0 %v5307
    %5309 = vmatprep.subr.mxu0 0.0
    %v5310 = vand.u32 %v4904, 4294901760
    %v5311 = vsub.f32 %v4904, %v5310
    %5312 = vmatpush1.xpose.msra.mxu0 %v5311
    %5313 = vmatprep.subr.mxu0 0.0
    %v5314 = vand.u32 %v4907, 4294901760
    %v5315 = vsub.f32 %v4907, %v5314
    %5316 = vmatpush1.xpose.msra.mxu0 %v5315
    %5317 = vmatprep.subr.mxu0 0.0
    %v5318 = vand.u32 %v4910, 4294901760
    %v5319 = vsub.f32 %v4910, %v5318
    %5320 = vmatpush1.xpose.msra.mxu0 %v5319
    %5321 = vmatprep.subr.mxu0 0.0
    %v5322 = vand.u32 %v4913, 4294901760
    %v5323 = vsub.f32 %v4913, %v5322
    %5324 = vmatpush1.xpose.msra.mxu0 %v5323
    %5325 = vmatprep.subr.mxu0 0.0
    %v5326 = vand.u32 %v4916, 4294901760
    %v5327 = vsub.f32 %v4916, %v5326
    %5328 = vmatpush1.xpose.msra.mxu0 %v5327
    %5329 = vmatprep.subr.mxu0 0.0
    %v5330 = vand.u32 %v4919, 4294901760
    %v5331 = vsub.f32 %v4919, %v5330
    %5332 = vmatpush1.xpose.msra.mxu0 %v5331
    %5333 = vmatprep.subr.mxu0 0.0
    %v5334 = vand.u32 %v4922, 4294901760
    %v5335 = vsub.f32 %v4922, %v5334
    %5336 = vmatpush1.xpose.msra.mxu0 %v5335
    %5337 = vmatprep.subr.mxu0 0.0
    %v5338 = vand.u32 %v4925, 4294901760
    %v5339 = vsub.f32 %v4925, %v5338
    %5340 = vmatpush1.xpose.msra.mxu0 %v5339
    %5341 = vmatprep.subr.mxu0 0.0
    %v5342 = vand.u32 %v4928, 4294901760
    %v5343 = vsub.f32 %v4928, %v5342
    %5344 = vmatpush1.xpose.msra.mxu0 %v5343
    %5345 = vmatprep.subr.mxu0 0.0
    %v5346 = vand.u32 %v4931, 4294901760
    %v5347 = vsub.f32 %v4931, %v5346
    %5348 = vmatpush1.xpose.msra.mxu0 %v5347
    %5349 = vmatprep.subr.mxu0 0.0
    %v5350 = vand.u32 %v4934, 4294901760
    %v5351 = vsub.f32 %v4934, %v5350
    %5352 = vmatpush1.xpose.msra.mxu0 %v5351
    %5353 = vmatprep.subr.mxu0 0.0
    %v5354 = vand.u32 %v4937, 4294901760
    %v5355 = vsub.f32 %v4937, %v5354
    %5356 = vmatpush1.xpose.msra.mxu0 %v5355
    %5357 = vmatprep.subr.mxu0 0.0
    %5358 = vmatpush1.xpose.msra.mxu0 0.0
    %5359 = vmatprep.subr.mxu0 0.0
    %5360 = vmatpush1.xpose.msra.mxu0 0.0
    %5361 = vmatprep.subr.mxu0 0.0
    %5362 = vmatpush1.xpose.msra.mxu0 0.0
    %5363 = vmatprep.subr.mxu0 0.0
    %5364 = vmatpush1.xpose.msra.mxu0 0.0
    %5365 = vmatprep.subr.mxu0 0.0
    %5366 = vmatpush1.xpose.msra.mxu0 0.0
    %5367 = vmatprep.subr.mxu0 0.0
    %5368 = vmatpush1.xpose.msra.mxu0 0.0
    %5369 = vmatprep.subr.mxu0 0.0
    %5370 = vmatpush1.xpose.msra.mxu0 0.0
    %5371 = vmatprep.subr.mxu0 0.0
    %5372 = vmatpush1.xpose.msra.mxu0 0.0
    %5373 = vmatprep.subr.mxu0 0.0
    %5374 = vmatpush1.xpose.msra.mxu0 0.0
    %5375 = vmatprep.subr.mxu0 0.0
    %5376 = vmatpush1.xpose.msra.mxu0 0.0
    %5377 = vmatprep.subr.mxu0 0.0
    %5378 = vmatpush1.xpose.msra.mxu0 0.0
    %5379 = vmatprep.subr.mxu0 0.0
    %5380 = vmatpush1.xpose.msra.mxu0 0.0
    %5381 = vmatprep.subr.mxu0 0.0
    %5382 = vmatpush1.xpose.msra.mxu0 0.0
    %5383 = vmatprep.subr.mxu0 0.0
    %5384 = vmatpush1.xpose.msra.mxu0 0.0
    %5385 = vmatprep.subr.mxu0 0.0
    %5386 = vmatpush1.xpose.msra.mxu0 0.0
    %5387 = vmatprep.subr.mxu0 0.0
    %5388 = vmatpush1.xpose.msra.mxu0 0.0
    %5389 = vmatprep.mubr.f32.mxu0 0.0
    %v5390 = vand.u32 %v1435, 4294901760
    %v5391 = vsub.f32 %v1435, %v5390
    %5392 = vmatmul.mubr.f32.gmra.mrb[0].mxu0 %v5391
    %v5393 = vpop.f32.mrb[0].mxu0
    %v5394 = vadd.f32 %v5248, %v5393
    %v5395 = vpop.f32.mrb[0].mxu0
    %5396 = vmatprep.mubr.f32.mxu0 0.0
    %v5397 = vand.u32 %v1925, 4294901760
    %v5398 = vsub.f32 %v1925, %v5397
    %5399 = vmatmul.mubr.f32.gmra.mrb[0].mxu0 %v5398
    %v5400 = vpop.f32.mrb[0].mxu0
    %v5401 = vadd.f32 %v5254, %v5400
    %v5402 = vpop.f32.mrb[0].mxu0
    %5403 = vmatprep.mubr.f32.mxu0 0.0
    %v5404 = vand.u32 %v2415, 4294901760
    %v5405 = vsub.f32 %v2415, %v5404
    %5406 = vmatmul.mubr.f32.gmra.mrb[0].mxu0 %v5405
    %v5407 = vpop.f32.mrb[0].mxu0
    %v5408 = vadd.f32 %v5260, %v5407
    %v5409 = vpop.f32.mrb[0].mxu0
    %5410 = vmatprep.mubr.f32.mxu0 0.0
    %v5411 = vand.u32 %v2905, 4294901760
    %v5412 = vsub.f32 %v2905, %v5411
    %5413 = vmatmul.mubr.f32.gmra.mrb[0].mxu0 %v5412
    %v5414 = vpop.f32.mrb[0].mxu0
    %v5415 = vadd.f32 %v5266, %v5414
    %v5416 = vpop.f32.mrb[0].mxu0
    %5417 = vmatprep.mubr.f32.mxu0 0.0
    %v5418 = vand.u32 %v3395, 4294901760
    %v5419 = vsub.f32 %v3395, %v5418
    %5420 = vmatmul.mubr.f32.gmra.mrb[0].mxu0 %v5419
    %v5421 = vpop.f32.mrb[0].mxu0
    %v5422 = vadd.f32 %v5272, %v5421
    %v5423 = vpop.f32.mrb[0].mxu0
    %5424 = vmatprep.mubr.f32.mxu0 0.0
    %v5425 = vand.u32 %v3885, 4294901760
    %v5426 = vsub.f32 %v3885, %v5425
    %5427 = vmatmul.mubr.f32.gmra.mrb[0].mxu0 %v5426
    %v5428 = vpop.f32.mrb[0].mxu0
    %v5429 = vadd.f32 %v5278, %v5428
    %v5430 = vpop.f32.mrb[0].mxu0
    %5431 = vmatprep.mubr.f32.mxu0 0.0
    %v5432 = vand.u32 %v4375, 4294901760
    %v5433 = vsub.f32 %v4375, %v5432
    %5434 = vmatmul.mubr.f32.gmra.mrb[0].mxu0 %v5433
    %v5435 = vpop.f32.mrb[0].mxu0
    %v5436 = vadd.f32 %v5284, %v5435
    %v5437 = vpop.f32.mrb[0].mxu0
    %5438 = vmatprep.mubr.f32.mxu0 0.0
    %v5439 = vand.u32 %v4889, 4294901760
    %v5440 = vsub.f32 %v4889, %v5439
    %5441 = vmatmul.mubr.f32.gmra.mrb[0].mxu0 %v5440
    %v5442 = vpop.f32.mrb[0].mxu0
    %v5443 = vadd.f32 %v5290, %v5442
    %v5444 = vpop.f32.mrb[0].mxu0
    %5445 = vdwg.mxu0
    %5446 = vmatprep.subr.mxu0 0.0
    %v5447 = vand.u32 %v4892, 4294901760
    %5448 = vmatpush1.xpose.msra.mxu0 %v5447
    %5449 = vmatprep.subr.mxu0 0.0
    %v5450 = vand.u32 %v4895, 4294901760
    %5451 = vmatpush1.xpose.msra.mxu0 %v5450
    %5452 = vmatprep.subr.mxu0 0.0
    %v5453 = vand.u32 %v4898, 4294901760
    %5454 = vmatpush1.xpose.msra.mxu0 %v5453
    %5455 = vmatprep.subr.mxu0 0.0
    %v5456 = vand.u32 %v4901, 4294901760
    %5457 = vmatpush1.xpose.msra.mxu0 %v5456
    %5458 = vmatprep.subr.mxu0 0.0
    %v5459 = vand.u32 %v4904, 4294901760
    %5460 = vmatpush1.xpose.msra.mxu0 %v5459
    %5461 = vmatprep.subr.mxu0 0.0
    %v5462 = vand.u32 %v4907, 4294901760
    %5463 = vmatpush1.xpose.msra.mxu0 %v5462
    %5464 = vmatprep.subr.mxu0 0.0
    %v5465 = vand.u32 %v4910, 4294901760
    %5466 = vmatpush1.xpose.msra.mxu0 %v5465
    %5467 = vmatprep.subr.mxu0 0.0
    %v5468 = vand.u32 %v4913, 4294901760
    %5469 = vmatpush1.xpose.msra.mxu0 %v5468
    %5470 = vmatprep.subr.mxu0 0.0
    %v5471 = vand.u32 %v4916, 4294901760
    %5472 = vmatpush1.xpose.msra.mxu0 %v5471
    %5473 = vmatprep.subr.mxu0 0.0
    %v5474 = vand.u32 %v4919, 4294901760
    %5475 = vmatpush1.xpose.msra.mxu0 %v5474
    %5476 = vmatprep.subr.mxu0 0.0
    %v5477 = vand.u32 %v4922, 4294901760
    %5478 = vmatpush1.xpose.msra.mxu0 %v5477
    %5479 = vmatprep.subr.mxu0 0.0
    %v5480 = vand.u32 %v4925, 4294901760
    %5481 = vmatpush1.xpose.msra.mxu0 %v5480
    %5482 = vmatprep.subr.mxu0 0.0
    %v5483 = vand.u32 %v4928, 4294901760
    %5484 = vmatpush1.xpose.msra.mxu0 %v5483
    %5485 = vmatprep.subr.mxu0 0.0
    %v5486 = vand.u32 %v4931, 4294901760
    %5487 = vmatpush1.xpose.msra.mxu0 %v5486
    %5488 = vmatprep.subr.mxu0 0.0
    %v5489 = vand.u32 %v4934, 4294901760
    %5490 = vmatpush1.xpose.msra.mxu0 %v5489
    %5491 = vmatprep.subr.mxu0 0.0
    %v5492 = vand.u32 %v4937, 4294901760
    %5493 = vmatpush1.xpose.msra.mxu0 %v5492
    %5494 = vmatprep.subr.mxu0 0.0
    %5495 = vmatpush1.xpose.msra.mxu0 0.0
    %5496 = vmatprep.subr.mxu0 0.0
    %5497 = vmatpush1.xpose.msra.mxu0 0.0
    %5498 = vmatprep.subr.mxu0 0.0
    %5499 = vmatpush1.xpose.msra.mxu0 0.0
    %5500 = vmatprep.subr.mxu0 0.0
    %5501 = vmatpush1.xpose.msra.mxu0 0.0
    %5502 = vmatprep.subr.mxu0 0.0
    %5503 = vmatpush1.xpose.msra.mxu0 0.0
    %5504 = vmatprep.subr.mxu0 0.0
    %5505 = vmatpush1.xpose.msra.mxu0 0.0
    %5506 = vmatprep.subr.mxu0 0.0
    %5507 = vmatpush1.xpose.msra.mxu0 0.0
    %5508 = vmatprep.subr.mxu0 0.0
    %5509 = vmatpush1.xpose.msra.mxu0 0.0
    %5510 = vmatprep.subr.mxu0 0.0
    %5511 = vmatpush1.xpose.msra.mxu0 0.0
    %5512 = vmatprep.subr.mxu0 0.0
    %5513 = vmatpush1.xpose.msra.mxu0 0.0
    %5514 = vmatprep.subr.mxu0 0.0
    %5515 = vmatpush1.xpose.msra.mxu0 0.0
    %5516 = vmatprep.subr.mxu0 0.0
    %5517 = vmatpush1.xpose.msra.mxu0 0.0
    %5518 = vmatprep.subr.mxu0 0.0
    %5519 = vmatpush1.xpose.msra.mxu0 0.0
    %5520 = vmatprep.subr.mxu0 0.0
    %5521 = vmatpush1.xpose.msra.mxu0 0.0
    %5522 = vmatprep.subr.mxu0 0.0
    %5523 = vmatpush1.xpose.msra.mxu0 0.0
    %5524 = vmatprep.subr.mxu0 0.0
    %5525 = vmatpush1.xpose.msra.mxu0 0.0
    %5526 = vmatprep.mubr.f32.mxu0 0.0
    %v5527 = vand.u32 %v1435, 4294901760
    %v5528 = vsub.f32 %v1435, %v5527
    %v5529 = vand.u32 %v5528, 4294901760
    %5530 = vmatmul.mubr.f32.gmra.mrb[0].mxu0 %v5529
    %v5531 = vpop.f32.mrb[0].mxu0
    %v5532 = vadd.f32 %v5394, %v5531
    %v5533 = vpop.f32.mrb[0].mxu0
    %5534 = vmatprep.mubr.f32.mxu0 0.0
    %v5535 = vand.u32 %v1925, 4294901760
    %v5536 = vsub.f32 %v1925, %v5535
    %v5537 = vand.u32 %v5536, 4294901760
    %5538 = vmatmul.mubr.f32.gmra.mrb[0].mxu0 %v5537
    %v5539 = vpop.f32.mrb[0].mxu0
    %v5540 = vadd.f32 %v5401, %v5539
    %v5541 = vpop.f32.mrb[0].mxu0
    %5542 = vmatprep.mubr.f32.mxu0 0.0
    %v5543 = vand.u32 %v2415, 4294901760
    %v5544 = vsub.f32 %v2415, %v5543
    %v5545 = vand.u32 %v5544, 4294901760
    %5546 = vmatmul.mubr.f32.gmra.mrb[0].mxu0 %v5545
    %v5547 = vpop.f32.mrb[0].mxu0
    %v5548 = vadd.f32 %v5408, %v5547
    %v5549 = vpop.f32.mrb[0].mxu0
    %5550 = vmatprep.mubr.f32.mxu0 0.0
    %v5551 = vand.u32 %v2905, 4294901760
    %v5552 = vsub.f32 %v2905, %v5551
    %v5553 = vand.u32 %v5552, 4294901760
    %5554 = vmatmul.mubr.f32.gmra.mrb[0].mxu0 %v5553
    %v5555 = vpop.f32.mrb[0].mxu0
    %v5556 = vadd.f32 %v5415, %v5555
    %v5557 = vpop.f32.mrb[0].mxu0
    %5558 = vmatprep.mubr.f32.mxu0 0.0
    %v5559 = vand.u32 %v3395, 4294901760
    %v5560 = vsub.f32 %v3395, %v5559
    %v5561 = vand.u32 %v5560, 4294901760
    %5562 = vmatmul.mubr.f32.gmra.mrb[0].mxu0 %v5561
    %v5563 = vpop.f32.mrb[0].mxu0
    %v5564 = vadd.f32 %v5422, %v5563
    %v5565 = vpop.f32.mrb[0].mxu0
    %5566 = vmatprep.mubr.f32.mxu0 0.0
    %v5567 = vand.u32 %v3885, 4294901760
    %v5568 = vsub.f32 %v3885, %v5567
    %v5569 = vand.u32 %v5568, 4294901760
    %5570 = vmatmul.mubr.f32.gmra.mrb[0].mxu0 %v5569
    %v5571 = vpop.f32.mrb[0].mxu0
    %v5572 = vadd.f32 %v5429, %v5571
    %v5573 = vpop.f32.mrb[0].mxu0
    %5574 = vmatprep.mubr.f32.mxu0 0.0
    %v5575 = vand.u32 %v4375, 4294901760
    %v5576 = vsub.f32 %v4375, %v5575
    %v5577 = vand.u32 %v5576, 4294901760
    %5578 = vmatmul.mubr.f32.gmra.mrb[0].mxu0 %v5577
    %v5579 = vpop.f32.mrb[0].mxu0
    %v5580 = vadd.f32 %v5436, %v5579
    %v5581 = vpop.f32.mrb[0].mxu0
    %5582 = vmatprep.mubr.f32.mxu0 0.0
    %v5583 = vand.u32 %v4889, 4294901760
    %v5584 = vsub.f32 %v4889, %v5583
    %v5585 = vand.u32 %v5584, 4294901760
    %5586 = vmatmul.mubr.f32.gmra.mrb[0].mxu0 %v5585
    %v5587 = vpop.f32.mrb[0].mxu0
    %v5588 = vadd.f32 %v5443, %v5587
    %v5589 = vpop.f32.mrb[0].mxu0
    %5590 = vdwg.mxu0
    %5591 = vmatprep.subr.mxu0 0.0
    %v5592 = vand.u32 %v4892, 4294901760
    %v5593 = vsub.f32 %v4892, %v5592
    %v5594 = vand.u32 %v5593, 4294901760
    %5595 = vmatpush1.xpose.msra.mxu0 %v5594
    %5596 = vmatprep.subr.mxu0 0.0
    %v5597 = vand.u32 %v4895, 4294901760
    %v5598 = vsub.f32 %v4895, %v5597
    %v5599 = vand.u32 %v5598, 4294901760
    %5600 = vmatpush1.xpose.msra.mxu0 %v5599
    %5601 = vmatprep.subr.mxu0 0.0
    %v5602 = vand.u32 %v4898, 4294901760
    %v5603 = vsub.f32 %v4898, %v5602
    %v5604 = vand.u32 %v5603, 4294901760
    %5605 = vmatpush1.xpose.msra.mxu0 %v5604
    %5606 = vmatprep.subr.mxu0 0.0
    %v5607 = vand.u32 %v4901, 4294901760
    %v5608 = vsub.f32 %v4901, %v5607
    %v5609 = vand.u32 %v5608, 4294901760
    %5610 = vmatpush1.xpose.msra.mxu0 %v5609
    %5611 = vmatprep.subr.mxu0 0.0
    %v5612 = vand.u32 %v4904, 4294901760
    %v5613 = vsub.f32 %v4904, %v5612
    %v5614 = vand.u32 %v5613, 4294901760
    %5615 = vmatpush1.xpose.msra.mxu0 %v5614
    %5616 = vmatprep.subr.mxu0 0.0
    %v5617 = vand.u32 %v4907, 4294901760
    %v5618 = vsub.f32 %v4907, %v5617
    %v5619 = vand.u32 %v5618, 4294901760
    %5620 = vmatpush1.xpose.msra.mxu0 %v5619
    %5621 = vmatprep.subr.mxu0 0.0
    %v5622 = vand.u32 %v4910, 4294901760
    %v5623 = vsub.f32 %v4910, %v5622
    %v5624 = vand.u32 %v5623, 4294901760
    %5625 = vmatpush1.xpose.msra.mxu0 %v5624
    %5626 = vmatprep.subr.mxu0 0.0
    %v5627 = vand.u32 %v4913, 4294901760
    %v5628 = vsub.f32 %v4913, %v5627
    %v5629 = vand.u32 %v5628, 4294901760
    %5630 = vmatpush1.xpose.msra.mxu0 %v5629
    %5631 = vmatprep.subr.mxu0 0.0
    %v5632 = vand.u32 %v4916, 4294901760
    %v5633 = vsub.f32 %v4916, %v5632
    %v5634 = vand.u32 %v5633, 4294901760
    %5635 = vmatpush1.xpose.msra.mxu0 %v5634
    %5636 = vmatprep.subr.mxu0 0.0
    %v5637 = vand.u32 %v4919, 4294901760
    %v5638 = vsub.f32 %v4919, %v5637
    %v5639 = vand.u32 %v5638, 4294901760
    %5640 = vmatpush1.xpose.msra.mxu0 %v5639
    %5641 = vmatprep.subr.mxu0 0.0
    %v5642 = vand.u32 %v4922, 4294901760
    %v5643 = vsub.f32 %v4922, %v5642
    %v5644 = vand.u32 %v5643, 4294901760
    %5645 = vmatpush1.xpose.msra.mxu0 %v5644
    %5646 = vmatprep.subr.mxu0 0.0
    %v5647 = vand.u32 %v4925, 4294901760
    %v5648 = vsub.f32 %v4925, %v5647
    %v5649 = vand.u32 %v5648, 4294901760
    %5650 = vmatpush1.xpose.msra.mxu0 %v5649
    %5651 = vmatprep.subr.mxu0 0.0
    %v5652 = vand.u32 %v4928, 4294901760
    %v5653 = vsub.f32 %v4928, %v5652
    %v5654 = vand.u32 %v5653, 4294901760
    %5655 = vmatpush1.xpose.msra.mxu0 %v5654
    %5656 = vmatprep.subr.mxu0 0.0
    %v5657 = vand.u32 %v4931, 4294901760
    %v5658 = vsub.f32 %v4931, %v5657
    %v5659 = vand.u32 %v5658, 4294901760
    %5660 = vmatpush1.xpose.msra.mxu0 %v5659
    %5661 = vmatprep.subr.mxu0 0.0
    %v5662 = vand.u32 %v4934, 4294901760
    %v5663 = vsub.f32 %v4934, %v5662
    %v5664 = vand.u32 %v5663, 4294901760
    %5665 = vmatpush1.xpose.msra.mxu0 %v5664
    %5666 = vmatprep.subr.mxu0 0.0
    %v5667 = vand.u32 %v4937, 4294901760
    %v5668 = vsub.f32 %v4937, %v5667
    %v5669 = vand.u32 %v5668, 4294901760
    %5670 = vmatpush1.xpose.msra.mxu0 %v5669
    %5671 = vmatprep.subr.mxu0 0.0
    %5672 = vmatpush1.xpose.msra.mxu0 0.0
    %5673 = vmatprep.subr.mxu0 0.0
    %5674 = vmatpush1.xpose.msra.mxu0 0.0
    %5675 = vmatprep.subr.mxu0 0.0
    %5676 = vmatpush1.xpose.msra.mxu0 0.0
    %5677 = vmatprep.subr.mxu0 0.0
    %5678 = vmatpush1.xpose.msra.mxu0 0.0
    %5679 = vmatprep.subr.mxu0 0.0
    %5680 = vmatpush1.xpose.msra.mxu0 0.0
    %5681 = vmatprep.subr.mxu0 0.0
    %5682 = vmatpush1.xpose.msra.mxu0 0.0
    %5683 = vmatprep.subr.mxu0 0.0
    %5684 = vmatpush1.xpose.msra.mxu0 0.0
    %5685 = vmatprep.subr.mxu0 0.0
    %5686 = vmatpush1.xpose.msra.mxu0 0.0
    %5687 = vmatprep.subr.mxu0 0.0
    %5688 = vmatpush1.xpose.msra.mxu0 0.0
    %5689 = vmatprep.subr.mxu0 0.0
    %5690 = vmatpush1.xpose.msra.mxu0 0.0
    %5691 = vmatprep.subr.mxu0 0.0
    %5692 = vmatpush1.xpose.msra.mxu0 0.0
    %5693 = vmatprep.subr.mxu0 0.0
    %5694 = vmatpush1.xpose.msra.mxu0 0.0
    %5695 = vmatprep.subr.mxu0 0.0
    %5696 = vmatpush1.xpose.msra.mxu0 0.0
    %5697 = vmatprep.subr.mxu0 0.0
    %5698 = vmatpush1.xpose.msra.mxu0 0.0
    %5699 = vmatprep.subr.mxu0 0.0
    %5700 = vmatpush1.xpose.msra.mxu0 0.0
    %5701 = vmatprep.subr.mxu0 0.0
    %5702 = vmatpush1.xpose.msra.mxu0 0.0
    %5703 = vmatprep.mubr.f32.mxu0 0.0
    %v5704 = vand.u32 %v1435, 4294901760
    %5705 = vmatmul.mubr.f32.gmra.mrb[0].mxu0 %v5704
    %v5706 = vpop.f32.mrb[0].mxu0
    %v5707 = vadd.f32 %v5532, %v5706
    %v5708 = vpop.f32.mrb[0].mxu0
    %5709 = vmatprep.mubr.f32.mxu0 0.0
    %v5710 = vand.u32 %v1925, 4294901760
    %5711 = vmatmul.mubr.f32.gmra.mrb[0].mxu0 %v5710
    %v5712 = vpop.f32.mrb[0].mxu0
    %v5713 = vadd.f32 %v5540, %v5712
    %v5714 = vpop.f32.mrb[0].mxu0
    %5715 = vmatprep.mubr.f32.mxu0 0.0
    %v5716 = vand.u32 %v2415, 4294901760
    %5717 = vmatmul.mubr.f32.gmra.mrb[0].mxu0 %v5716
    %v5718 = vpop.f32.mrb[0].mxu0
    %v5719 = vadd.f32 %v5548, %v5718
    %v5720 = vpop.f32.mrb[0].mxu0
    %5721 = vmatprep.mubr.f32.mxu0 0.0
    %v5722 = vand.u32 %v2905, 4294901760
    %5723 = vmatmul.mubr.f32.gmra.mrb[0].mxu0 %v5722
    %v5724 = vpop.f32.mrb[0].mxu0
    %v5725 = vadd.f32 %v5556, %v5724
    %v5726 = vpop.f32.mrb[0].mxu0
    %5727 = vmatprep.mubr.f32.mxu0 0.0
    %v5728 = vand.u32 %v3395, 4294901760
    %5729 = vmatmul.mubr.f32.gmra.mrb[0].mxu0 %v5728
    %v5730 = vpop.f32.mrb[0].mxu0
    %v5731 = vadd.f32 %v5564, %v5730
    %v5732 = vpop.f32.mrb[0].mxu0
    %5733 = vmatprep.mubr.f32.mxu0 0.0
    %v5734 = vand.u32 %v3885, 4294901760
    %5735 = vmatmul.mubr.f32.gmra.mrb[0].mxu0 %v5734
    %v5736 = vpop.f32.mrb[0].mxu0
    %v5737 = vadd.f32 %v5572, %v5736
    %v5738 = vpop.f32.mrb[0].mxu0
    %5739 = vmatprep.mubr.f32.mxu0 0.0
    %v5740 = vand.u32 %v4375, 4294901760
    %5741 = vmatmul.mubr.f32.gmra.mrb[0].mxu0 %v5740
    %v5742 = vpop.f32.mrb[0].mxu0
    %v5743 = vadd.f32 %v5580, %v5742
    %v5744 = vpop.f32.mrb[0].mxu0
    %5745 = vmatprep.mubr.f32.mxu0 0.0
    %v5746 = vand.u32 %v4889, 4294901760
    %5747 = vmatmul.mubr.f32.gmra.mrb[0].mxu0 %v5746
    %v5748 = vpop.f32.mrb[0].mxu0
    %v5749 = vadd.f32 %v5588, %v5748
    %v5750 = vpop.f32.mrb[0].mxu0
    %5751 = vdwg.mxu0
    %5752 = vmatprep.subr.mxu0 0.0
    %v5753 = vand.u32 %v4892, 4294901760
    %5754 = vmatpush1.xpose.msra.mxu0 %v5753
    %5755 = vmatprep.subr.mxu0 0.0
    %v5756 = vand.u32 %v4895, 4294901760
    %5757 = vmatpush1.xpose.msra.mxu0 %v5756
    %5758 = vmatprep.subr.mxu0 0.0
    %v5759 = vand.u32 %v4898, 4294901760
    %5760 = vmatpush1.xpose.msra.mxu0 %v5759
    %5761 = vmatprep.subr.mxu0 0.0
    %v5762 = vand.u32 %v4901, 4294901760
    %5763 = vmatpush1.xpose.msra.mxu0 %v5762
    %5764 = vmatprep.subr.mxu0 0.0
    %v5765 = vand.u32 %v4904, 4294901760
    %5766 = vmatpush1.xpose.msra.mxu0 %v5765
    %5767 = vmatprep.subr.mxu0 0.0
    %v5768 = vand.u32 %v4907, 4294901760
    %5769 = vmatpush1.xpose.msra.mxu0 %v5768
    %5770 = vmatprep.subr.mxu0 0.0
    %v5771 = vand.u32 %v4910, 4294901760
    %5772 = vmatpush1.xpose.msra.mxu0 %v5771
    %5773 = vmatprep.subr.mxu0 0.0
    %v5774 = vand.u32 %v4913, 4294901760
    %5775 = vmatpush1.xpose.msra.mxu0 %v5774
    %5776 = vmatprep.subr.mxu0 0.0
    %v5777 = vand.u32 %v4916, 4294901760
    %5778 = vmatpush1.xpose.msra.mxu0 %v5777
    %5779 = vmatprep.subr.mxu0 0.0
    %v5780 = vand.u32 %v4919, 4294901760
    %5781 = vmatpush1.xpose.msra.mxu0 %v5780
    %5782 = vmatprep.subr.mxu0 0.0
    %v5783 = vand.u32 %v4922, 4294901760
    %5784 = vmatpush1.xpose.msra.mxu0 %v5783
    %5785 = vmatprep.subr.mxu0 0.0
    %v5786 = vand.u32 %v4925, 4294901760
    %5787 = vmatpush1.xpose.msra.mxu0 %v5786
    %5788 = vmatprep.subr.mxu0 0.0
    %v5789 = vand.u32 %v4928, 4294901760
    %5790 = vmatpush1.xpose.msra.mxu0 %v5789
    %5791 = vmatprep.subr.mxu0 0.0
    %v5792 = vand.u32 %v4931, 4294901760
    %5793 = vmatpush1.xpose.msra.mxu0 %v5792
    %5794 = vmatprep.subr.mxu0 0.0
    %v5795 = vand.u32 %v4934, 4294901760
    %5796 = vmatpush1.xpose.msra.mxu0 %v5795
    %5797 = vmatprep.subr.mxu0 0.0
    %v5798 = vand.u32 %v4937, 4294901760
    %5799 = vmatpush1.xpose.msra.mxu0 %v5798
    %5800 = vmatprep.subr.mxu0 0.0
    %5801 = vmatpush1.xpose.msra.mxu0 0.0
    %5802 = vmatprep.subr.mxu0 0.0
    %5803 = vmatpush1.xpose.msra.mxu0 0.0
    %5804 = vmatprep.subr.mxu0 0.0
    %5805 = vmatpush1.xpose.msra.mxu0 0.0
    %5806 = vmatprep.subr.mxu0 0.0
    %5807 = vmatpush1.xpose.msra.mxu0 0.0
    %5808 = vmatprep.subr.mxu0 0.0
    %5809 = vmatpush1.xpose.msra.mxu0 0.0
    %5810 = vmatprep.subr.mxu0 0.0
    %5811 = vmatpush1.xpose.msra.mxu0 0.0
    %5812 = vmatprep.subr.mxu0 0.0
    %5813 = vmatpush1.xpose.msra.mxu0 0.0
    %5814 = vmatprep.subr.mxu0 0.0
    %5815 = vmatpush1.xpose.msra.mxu0 0.0
    %5816 = vmatprep.subr.mxu0 0.0
    %5817 = vmatpush1.xpose.msra.mxu0 0.0
    %5818 = vmatprep.subr.mxu0 0.0
    %5819 = vmatpush1.xpose.msra.mxu0 0.0
    %5820 = vmatprep.subr.mxu0 0.0
    %5821 = vmatpush1.xpose.msra.mxu0 0.0
    %5822 = vmatprep.subr.mxu0 0.0
    %5823 = vmatpush1.xpose.msra.mxu0 0.0
    %5824 = vmatprep.subr.mxu0 0.0
    %5825 = vmatpush1.xpose.msra.mxu0 0.0
    %5826 = vmatprep.subr.mxu0 0.0
    %5827 = vmatpush1.xpose.msra.mxu0 0.0
    %5828 = vmatprep.subr.mxu0 0.0
    %5829 = vmatpush1.xpose.msra.mxu0 0.0
    %5830 = vmatprep.subr.mxu0 0.0
    %5831 = vmatpush1.xpose.msra.mxu0 0.0
    %5832 = vmatprep.mubr.f32.mxu0 0.0
    %v5833 = vand.u32 %v1435, 4294901760
    %5834 = vmatmul.mubr.f32.gmra.mrb[0].mxu0 %v5833
    %v5835 = vpop.f32.mrb[0].mxu0
    %v5836 = vadd.f32 %v5707, %v5835
    %v5837 = vpop.f32.mrb[0].mxu0
    %5838 = vmatprep.mubr.f32.mxu0 0.0
    %v5839 = vand.u32 %v1925, 4294901760
    %5840 = vmatmul.mubr.f32.gmra.mrb[0].mxu0 %v5839
    %v5841 = vpop.f32.mrb[0].mxu0
    %v5842 = vadd.f32 %v5713, %v5841
    %v5843 = vpop.f32.mrb[0].mxu0
    %5844 = vmatprep.mubr.f32.mxu0 0.0
    %v5845 = vand.u32 %v2415, 4294901760
    %5846 = vmatmul.mubr.f32.gmra.mrb[0].mxu0 %v5845
    %v5847 = vpop.f32.mrb[0].mxu0
    %v5848 = vadd.f32 %v5719, %v5847
    %v5849 = vpop.f32.mrb[0].mxu0
    %5850 = vmatprep.mubr.f32.mxu0 0.0
    %v5851 = vand.u32 %v2905, 4294901760
    %5852 = vmatmul.mubr.f32.gmra.mrb[0].mxu0 %v5851
    %v5853 = vpop.f32.mrb[0].mxu0
    %v5854 = vadd.f32 %v5725, %v5853
    %v5855 = vpop.f32.mrb[0].mxu0
    %5856 = vmatprep.mubr.f32.mxu0 0.0
    %v5857 = vand.u32 %v3395, 4294901760
    %5858 = vmatmul.mubr.f32.gmra.mrb[0].mxu0 %v5857
    %v5859 = vpop.f32.mrb[0].mxu0
    %v5860 = vadd.f32 %v5731, %v5859
    %v5861 = vpop.f32.mrb[0].mxu0
    %5862 = vmatprep.mubr.f32.mxu0 0.0
    %v5863 = vand.u32 %v3885, 4294901760
    %5864 = vmatmul.mubr.f32.gmra.mrb[0].mxu0 %v5863
    %v5865 = vpop.f32.mrb[0].mxu0
    %v5866 = vadd.f32 %v5737, %v5865
    %v5867 = vpop.f32.mrb[0].mxu0
    %5868 = vmatprep.mubr.f32.mxu0 0.0
    %v5869 = vand.u32 %v4375, 4294901760
    %5870 = vmatmul.mubr.f32.gmra.mrb[0].mxu0 %v5869
    %v5871 = vpop.f32.mrb[0].mxu0
    %v5872 = vadd.f32 %v5743, %v5871
    %v5873 = vpop.f32.mrb[0].mxu0
    %5874 = vmatprep.mubr.f32.mxu0 0.0
    %v5875 = vand.u32 %v4889, 4294901760
    %5876 = vmatmul.mubr.f32.gmra.mrb[0].mxu0 %v5875
    %v5877 = vpop.f32.mrb[0].mxu0
    %v5878 = vadd.f32 %v5749, %v5877
    %v5879 = vpop.f32.mrb[0].mxu0
    %5880 = vdwg.mxu0
    %5881 = vst [vmem:[#allocation2] sm:$0xff] %v5836
    %5882 = vst [vmem:[#allocation2 + $0x8] sm:$0xff] %v5842
    %5883 = vst [vmem:[#allocation2 + $0x10] sm:$0xff] %v5848
    %5884 = vst [vmem:[#allocation2 + $0x18] sm:$0xff] %v5854
    %5885 = vst [vmem:[#allocation2 + $0x20] sm:$0xff] %v5860
    %5886 = vst [vmem:[#allocation2 + $0x28] sm:$0xff] %v5866
    %5887 = vst [vmem:[#allocation2 + $0x30] sm:$0xff] %v5872
    %5888 = vst [vmem:[#allocation2 + $0x38] sm:$0xff] %v5878
    // Predicated region
    $region34: #{tpu_custom_call.1} parent=1 // pred_check
      _
    $region35: #{tpu_custom_call.1} parent=1 // pred_check_branch
      %5890 = sbr.rel (0) target = $region37
    $region36: #{tpu_custom_call.1} parent=1 // pred_region
      %s5892 = ssub.s32 1024, 1024
      %5893 = vsyncadd [#allocation3], %s5892
      %s5894 = sshll.u32 [#allocation2], 4
      %s5895 = int_to_ptr.vmem [resolvable:$true] %s5894
      %5900 = dma.vmem_to_hbm [thread:$0]  %s5895, 1024, %s8, [#allocation3], 128, 128, 8
    $region37: #{tpu_custom_call.1} parent=1 // pred_fallthru
      _
    // Predicated region
    $region38: #{tpu_custom_call.1} parent=1 // pred_check
      _
    $region39: #{tpu_custom_call.1} parent=1 // pred_check_branch
      %5902 = sbr.rel (0) target = $region41
    $region40: #{tpu_custom_call.1} parent=1 // pred_region
      %s5904 = ssub.s32 128, 128
      %5905 = vsyncadd [#allocation5], %s5904
      %s5907 = sshll.u32 [#allocation4], 4
      %s5908 = int_to_ptr.vmem [resolvable:$true] %s5907
      %5910 = dma.vmem_to_hbm [thread:$0]  %s5908, 128, %s9, [#allocation5]
    $region41: #{tpu_custom_call.1} parent=1 // pred_fallthru
      _
    // Predicated region
    $region42: #{tpu_custom_call.1} parent=1 // pred_check
      _
    $region43: #{tpu_custom_call.1} parent=1 // pred_check_branch
      %5912 = sbr.rel (0) target = $region45
    $region44: #{tpu_custom_call.1} parent=1 // pred_region
      %5913 = dma.done [#allocation3], 1024
    $region45: #{tpu_custom_call.1} parent=1 // pred_fallthru
      _
    // Predicated region
    $region46: #{tpu_custom_call.1} parent=1 // pred_check
      _
    $region47: #{tpu_custom_call.1} parent=1 // pred_check_branch
      %5915 = sbr.rel (0) target = $region49
    $region48: #{tpu_custom_call.1} parent=1 // pred_region
      %5916 = dma.done [#allocation5], 128
    $region49: #{tpu_custom_call.1} parent=1 // pred_fallthru
      _
    %5917 = vsyncpa [#allocation3], 1
    %5918 = vsyncpa [#allocation5], 1

</llo_original>
